<compile_context>
chip_gen: v7x
topology: tpu7x:2x2x1
jax: 0.10.0
libtpu: 0.0.40
codegen_flags: <defaults>
</compile_context>

<pallas_src>
import jax
import jax.numpy as jnp
from jax.experimental import pallas as pl
from jax.experimental.pallas import tpu as pltpu


def _round_up(v, m):
    return (v + m - 1) // m * m


def conv_bn_silu_kernel(x_ref, w_ref, scale_ref, bias_ref, o_ref, acc_ref):
    """One (batch, row-tile, cout-tile) block of Conv(k, s=1, 'same') + BN + SiLU.

    x_ref:     (1, 1, tH + K-1, Wp, C1)  halo row tile, NHWC, W padded to % 8
    w_ref:     (K*K, C1, tC)             conv weights, tap-major, one cout tile
    scale_ref: (1, tC) f32               gamma / sqrt(var + eps)
    bias_ref:  (1, tC) f32               beta - mean * scale
    o_ref:     (1, tH, Wp, tC)
    acc_ref:   (tH*Wp, tC) f32           VMEM accumulator scratch
    """
    _, _, tHp, Wp, C1 = x_ref.shape
    KK, _, tC = w_ref.shape
    K = int(round(KK ** 0.5))
    tH = tHp - (K - 1)
    L = tH * Wp

    # Flatten (rows, W) into a single sublane axis. Wp % 8 == 0, so this reshape
    # and the aligned row slices below are layout-preserving (no relayout copy).
    xflat = x_ref[...].reshape(tHp * Wp, C1)

    first = True
    for i in range(K):                      # H tap: aligned slice (i*Wp % 8 == 0)
        xs = xflat[i * Wp:i * Wp + L]
        for j in range(K):                  # W tap: XLU sublane rotation
            if j == 0:
                xr = xs
            else:
                # jnp.roll semantics: out[r] = xs[(r - shift) % L] = xs[r + j];
                # wrap-around only lands in the cropped right-pad columns.
                xr = pltpu.roll(xs, shift=L - j, axis=0)
            # Native-dtype MXU operands; f32 accumulation.
            tap = jnp.dot(xr, w_ref[i * K + j],
                          preferred_element_type=jnp.float32)
            if first:
                acc_ref[...] = tap
                first = False
            else:
                acc_ref[...] += tap

    # Fused inference BatchNorm + SiLU (sigmoid/exp issue on the EUP slot).
    y = acc_ref[...] * scale_ref[...] + bias_ref[...]
    y = y * jax.nn.sigmoid(y)
    o_ref[...] = y.reshape(o_ref.shape).astype(o_ref.dtype)


def _pick_tile_h(H, Wp, C1, tC, K, itemsize, budget_bytes=12 * 1024 * 1024):
    """Largest row tile whose double-buffered working set fits the VMEM budget.

    Budget is conservative so the pipeline stays 2-deep on every generation
    (v5e default scoped VMEM = 16 MiB, v7x physical VMEM = 64 MiB)."""
    for cand in (256, 128, 64, 32, 16, 8):
        if cand > max(8, H):
            continue
        thp = cand + (K - 1)
        need = (2 * thp * Wp * C1 * itemsize      # input halo tile (x2 buffers)
                + 2 * cand * Wp * tC * itemsize   # output tile (x2 buffers)
                + cand * Wp * tC * 4              # f32 accumulator scratch
                + K * K * C1 * tC * itemsize)     # resident weights
        if need <= budget_bytes:
            return cand
    return 8


def conv_bn_silu(x_nchw, weight_oihw, bn_gamma, bn_beta, bn_mean, bn_var,
                 eps=1e-5, tile_h=None):
    """Conv2d(k, s=1, p='same', g=1, d=1, bias=False) + BatchNorm2d + SiLU.

    NCHW in / NCHW out (PyTorch convention); the kernel itself runs NHWC."""
    N, C1, H, W = x_nchw.shape
    C2, C1w, Kh, Kw = weight_oihw.shape
    assert C1w == C1 and Kh == Kw, "groups=1, square kernel only"
    K = Kh
    assert K % 2 == 1, "autopad('same') path implemented for odd k"
    p = K // 2

    dt = x_nchw.dtype
    itemsize = jnp.dtype(dt).itemsize

    # Lane-dense output channels: pad C2 to a multiple of 128, tile at 256 when
    # divisible (v6e/v7x MXU is 256 wide) -> unmasked stores, full MXU tiles.
    C2p = _round_up(C2, 128)
    tC = 256 if C2p % 256 == 0 else 128
    nC = C2p // tC

    # Pad W (including the conv halo) to a sublane multiple so the in-kernel
    # flatten and H-slices stay layout-preserving.
    Wp = _round_up(W + 2 * p, 8)

    if tile_h is None:
        tile_h = _pick_tile_h(H, Wp, C1, tC, K, itemsize)
    tH = tile_h
    nH = -(-H // tH)
    H_r = nH * tH
    tHp = tH + 2 * p

    # --- single wrapper layout pass: NCHW->NHWC, zero-pad, halo row windows ---
    x = jnp.transpose(x_nchw, (0, 2, 3, 1))
    x = jnp.pad(x, ((0, 0), (p, H_r - H + p), (p, Wp - W - p), (0, 0)))
    row_idx = jnp.arange(nH)[:, None] * tH + jnp.arange(tHp)[None, :]
    x_tiles = x[:, row_idx]                      # (N, nH, tHp, Wp, C1)
    # NOTE: in a full NHWC model the halo rows would instead be fetched by the
    # kernel's own DMA (pl.ANY input + pltpu.make_async_copy) so HBM is touched
    # exactly once.

    # Weights (tap-major) and folded BN parameters, padded to C2p lanes.
    w = jnp.transpose(weight_oihw, (2, 3, 1, 0)).reshape(K * K, C1, C2)
    w = jnp.pad(w, ((0, 0), (0, 0), (0, C2p - C2))).astype(dt)
    inv = bn_gamma.astype(jnp.float32) * jax.lax.rsqrt(
        bn_var.astype(jnp.float32) + eps)
    scale = jnp.pad(inv, (0, C2p - C2)).reshape(1, C2p)
    bias = jnp.pad(bn_beta.astype(jnp.float32)
                   - bn_mean.astype(jnp.float32) * inv,
                   (0, C2p - C2)).reshape(1, C2p)

    out = pl.pallas_call(
        conv_bn_silu_kernel,
        out_shape=jax.ShapeDtypeStruct((N, H_r, Wp, C2p), dt),
        grid=(N, nH, nC),
        in_specs=[
            pl.BlockSpec((1, 1, tHp, Wp, C1), lambda n, t, c: (n, t, 0, 0, 0)),
            pl.BlockSpec((K * K, C1, tC), lambda n, t, c: (0, 0, c)),
            pl.BlockSpec((1, tC), lambda n, t, c: (0, c)),
            pl.BlockSpec((1, tC), lambda n, t, c: (0, c)),
        ],
        out_specs=pl.BlockSpec((1, tH, Wp, tC), lambda n, t, c: (n, t, 0, c)),
        scratch_shapes=[pltpu.VMEM((tH * Wp, tC), jnp.float32)],
        compiler_params=pltpu.CompilerParams(
            # every block is independent -> all axes parallel (v7x megacore can
            # split row/cout tiles even at batch=1)
            dimension_semantics=("parallel", "parallel", "parallel"),
            vmem_limit_bytes=32 * 1024 * 1024),
    )(x_tiles, w, scale, bias)

    # Crop alignment padding; the crop fuses with the NHWC->NCHW transpose.
    return jnp.transpose(out[:, :H, :W, :C2], (0, 3, 1, 2))


def reference(x_nchw, weight_oihw, bn_gamma, bn_beta, bn_mean, bn_var, eps=1e-5):
    """Pure-JAX reference for correctness checking."""
    y = jax.lax.conv_general_dilated(
        x_nchw.astype(jnp.float32), weight_oihw.astype(jnp.float32),
        window_strides=(1, 1), padding="SAME",
        dimension_numbers=("NCHW", "OIHW", "NCHW"))
    scale = (bn_gamma / jnp.sqrt(bn_var + eps)).reshape(1, -1, 1, 1)
    bias = (bn_beta - bn_mean * bn_gamma / jnp.sqrt(bn_var + eps)).reshape(1, -1, 1, 1)
    y = y * scale + bias
    return y * jax.nn.sigmoid(y)


if __name__ == "__main__":
    # Conv(c1=4, c2=8, k=3, s=1) at small shapes.
    N, C1, H, W = 2, 4, 16, 16
    C2, K = 8, 3

    key = jax.random.PRNGKey(0)
    kx, kw, kg, kb, km, kv = jax.random.split(key, 6)

    x = jax.random.normal(kx, (N, C1, H, W), dtype=jnp.float32)
    weight = 0.1 * jax.random.normal(kw, (C2, C1, K, K), dtype=jnp.float32)
    bn_gamma = 1.0 + 0.1 * jax.random.normal(kg, (C2,), jnp.float32)
    bn_beta = 0.1 * jax.random.normal(kb, (C2,), jnp.float32)
    bn_mean = 0.1 * jax.random.normal(km, (C2,), jnp.float32)
    bn_var = jax.nn.softplus(jax.random.normal(kv, (C2,), jnp.float32)) + 0.5

    ref = reference(x, weight, bn_gamma, bn_beta, bn_mean, bn_var)

    # tile_h=8 exercises the halo row-tiling path (2 row tiles); tile_h=None
    # exercises the auto (VMEM-budget) tile selection.
    for th in (8, None):
        out = conv_bn_silu(x, weight, bn_gamma, bn_beta, bn_mean, bn_var,
                           tile_h=th)
        out = jax.block_until_ready(out)
        assert out.shape == (N, C2, H, W)
        err = jnp.max(jnp.abs(out - ref.astype(out.dtype)))
        assert jnp.allclose(out, ref.astype(out.dtype), rtol=2e-4, atol=2e-4), \
            f"mismatch (tile_h={th}): max abs err {err}"

    print("KERNEL_OK")
</pallas_src>

<mosaic_0001>
module attributes {stable_mosaic.version = 11 : i64} {
  func.func @conv_bn_silu_kernel(%arg0: i32, %arg1: i32, %arg2: i32, %arg3: memref<1x1x10x24x4xf32, #tpu.memory_space<vmem>>, %arg4: memref<9x4x128xf32, #tpu.memory_space<vmem>>, %arg5: memref<1x128xf32, #tpu.memory_space<vmem>>, %arg6: memref<1x128xf32, #tpu.memory_space<vmem>>, %arg7: memref<1x8x24x128xf32, #tpu.memory_space<vmem>>, %arg8: memref<192x128xf32, #tpu.memory_space<vmem>>) attributes {dimension_semantics = [#tpu.dimension_semantics<parallel>, #tpu.dimension_semantics<parallel>, #tpu.dimension_semantics<parallel>], iteration_bounds = array<i64: 2, 2, 1>, scalar_prefetch = 0 : i64, scratch_operands = 1 : i64, tpu.core_type = #tpu.core_type<tc>, window_params = [{transform_indices = @transform_0, window_bounds = array<i64: 1, 1, 10, 24, 4>}, {transform_indices = @transform_1, window_bounds = array<i64: 9, 4, 128>}, {transform_indices = @transform_2, window_bounds = array<i64: 1, 128>}, {transform_indices = @transform_3, window_bounds = array<i64: 1, 128>}, {transform_indices = @transform_4, window_bounds = array<i64: 1, 8, 24, 128>}]} {
    %c0 = arith.constant 0 : index
    %c0_0 = arith.constant 0 : index
    %c0_1 = arith.constant 0 : index
    %c0_2 = arith.constant 0 : index
    %c0_3 = arith.constant 0 : index
    %0 = vector.load %arg3[%c0, %c0_0, %c0_1, %c0_2, %c0_3] : memref<1x1x10x24x4xf32, #tpu.memory_space<vmem>>, vector<1x1x10x24x4xf32>
    %1 = vector.shape_cast %0 : vector<1x1x10x24x4xf32> to vector<240x4xf32>
    %2 = vector.extract_strided_slice %1 {offsets = [0, 0], sizes = [192, 4], strides = [1, 1]} : vector<240x4xf32> to vector<192x4xf32>
    %c0_4 = arith.constant 0 : index
    %c0_5 = arith.constant 0 : index
    %c0_6 = arith.constant 0 : index
    %3 = vector.load %arg4[%c0_4, %c0_5, %c0_6] : memref<9x4x128xf32, #tpu.memory_space<vmem>>, vector<1x4x128xf32>
    %4 = vector.shape_cast %3 : vector<1x4x128xf32> to vector<4x128xf32>
    %cst = arith.constant dense<0.000000e+00> : vector<192x128xf32>
    %5 = tpu.matmul %2, %4, %cst {dimension_numbers = #tpu.dot_dimension_numbers<[1], [0], [0], [1], [0, 0, 1, 1], [], []>} : vector<192x4xf32>, vector<4x128xf32>, vector<192x128xf32> -> vector<192x128xf32>
    %c0_7 = arith.constant 0 : index
    %c0_8 = arith.constant 0 : index
    %6 = vector.load %arg8[%c0_7, %c0_8] : memref<192x128xf32, #tpu.memory_space<vmem>>, vector<192x128xf32>
    tpu.vector_store %arg8[%c0_7, %c0_8], %5 {strides = array<i32>} : memref<192x128xf32, #tpu.memory_space<vmem>>, vector<192x128xf32>,
    %c191_i32 = arith.constant 191 : i32
    %7 = tpu.dynamic_rotate %2 by %c191_i32 dim 0 : vector<192x4xf32>, i32 -> vector<192x4xf32>
    %c1 = arith.constant 1 : index
    %c0_9 = arith.constant 0 : index
    %c0_10 = arith.constant 0 : index
    %8 = vector.load %arg4[%c1, %c0_9, %c0_10] : memref<9x4x128xf32, #tpu.memory_space<vmem>>, vector<1x4x128xf32>
    %9 = vector.shape_cast %8 : vector<1x4x128xf32> to vector<4x128xf32>
    %cst_11 = arith.constant dense<0.000000e+00> : vector<192x128xf32>
    %10 = tpu.matmul %7, %9, %cst_11 {dimension_numbers = #tpu.dot_dimension_numbers<[1], [0], [0], [1], [0, 0, 1, 1], [], []>} : vector<192x4xf32>, vector<4x128xf32>, vector<192x128xf32> -> vector<192x128xf32>
    %c0_12 = arith.constant 0 : index
    %c0_13 = arith.constant 0 : index
    %11 = vector.load %arg8[%c0_12, %c0_13] : memref<192x128xf32, #tpu.memory_space<vmem>>, vector<192x128xf32>
    %12 = arith.addf %11, %10 : vector<192x128xf32>
    %c0_14 = arith.constant 0 : index
    %c0_15 = arith.constant 0 : index
    %13 = vector.load %arg8[%c0_14, %c0_15] : memref<192x128xf32, #tpu.memory_space<vmem>>, vector<192x128xf32>
    tpu.vector_store %arg8[%c0_14, %c0_15], %12 {strides = array<i32>} : memref<192x128xf32, #tpu.memory_space<vmem>>, vector<192x128xf32>,
    %c190_i32 = arith.constant 190 : i32
    %14 = tpu.dynamic_rotate %2 by %c190_i32 dim 0 : vector<192x4xf32>, i32 -> vector<192x4xf32>
    %c2 = arith.constant 2 : index
    %c0_16 = arith.constant 0 : index
    %c0_17 = arith.constant 0 : index
    %15 = vector.load %arg4[%c2, %c0_16, %c0_17] : memref<9x4x128xf32, #tpu.memory_space<vmem>>, vector<1x4x128xf32>
    %16 = vector.shape_cast %15 : vector<1x4x128xf32> to vector<4x128xf32>
    %cst_18 = arith.constant dense<0.000000e+00> : vector<192x128xf32>
    %17 = tpu.matmul %14, %16, %cst_18 {dimension_numbers = #tpu.dot_dimension_numbers<[1], [0], [0], [1], [0, 0, 1, 1], [], []>} : vector<192x4xf32>, vector<4x128xf32>, vector<192x128xf32> -> vector<192x128xf32>
    %c0_19 = arith.constant 0 : index
    %c0_20 = arith.constant 0 : index
    %18 = vector.load %arg8[%c0_19, %c0_20] : memref<192x128xf32, #tpu.memory_space<vmem>>, vector<192x128xf32>
    %19 = arith.addf %18, %17 : vector<192x128xf32>
    %c0_21 = arith.constant 0 : index
    %c0_22 = arith.constant 0 : index
    %20 = vector.load %arg8[%c0_21, %c0_22] : memref<192x128xf32, #tpu.memory_space<vmem>>, vector<192x128xf32>
    tpu.vector_store %arg8[%c0_21, %c0_22], %19 {strides = array<i32>} : memref<192x128xf32, #tpu.memory_space<vmem>>, vector<192x128xf32>,
    %21 = vector.extract_strided_slice %1 {offsets = [24, 0], sizes = [192, 4], strides = [1, 1]} : vector<240x4xf32> to vector<192x4xf32>
    %c3 = arith.constant 3 : index
    %c0_23 = arith.constant 0 : index
    %c0_24 = arith.constant 0 : index
    %22 = vector.load %arg4[%c3, %c0_23, %c0_24] : memref<9x4x128xf32, #tpu.memory_space<vmem>>, vector<1x4x128xf32>
    %23 = vector.shape_cast %22 : vector<1x4x128xf32> to vector<4x128xf32>
    %cst_25 = arith.constant dense<0.000000e+00> : vector<192x128xf32>
    %24 = tpu.matmul %21, %23, %cst_25 {dimension_numbers = #tpu.dot_dimension_numbers<[1], [0], [0], [1], [0, 0, 1, 1], [], []>} : vector<192x4xf32>, vector<4x128xf32>, vector<192x128xf32> -> vector<192x128xf32>
    %c0_26 = arith.constant 0 : index
    %c0_27 = arith.constant 0 : index
    %25 = vector.load %arg8[%c0_26, %c0_27] : memref<192x128xf32, #tpu.memory_space<vmem>>, vector<192x128xf32>
    %26 = arith.addf %25, %24 : vector<192x128xf32>
    %c0_28 = arith.constant 0 : index
    %c0_29 = arith.constant 0 : index
    %27 = vector.load %arg8[%c0_28, %c0_29] : memref<192x128xf32, #tpu.memory_space<vmem>>, vector<192x128xf32>
    tpu.vector_store %arg8[%c0_28, %c0_29], %26 {strides = array<i32>} : memref<192x128xf32, #tpu.memory_space<vmem>>, vector<192x128xf32>,
    %c191_i32_30 = arith.constant 191 : i32
    %28 = tpu.dynamic_rotate %21 by %c191_i32_30 dim 0 : vector<192x4xf32>, i32 -> vector<192x4xf32>
    %c4 = arith.constant 4 : index
    %c0_31 = arith.constant 0 : index
    %c0_32 = arith.constant 0 : index
    %29 = vector.load %arg4[%c4, %c0_31, %c0_32] : memref<9x4x128xf32, #tpu.memory_space<vmem>>, vector<1x4x128xf32>
    %30 = vector.shape_cast %29 : vector<1x4x128xf32> to vector<4x128xf32>
    %cst_33 = arith.constant dense<0.000000e+00> : vector<192x128xf32>
    %31 = tpu.matmul %28, %30, %cst_33 {dimension_numbers = #tpu.dot_dimension_numbers<[1], [0], [0], [1], [0, 0, 1, 1], [], []>} : vector<192x4xf32>, vector<4x128xf32>, vector<192x128xf32> -> vector<192x128xf32>
    %c0_34 = arith.constant 0 : index
    %c0_35 = arith.constant 0 : index
    %32 = vector.load %arg8[%c0_34, %c0_35] : memref<192x128xf32, #tpu.memory_space<vmem>>, vector<192x128xf32>
    %33 = arith.addf %32, %31 : vector<192x128xf32>
    %c0_36 = arith.constant 0 : index
    %c0_37 = arith.constant 0 : index
    %34 = vector.load %arg8[%c0_36, %c0_37] : memref<192x128xf32, #tpu.memory_space<vmem>>, vector<192x128xf32>
    tpu.vector_store %arg8[%c0_36, %c0_37], %33 {strides = array<i32>} : memref<192x128xf32, #tpu.memory_space<vmem>>, vector<192x128xf32>,
    %c190_i32_38 = arith.constant 190 : i32
    %35 = tpu.dynamic_rotate %21 by %c190_i32_38 dim 0 : vector<192x4xf32>, i32 -> vector<192x4xf32>
    %c5 = arith.constant 5 : index
    %c0_39 = arith.constant 0 : index
    %c0_40 = arith.constant 0 : index
    %36 = vector.load %arg4[%c5, %c0_39, %c0_40] : memref<9x4x128xf32, #tpu.memory_space<vmem>>, vector<1x4x128xf32>
    %37 = vector.shape_cast %36 : vector<1x4x128xf32> to vector<4x128xf32>
    %cst_41 = arith.constant dense<0.000000e+00> : vector<192x128xf32>
    %38 = tpu.matmul %35, %37, %cst_41 {dimension_numbers = #tpu.dot_dimension_numbers<[1], [0], [0], [1], [0, 0, 1, 1], [], []>} : vector<192x4xf32>, vector<4x128xf32>, vector<192x128xf32> -> vector<192x128xf32>
    %c0_42 = arith.constant 0 : index
    %c0_43 = arith.constant 0 : index
    %39 = vector.load %arg8[%c0_42, %c0_43] : memref<192x128xf32, #tpu.memory_space<vmem>>, vector<192x128xf32>
    %40 = arith.addf %39, %38 : vector<192x128xf32>
    %c0_44 = arith.constant 0 : index
    %c0_45 = arith.constant 0 : index
    %41 = vector.load %arg8[%c0_44, %c0_45] : memref<192x128xf32, #tpu.memory_space<vmem>>, vector<192x128xf32>
    tpu.vector_store %arg8[%c0_44, %c0_45], %40 {strides = array<i32>} : memref<192x128xf32, #tpu.memory_space<vmem>>, vector<192x128xf32>,
    %42 = vector.extract_strided_slice %1 {offsets = [48, 0], sizes = [192, 4], strides = [1, 1]} : vector<240x4xf32> to vector<192x4xf32>
    %c6 = arith.constant 6 : index
    %c0_46 = arith.constant 0 : index
    %c0_47 = arith.constant 0 : index
    %43 = vector.load %arg4[%c6, %c0_46, %c0_47] : memref<9x4x128xf32, #tpu.memory_space<vmem>>, vector<1x4x128xf32>
    %44 = vector.shape_cast %43 : vector<1x4x128xf32> to vector<4x128xf32>
    %cst_48 = arith.constant dense<0.000000e+00> : vector<192x128xf32>
    %45 = tpu.matmul %42, %44, %cst_48 {dimension_numbers = #tpu.dot_dimension_numbers<[1], [0], [0], [1], [0, 0, 1, 1], [], []>} : vector<192x4xf32>, vector<4x128xf32>, vector<192x128xf32> -> vector<192x128xf32>
    %c0_49 = arith.constant 0 : index
    %c0_50 = arith.constant 0 : index
    %46 = vector.load %arg8[%c0_49, %c0_50] : memref<192x128xf32, #tpu.memory_space<vmem>>, vector<192x128xf32>
    %47 = arith.addf %46, %45 : vector<192x128xf32>
    %c0_51 = arith.constant 0 : index
    %c0_52 = arith.constant 0 : index
    %48 = vector.load %arg8[%c0_51, %c0_52] : memref<192x128xf32, #tpu.memory_space<vmem>>, vector<192x128xf32>
    tpu.vector_store %arg8[%c0_51, %c0_52], %47 {strides = array<i32>} : memref<192x128xf32, #tpu.memory_space<vmem>>, vector<192x128xf32>,
    %c191_i32_53 = arith.constant 191 : i32
    %49 = tpu.dynamic_rotate %42 by %c191_i32_53 dim 0 : vector<192x4xf32>, i32 -> vector<192x4xf32>
    %c7 = arith.constant 7 : index
    %c0_54 = arith.constant 0 : index
    %c0_55 = arith.constant 0 : index
    %50 = vector.load %arg4[%c7, %c0_54, %c0_55] : memref<9x4x128xf32, #tpu.memory_space<vmem>>, vector<1x4x128xf32>
    %51 = vector.shape_cast %50 : vector<1x4x128xf32> to vector<4x128xf32>
    %cst_56 = arith.constant dense<0.000000e+00> : vector<192x128xf32>
    %52 = tpu.matmul %49, %51, %cst_56 {dimension_numbers = #tpu.dot_dimension_numbers<[1], [0], [0], [1], [0, 0, 1, 1], [], []>} : vector<192x4xf32>, vector<4x128xf32>, vector<192x128xf32> -> vector<192x128xf32>
    %c0_57 = arith.constant 0 : index
    %c0_58 = arith.constant 0 : index
    %53 = vector.load %arg8[%c0_57, %c0_58] : memref<192x128xf32, #tpu.memory_space<vmem>>, vector<192x128xf32>
    %54 = arith.addf %53, %52 : vector<192x128xf32>
    %c0_59 = arith.constant 0 : index
    %c0_60 = arith.constant 0 : index
    %55 = vector.load %arg8[%c0_59, %c0_60] : memref<192x128xf32, #tpu.memory_space<vmem>>, vector<192x128xf32>
    tpu.vector_store %arg8[%c0_59, %c0_60], %54 {strides = array<i32>} : memref<192x128xf32, #tpu.memory_space<vmem>>, vector<192x128xf32>,
    %c190_i32_61 = arith.constant 190 : i32
    %56 = tpu.dynamic_rotate %42 by %c190_i32_61 dim 0 : vector<192x4xf32>, i32 -> vector<192x4xf32>
    %c8 = arith.constant 8 : index
    %c0_62 = arith.constant 0 : index
    %c0_63 = arith.constant 0 : index
    %57 = vector.load %arg4[%c8, %c0_62, %c0_63] : memref<9x4x128xf32, #tpu.memory_space<vmem>>, vector<1x4x128xf32>
    %58 = vector.shape_cast %57 : vector<1x4x128xf32> to vector<4x128xf32>
    %cst_64 = arith.constant dense<0.000000e+00> : vector<192x128xf32>
    %59 = tpu.matmul %56, %58, %cst_64 {dimension_numbers = #tpu.dot_dimension_numbers<[1], [0], [0], [1], [0, 0, 1, 1], [], []>} : vector<192x4xf32>, vector<4x128xf32>, vector<192x128xf32> -> vector<192x128xf32>
    %c0_65 = arith.constant 0 : index
    %c0_66 = arith.constant 0 : index
    %60 = vector.load %arg8[%c0_65, %c0_66] : memref<192x128xf32, #tpu.memory_space<vmem>>, vector<192x128xf32>
    %61 = arith.addf %60, %59 : vector<192x128xf32>
    %c0_67 = arith.constant 0 : index
    %c0_68 = arith.constant 0 : index
    %62 = vector.load %arg8[%c0_67, %c0_68] : memref<192x128xf32, #tpu.memory_space<vmem>>, vector<192x128xf32>
    tpu.vector_store %arg8[%c0_67, %c0_68], %61 {strides = array<i32>} : memref<192x128xf32, #tpu.memory_space<vmem>>, vector<192x128xf32>,
    %c0_69 = arith.constant 0 : index
    %c0_70 = arith.constant 0 : index
    %63 = vector.load %arg8[%c0_69, %c0_70] : memref<192x128xf32, #tpu.memory_space<vmem>>, vector<192x128xf32>
    %c0_71 = arith.constant 0 : index
    %c0_72 = arith.constant 0 : index
    %64 = vector.load %arg5[%c0_71, %c0_72] : memref<1x128xf32, #tpu.memory_space<vmem>>, vector<1x128xf32>
    %65 = vector.broadcast %64 : vector<1x128xf32> to vector<192x128xf32>
    %66 = arith.mulf %63, %65 : vector<192x128xf32>
    %c0_73 = arith.constant 0 : index
    %c0_74 = arith.constant 0 : index
    %67 = vector.load %arg6[%c0_73, %c0_74] : memref<1x128xf32, #tpu.memory_space<vmem>>, vector<1x128xf32>
    %68 = vector.broadcast %67 : vector<1x128xf32> to vector<192x128xf32>
    %69 = arith.addf %66, %68 : vector<192x128xf32>
    %70 = arith.negf %69 : vector<192x128xf32>
    %71 = math.exp %70 : vector<192x128xf32>
    %cst_75 = arith.constant 1.000000e+00 : f32
    %72 = vector.broadcast %cst_75 : f32 to vector<192x128xf32>
    %73 = arith.addf %72, %71 : vector<192x128xf32>
    %74 = arith.divf %72, %73 : vector<192x128xf32>
    %75 = arith.mulf %69, %74 : vector<192x128xf32>
    %76 = vector.shape_cast %75 : vector<192x128xf32> to vector<1x8x24x128xf32>
    %c0_76 = arith.constant 0 : index
    %c0_77 = arith.constant 0 : index
    %c0_78 = arith.constant 0 : index
    %c0_79 = arith.constant 0 : index
    %77 = vector.load %arg7[%c0_76, %c0_77, %c0_78, %c0_79] : memref<1x8x24x128xf32, #tpu.memory_space<vmem>>, vector<1x8x24x128xf32>
    tpu.vector_store %arg7[%c0_76, %c0_77, %c0_78, %c0_79], %76 {strides = array<i32>} : memref<1x8x24x128xf32, #tpu.memory_space<vmem>>, vector<1x8x24x128xf32>,
    return
  }
  func.func @transform_0(%arg0: i32, %arg1: i32, %arg2: i32) -> (i32, i32, i32, i32, i32) {
    %c0_i32 = arith.constant 0 : i32
    %c0_i32_0 = arith.constant 0 : i32
    %c0_i32_1 = arith.constant 0 : i32
    %c0_i32_2 = arith.constant 0 : i32
    return %arg0, %arg1, %c0_i32, %c0_i32_0, %c0_i32_1 : i32, i32, i32, i32, i32
  }
  func.func @transform_1(%arg0: i32, %arg1: i32, %arg2: i32) -> (i32, i32, i32) {
    %c0_i32 = arith.constant 0 : i32
    %c0_i32_0 = arith.constant 0 : i32
    %c0_i32_1 = arith.constant 0 : i32
    return %c0_i32, %c0_i32_0, %arg2 : i32, i32, i32
  }
  func.func @transform_2(%arg0: i32, %arg1: i32, %arg2: i32) -> (i32, i32) {
    %c0_i32 = arith.constant 0 : i32
    %c0_i32_0 = arith.constant 0 : i32
    return %c0_i32, %arg2 : i32, i32
  }
  func.func @transform_3(%arg0: i32, %arg1: i32, %arg2: i32) -> (i32, i32) {
    %c0_i32 = arith.constant 0 : i32
    %c0_i32_0 = arith.constant 0 : i32
    return %c0_i32, %arg2 : i32, i32
  }
  func.func @transform_4(%arg0: i32, %arg1: i32, %arg2: i32) -> (i32, i32, i32, i32) {
    %c0_i32 = arith.constant 0 : i32
    %c0_i32_0 = arith.constant 0 : i32
    return %arg0, %arg1, %c0_i32, %arg2 : i32, i32, i32, i32
  }
}

</mosaic_0001>

<llo_original>
// kernel: tpu_custom_call.1
$region0: #{tpu_custom_call.1}
  #allocation0 [shape = 'u32[]', space=smem, size = 0x4, offset = 0x4, fixed_abs, tag = 'smem constant byte address 0x4 - core index']
  #allocation1 [shape = 'u32[144,128]{1,0:T(1,128)}', space=vmem, size = 0x12000, scoped, tag = 'internal scratch']
  #allocation2 [shape = 'f32[192,128]{1,0:T(8,128)}', space=vmem, size = 0x18000, scoped, tag = 'scratch operand']
  %s0 = inlined_call_operand.vmem [shape: f32[2,2,10,24,4], index: 0, kind: input, shape index: {}]
  %s1 = inlined_call_operand.vmem [shape: f32[9,4,128], index: 1, kind: input, shape index: {}]
  %s2 = inlined_call_operand.vmem [shape: f32[1,128], index: 2, kind: input, shape index: {}]
  %s3 = inlined_call_operand.vmem [shape: f32[1,128], index: 3, kind: input, shape index: {}]
  %s4 = inlined_call_operand.hbm [shape: f32[2,16,24,128], index: 4, kind: output, shape index: {}]
  %s5 = sld [smem:[#allocation0]]
  $region49: #{tpu_custom_call.1} parent=0
    _
  %s7 = ssub.s32 1, %s5
  %s8 = scalar_select 0, %s7, %s5
  $region1: #{tpu_custom_call.1} parent=0
    #allocation3 [shape = 'u8[196608]{0}', space=vmem, size = 0x30000, scoped, tag = 'output window, operand 0']
    #allocation4 [shape = 's32[2]{0}', space=sflag, size = 0x8, scoped, tag = 'scoped memory for tpu_custom_call.1']
    %9 = vsyncpa [#allocation4], 0
    %s10 = scalar_lea.sflag [#allocation4], 1
    %11 = vsyncpa %s10, 0
    loop: start=0, step=1, limit=6
    $region2: #{tpu_custom_call.1} parent=1 // loop_pre_header
      _
    $region3: #{tpu_custom_call.1} parent=1 // loop_header
      %s13 = sphi 0, %s17
      %p14 = scmp.ge.s32.totalorder %s13, 6
      %s20 = sphi 0, %s39
      %s21 = sphi 0, %s35
      %s22 = sphi 0, %s31
      %s23 = sphi 0, %s20
      %s24 = sphi 0, %s21
      %s25 = sphi 0, %s22
      %s26 = sphi 0, %s23
      %s27 = sphi 0, %s24
      %s28 = sphi 0, %s25
      %s44 = sphi 0, %s46
      %s47 = sphi 0, %s44
      %s48 = sphi 0, %s47
      %s64 = sphi 0, %s48
      %s70 = sphi 0, %s72
      %s73 = sphi 0, %s70
      %s74 = sphi 0, %s73
      %s90 = sphi 0, %s74
      %s96 = sphi 0, %s98
      %s99 = sphi 0, %s96
      %s100 = sphi 0, %s99
      %s116 = sphi 0, %s100
      %s122 = sphi 0, %s124
      %s125 = sphi 0, %s122
      %s126 = sphi 0, %s125
      %s142 = sphi 0, %s126
      %s152 = sphi 0, %s154
      %s155 = sphi 0, %s152
      %s156 = sphi 0, %s155
      %s172 = sphi 0, %s156
    $region4: #{tpu_custom_call.1} parent=1 // loop_header_branch
      %16 = sbr.rel (%p14) target = $region8
    $region5: #{tpu_custom_call.1} parent=1 // loop_body
      %s18 = ssub.s32 %s13, 1
      %s19 = ssub.s32 %s13, 2
      %s29 = sadd.s32 1, %s22
      %p30 = scmp.ge.s32.totalorder %s29, 1
      %s31 = scalar_select %p30, 0, %s29
      %s32 = sadd.s32 1, %s21
      %s33 = scalar_select %p30, %s32, %s21
      %p34 = scmp.ge.s32.totalorder %s33, 2
      %s35 = scalar_select %p34, 0, %s33
      %s36 = sadd.s32 1, %s20
      %s37 = scalar_select %p34, %s36, %s20
      %p38 = scmp.ge.s32.totalorder %s37, 2
      %s39 = scalar_select %p38, 0, %s37
      %s40 = ssub.s32 %s20, %s39
      %s41 = ssub.s32 %s21, %s35
      %s42 = sor.u32 %s40, %s41
      %p43 = scmp.eq.s32.totalorder %s42, 0
      %s45 = sadd.s32 %s44, 1
      %s46 = scalar_select %p43, %s44, %s45
      %p49 = pneg %p43
      %p50 = scmp.eq.s32.totalorder %s13, 3
      %p51 = por %p49, %p50
      %p52 = scmp.ne.s32.totalorder %s44, %s47
      %p53 = scmp.eq.s32.totalorder %s13, 0
      %p54 = por %p52, %p53
      %p55 = scmp.ne.s32.totalorder %s44, %s47
      %p56 = scmp.eq.s32.totalorder %s18, 3
      %p57 = por %p55, %p56
      %p58 = scmp.ne.s32.totalorder %s47, %s48
      %p59 = scmp.eq.s32.totalorder %s18, 0
      %p60 = por %p58, %p59
      %p61 = scmp.ne.s32.totalorder %s47, %s48
      %p62 = scmp.eq.s32.totalorder %s19, 3
      %p63 = por %p61, %p62
      %p65 = scmp.ne.s32.totalorder %s48, %s64
      %p66 = scmp.eq.s32.totalorder %s19, 0
      %p67 = por %p65, %p66
      %s68 = ssub.s32 %s22, %s31
      %p69 = scmp.eq.s32.totalorder %s68, 0
      %s71 = sadd.s32 %s70, 1
      %s72 = scalar_select %p69, %s70, %s71
      %p75 = pneg %p69
      %p76 = scmp.eq.s32.totalorder %s13, 3
      %p77 = por %p75, %p76
      %p78 = scmp.ne.s32.totalorder %s70, %s73
      %p79 = scmp.eq.s32.totalorder %s13, 0
      %p80 = por %p78, %p79
      %p81 = scmp.ne.s32.totalorder %s70, %s73
      %p82 = scmp.eq.s32.totalorder %s18, 3
      %p83 = por %p81, %p82
      %p84 = scmp.ne.s32.totalorder %s73, %s74
      %p85 = scmp.eq.s32.totalorder %s18, 0
      %p86 = por %p84, %p85
      %p87 = scmp.ne.s32.totalorder %s73, %s74
      %p88 = scmp.eq.s32.totalorder %s19, 3
      %p89 = por %p87, %p88
      %p91 = scmp.ne.s32.totalorder %s74, %s90
      %p92 = scmp.eq.s32.totalorder %s19, 0
      %p93 = por %p91, %p92
      %s94 = ssub.s32 %s22, %s31
      %p95 = scmp.eq.s32.totalorder %s94, 0
      %s97 = sadd.s32 %s96, 1
      %s98 = scalar_select %p95, %s96, %s97
      %p101 = pneg %p95
      %p102 = scmp.eq.s32.totalorder %s13, 3
      %p103 = por %p101, %p102
      %p104 = scmp.ne.s32.totalorder %s96, %s99
      %p105 = scmp.eq.s32.totalorder %s13, 0
      %p106 = por %p104, %p105
      %p107 = scmp.ne.s32.totalorder %s96, %s99
      %p108 = scmp.eq.s32.totalorder %s18, 3
      %p109 = por %p107, %p108
      %p110 = scmp.ne.s32.totalorder %s99, %s100
      %p111 = scmp.eq.s32.totalorder %s18, 0
      %p112 = por %p110, %p111
      %p113 = scmp.ne.s32.totalorder %s99, %s100
      %p114 = scmp.eq.s32.totalorder %s19, 3
      %p115 = por %p113, %p114
      %p117 = scmp.ne.s32.totalorder %s100, %s116
      %p118 = scmp.eq.s32.totalorder %s19, 0
      %p119 = por %p117, %p118
      %s120 = ssub.s32 %s22, %s31
      %p121 = scmp.eq.s32.totalorder %s120, 0
      %s123 = sadd.s32 %s122, 1
      %s124 = scalar_select %p121, %s122, %s123
      %p127 = pneg %p121
      %p128 = scmp.eq.s32.totalorder %s13, 3
      %p129 = por %p127, %p128
      %p130 = scmp.ne.s32.totalorder %s122, %s125
      %p131 = scmp.eq.s32.totalorder %s13, 0
      %p132 = por %p130, %p131
      %p133 = scmp.ne.s32.totalorder %s122, %s125
      %p134 = scmp.eq.s32.totalorder %s18, 3
      %p135 = por %p133, %p134
      %p136 = scmp.ne.s32.totalorder %s125, %s126
      %p137 = scmp.eq.s32.totalorder %s18, 0
      %p138 = por %p136, %p137
      %p139 = scmp.ne.s32.totalorder %s125, %s126
      %p140 = scmp.eq.s32.totalorder %s19, 3
      %p141 = por %p139, %p140
      %p143 = scmp.ne.s32.totalorder %s126, %s142
      %p144 = scmp.eq.s32.totalorder %s19, 0
      %p145 = por %p143, %p144
      %s146 = ssub.s32 %s20, %s39
      %s147 = ssub.s32 %s21, %s35
      %s148 = sor.u32 %s146, %s147
      %s149 = ssub.s32 %s22, %s31
      %s150 = sor.u32 %s148, %s149
      %p151 = scmp.eq.s32.totalorder %s150, 0
      %s153 = sadd.s32 %s152, 1
      %s154 = scalar_select %p151, %s152, %s153
      %p157 = pneg %p151
      %p158 = scmp.eq.s32.totalorder %s13, 3
      %p159 = por %p157, %p158
      %p160 = scmp.ne.s32.totalorder %s152, %s155
      %p161 = scmp.eq.s32.totalorder %s13, 0
      %p162 = por %p160, %p161
      %p163 = scmp.ne.s32.totalorder %s152, %s155
      %p164 = scmp.eq.s32.totalorder %s18, 3
      %p165 = por %p163, %p164
      %p166 = scmp.ne.s32.totalorder %s155, %s156
      %p167 = scmp.eq.s32.totalorder %s18, 0
      %p168 = por %p166, %p167
      %p169 = scmp.ne.s32.totalorder %s155, %s156
      %p170 = scmp.eq.s32.totalorder %s19, 3
      %p171 = por %p169, %p170
      %p173 = scmp.ne.s32.totalorder %s156, %s172
      %p174 = scmp.eq.s32.totalorder %s19, 0
      %p175 = por %p173, %p174
      %p176 = scmp.le.s32.totalorder 1, %s13
      %p177 = scmp.lt.s32.totalorder %s13, 5
      %p178 = pnand %p176, %p177
      %p179 = pneg %p178
      // Predicated region
      $region9: #{tpu_custom_call.1} parent=5 // pred_check
        _
      $region10: #{tpu_custom_call.1} parent=5 // pred_check_branch
        %181 = sbr.rel (%p178) target = $region12
      $region11: #{tpu_custom_call.1} parent=5 // pred_region
        %s182 = ssub.s32 %s13, 1
        // Predicated region
        $region13: #{tpu_custom_call.1} parent=11 // pred_check
          %p183 = pneg %p86
        $region14: #{tpu_custom_call.1} parent=11 // pred_check_branch
          %185 = sbr.rel (%p183) target = $region16
        $region15: #{tpu_custom_call.1} parent=11 // pred_region
          %p186 = scmp.lt.s32.totalorder %s25, 0
          %s187 = scalar_select %p186, %s25, 0
          %s188 = smul.addr %s187, 4
          %s189 = scalar_lea.vmem %s1, %s188
        $region16: #{tpu_custom_call.1} parent=11 // pred_fallthru
          _
        // Predicated region
        $region17: #{tpu_custom_call.1} parent=11 // pred_check
          %p190 = pneg %p112
        $region18: #{tpu_custom_call.1} parent=11 // pred_check_branch
          %192 = sbr.rel (%p190) target = $region20
        $region19: #{tpu_custom_call.1} parent=11 // pred_region
          %p193 = scmp.lt.s32.totalorder %s25, 0
          %s194 = scalar_select %p193, %s25, 0
          %s195 = scalar_lea.vmem %s2, %s194
        $region20: #{tpu_custom_call.1} parent=11 // pred_fallthru
          _
        // Predicated region
        $region21: #{tpu_custom_call.1} parent=11 // pred_check
          %p196 = pneg %p138
        $region22: #{tpu_custom_call.1} parent=11 // pred_check_branch
          %198 = sbr.rel (%p196) target = $region24
        $region23: #{tpu_custom_call.1} parent=11 // pred_region
          %p199 = scmp.lt.s32.totalorder %s25, 0
          %s200 = scalar_select %p199, %s25, 0
          %s201 = scalar_lea.vmem %s3, %s200
        $region24: #{tpu_custom_call.1} parent=11 // pred_fallthru
          _
      $region12: #{tpu_custom_call.1} parent=5 // pred_fallthru
        _
      %p202 = scmp.lt.s32.totalorder %s13, 4
      // Predicated region
      $region25: #{tpu_custom_call.1} parent=5 // pred_check
        %p203 = pneg %p202
      $region26: #{tpu_custom_call.1} parent=5 // pred_check_branch
        %205 = sbr.rel (%p203) target = $region28
      $region27: #{tpu_custom_call.1} parent=5 // pred_region
        // Predicated region
        $region29: #{tpu_custom_call.1} parent=27 // pred_check
          %p206 = pneg %p54
        $region30: #{tpu_custom_call.1} parent=27 // pred_check_branch
          %208 = sbr.rel (%p206) target = $region32
        $region31: #{tpu_custom_call.1} parent=27 // pred_region
          %p209 = scmp.lt.s32.totalorder %s20, 1
          %s210 = scalar_select %p209, %s20, 1
          %p211 = scmp.lt.s32.totalorder %s21, 1
          %s212 = scalar_select %p211, %s21, 1
          %s213 = smul.addr %s212, 30
          %s214 = smul.addr %s210, 60
          %s215 = sadd.s32 %s213, %s214
          %s216 = smul.addr %s215, 8
          %s217 = scalar_lea.vmem %s0, %s216
        $region32: #{tpu_custom_call.1} parent=27 // pred_fallthru
          _
      $region28: #{tpu_custom_call.1} parent=5 // pred_fallthru
        _
      %p218 = scmp.le.s32.totalorder 1, %s13
      %p219 = scmp.lt.s32.totalorder %s13, 5
      %p220 = pnand %p218, %p219
      %p221 = pneg %p220
      // Predicated region
      $region33: #{tpu_custom_call.1} parent=5 // pred_check
        _
      $region34: #{tpu_custom_call.1} parent=5 // pred_check_branch
        %223 = sbr.rel (%p220) target = $region36
      $region35: #{tpu_custom_call.1} parent=5 // pred_region
        %s224 = ssub.s32 %s13, 1
        %p225 = scmp.lt.s32.totalorder %s23, 1
        %s226 = scalar_select %p225, %s23, 1
        %p227 = scmp.lt.s32.totalorder %s24, 1
        %s228 = scalar_select %p227, %s24, 1
        %s229 = smul.addr %s228, 30
        %s230 = smul.addr %s226, 60
        %s231 = sadd.s32 %s229, %s230
        %s232 = smul.addr %s231, 8
        %s233 = scalar_lea.vmem %s0, %s232
        %p234 = pneg %p60
        %p235 = pneg %p57
        %p236 = scmp.lt.s32.totalorder %s25, 0
        %s237 = scalar_select %p236, %s25, 0
        %s238 = smul.addr %s237, 4
        %s239 = scalar_lea.vmem %s1, %s238
        %p240 = pneg %p86
        %p241 = pneg %p83
        %p242 = scmp.lt.s32.totalorder %s25, 0
        %s243 = scalar_select %p242, %s25, 0
        %s244 = scalar_lea.vmem %s2, %s243
        %p245 = pneg %p112
        %p246 = pneg %p109
        %p247 = scmp.lt.s32.totalorder %s25, 0
        %s248 = scalar_select %p247, %s25, 0
        %s249 = scalar_lea.vmem %s3, %s248
        %p250 = pneg %p138
        %p251 = pneg %p135
        %p252 = pneg %p168
        %p253 = pneg %p165
        %s254 = sand.u32 %s155, 1
        %s255 = scalar_lea.sflag [#allocation4], %s254
        %s256 = sand.u32 %s155, 1
        %s257 = smul.addr %s256, 192
        %s258 = scalar_lea.vmem [#allocation3], %s257
        %p259 = scmp.lt.s32.totalorder %s23, 1
        %s260 = scalar_select %p259, %s23, 1
        %p261 = scmp.lt.s32.totalorder %s24, 1
        %s262 = scalar_select %p261, %s24, 1
        %s263 = smul.addr %s262, 30
        %s264 = smul.addr %s260, 60
        %s265 = sadd.s32 %s263, %s264
        %s266 = smul.addr %s265, 8
        %s267 = scalar_lea.vmem %s0, %s266
        %p268 = scmp.lt.s32.totalorder %s25, 0
        %s269 = scalar_select %p268, %s25, 0
        %s270 = smul.addr %s269, 4
        %s271 = scalar_lea.vmem %s1, %s270
        %p272 = scmp.lt.s32.totalorder %s25, 0
        %s273 = scalar_select %p272, %s25, 0
        %s274 = scalar_lea.vmem %s2, %s273
        %p275 = scmp.lt.s32.totalorder %s25, 0
        %s276 = scalar_select %p275, %s25, 0
        %s277 = scalar_lea.vmem %s3, %s276
        %s278 = smul.u32 8, %s24
        %v279 = vld [vmem:[%s267] sm:$0xff]
        %v280 = vld [vmem:[%s267 + $0x8] sm:$0xff]
        %v281 = vld [vmem:[%s267 + $0x10] sm:$0xff]
        %v282 = vld [vmem:[%s267 + $0x18] sm:$0xff]
        %v283 = vld [vmem:[%s267 + $0x20] sm:$0xff]
        %v284 = vld [vmem:[%s267 + $0x28] sm:$0xff]
        %v285 = vld [vmem:[%s267 + $0x30] sm:$0xff]
        %v286 = vld [vmem:[%s267 + $0x38] sm:$0xff]
        %v287 = vld [vmem:[%s267 + $0x40] sm:$0xff]
        %v288 = vld [vmem:[%s267 + $0x48] sm:$0xff]
        %v289 = vld [vmem:[%s267 + $0x50] sm:$0xff]
        %v290 = vld [vmem:[%s267 + $0x58] sm:$0xff]
        %v291 = vld [vmem:[%s267 + $0x60] sm:$0xff]
        %v292 = vld [vmem:[%s267 + $0x68] sm:$0xff]
        %v293 = vld [vmem:[%s267 + $0x70] sm:$0xff]
        %v294 = vld [vmem:[%s267 + $0x78] sm:$0xff]
        %v295 = vld [vmem:[%s267 + $0x80] sm:$0xff]
        %v296 = vld [vmem:[%s267 + $0x88] sm:$0xff]
        %v297 = vld [vmem:[%s267 + $0x90] sm:$0xff]
        %v298 = vld [vmem:[%s267 + $0x98] sm:$0xff]
        %v299 = vld [vmem:[%s267 + $0xa0] sm:$0xff]
        %v300 = vld [vmem:[%s267 + $0xa8] sm:$0xff]
        %v301 = vld [vmem:[%s267 + $0xb0] sm:$0xff]
        %v302 = vld [vmem:[%s267 + $0xb8] sm:$0xff]
        %v303 = vld [vmem:[%s267 + $0xc0] sm:$0xff]
        %v304 = vld [vmem:[%s267 + $0xc8] sm:$0xff]
        %v305 = vld [vmem:[%s267 + $0xd0] sm:$0xff]
        %v306 = vld [vmem:[%s267 + $0xd8] sm:$0xff]
        %v307 = vld [vmem:[%s267 + $0xe0] sm:$0xff]
        %v308 = vld [vmem:[%s267 + $0xe8] sm:$0xff]
        %v309 = vld [vmem:[%s271] sm:$0xf]
        %vm310 = vcmask 31744
        %v312 = vsel %vm310, %v279, 0
        %v315 = vsel %vm310, %v280, 0
        %v318 = vsel %vm310, %v281, 0
        %v321 = vsel %vm310, %v282, 0
        %v324 = vsel %vm310, %v283, 0
        %v327 = vsel %vm310, %v284, 0
        %v330 = vsel %vm310, %v285, 0
        %v333 = vsel %vm310, %v286, 0
        %v336 = vsel %vm310, %v287, 0
        %v339 = vsel %vm310, %v288, 0
        %v342 = vsel %vm310, %v289, 0
        %v345 = vsel %vm310, %v290, 0
        %v348 = vsel %vm310, %v291, 0
        %v351 = vsel %vm310, %v292, 0
        %v354 = vsel %vm310, %v293, 0
        %v357 = vsel %vm310, %v294, 0
        %v360 = vsel %vm310, %v295, 0
        %v363 = vsel %vm310, %v296, 0
        %v366 = vsel %vm310, %v297, 0
        %v369 = vsel %vm310, %v298, 0
        %v372 = vsel %vm310, %v299, 0
        %v375 = vsel %vm310, %v300, 0
        %v378 = vsel %vm310, %v301, 0
        %v381 = vsel %vm310, %v302, 0
        %vm383 = vcmask 1043456
        %v385 = vsel %vm383, %v309, 0
        %387 = vmatprep.subr.mxu0 0.0
        %388 = vmatpush1.msra.mxu0 %v385
        %389 = vmatprep.subr.mxu0 0.0
        %390 = vmatpush1.msra.mxu0 0.0
        %391 = vmatprep.subr.mxu0 0.0
        %392 = vmatpush1.msra.mxu0 0.0
        %393 = vmatprep.subr.mxu0 0.0
        %394 = vmatpush1.msra.mxu0 0.0
        %395 = vmatprep.subr.mxu0 0.0
        %396 = vmatpush1.msra.mxu0 0.0
        %397 = vmatprep.subr.mxu0 0.0
        %398 = vmatpush1.msra.mxu0 0.0
        %399 = vmatprep.subr.mxu0 0.0
        %400 = vmatpush1.msra.mxu0 0.0
        %401 = vmatprep.subr.mxu0 0.0
        %402 = vmatpush1.msra.mxu0 0.0
        %403 = vmatprep.subr.mxu0 0.0
        %404 = vmatpush1.msra.mxu0 0.0
        %405 = vmatprep.subr.mxu0 0.0
        %406 = vmatpush1.msra.mxu0 0.0
        %407 = vmatprep.subr.mxu0 0.0
        %408 = vmatpush1.msra.mxu0 0.0
        %409 = vmatprep.subr.mxu0 0.0
        %410 = vmatpush1.msra.mxu0 0.0
        %411 = vmatprep.subr.mxu0 0.0
        %412 = vmatpush1.msra.mxu0 0.0
        %413 = vmatprep.subr.mxu0 0.0
        %414 = vmatpush1.msra.mxu0 0.0
        %415 = vmatprep.subr.mxu0 0.0
        %416 = vmatpush1.msra.mxu0 0.0
        %417 = vmatprep.subr.mxu0 0.0
        %418 = vmatpush1.msra.mxu0 0.0
        %419 = vmatprep.subr.mxu0 0.0
        %420 = vmatpush1.msra.mxu0 0.0
        %421 = vmatprep.subr.mxu0 0.0
        %422 = vmatpush1.msra.mxu0 0.0
        %423 = vmatprep.subr.mxu0 0.0
        %424 = vmatpush1.msra.mxu0 0.0
        %425 = vmatprep.subr.mxu0 0.0
        %426 = vmatpush1.msra.mxu0 0.0
        %427 = vmatprep.subr.mxu0 0.0
        %428 = vmatpush1.msra.mxu0 0.0
        %429 = vmatprep.subr.mxu0 0.0
        %430 = vmatpush1.msra.mxu0 0.0
        %431 = vmatprep.subr.mxu0 0.0
        %432 = vmatpush1.msra.mxu0 0.0
        %433 = vmatprep.subr.mxu0 0.0
        %434 = vmatpush1.msra.mxu0 0.0
        %435 = vmatprep.subr.mxu0 0.0
        %436 = vmatpush1.msra.mxu0 0.0
        %437 = vmatprep.subr.mxu0 0.0
        %438 = vmatpush1.msra.mxu0 0.0
        %439 = vmatprep.subr.mxu0 0.0
        %440 = vmatpush1.msra.mxu0 0.0
        %441 = vmatprep.subr.mxu0 0.0
        %442 = vmatpush1.msra.mxu0 0.0
        %443 = vmatprep.subr.mxu0 0.0
        %444 = vmatpush1.msra.mxu0 0.0
        %445 = vmatprep.subr.mxu0 0.0
        %446 = vmatpush1.msra.mxu0 0.0
        %447 = vmatprep.subr.mxu0 0.0
        %448 = vmatpush1.msra.mxu0 0.0
        %449 = vmatprep.subr.mxu0 0.0
        %450 = vmatpush1.msra.mxu0 0.0
        %451 = vmatprep.mubr.f32.mxu0 0.0
        %452 = vmatmul.mubr.f32.gmra.mrb[0].mxu0 %v312
        %v453 = vpop.f32.mrb[0].mxu0
        %v454 = vadd.f32 0.0, %v453
        %v455 = vpop.f32.mrb[0].mxu0
        %456 = vmatprep.mubr.f32.mxu0 0.0
        %457 = vmatmul.mubr.f32.gmra.mrb[0].mxu0 %v315
        %v458 = vpop.f32.mrb[0].mxu0
        %v459 = vadd.f32 0.0, %v458
        %v460 = vpop.f32.mrb[0].mxu0
        %461 = vmatprep.mubr.f32.mxu0 0.0
        %462 = vmatmul.mubr.f32.gmra.mrb[0].mxu0 %v318
        %v463 = vpop.f32.mrb[0].mxu0
        %v464 = vadd.f32 0.0, %v463
        %v465 = vpop.f32.mrb[0].mxu0
        %466 = vmatprep.mubr.f32.mxu0 0.0
        %467 = vmatmul.mubr.f32.gmra.mrb[0].mxu0 %v321
        %v468 = vpop.f32.mrb[0].mxu0
        %v469 = vadd.f32 0.0, %v468
        %v470 = vpop.f32.mrb[0].mxu0
        %471 = vmatprep.mubr.f32.mxu0 0.0
        %472 = vmatmul.mubr.f32.gmra.mrb[0].mxu0 %v324
        %v473 = vpop.f32.mrb[0].mxu0
        %v474 = vadd.f32 0.0, %v473
        %v475 = vpop.f32.mrb[0].mxu0
        %476 = vmatprep.mubr.f32.mxu0 0.0
        %477 = vmatmul.mubr.f32.gmra.mrb[0].mxu0 %v327
        %v478 = vpop.f32.mrb[0].mxu0
        %v479 = vadd.f32 0.0, %v478
        %v480 = vpop.f32.mrb[0].mxu0
        %481 = vmatprep.mubr.f32.mxu0 0.0
        %482 = vmatmul.mubr.f32.gmra.mrb[0].mxu0 %v330
        %v483 = vpop.f32.mrb[0].mxu0
        %v484 = vadd.f32 0.0, %v483
        %v485 = vpop.f32.mrb[0].mxu0
        %486 = vmatprep.mubr.f32.mxu0 0.0
        %487 = vmatmul.mubr.f32.gmra.mrb[0].mxu0 %v333
        %v488 = vpop.f32.mrb[0].mxu0
        %v489 = vadd.f32 0.0, %v488
        %v490 = vpop.f32.mrb[0].mxu0
        %491 = vmatprep.mubr.f32.mxu0 0.0
        %492 = vmatmul.mubr.f32.gmra.mrb[0].mxu0 %v336
        %v493 = vpop.f32.mrb[0].mxu0
        %v494 = vadd.f32 0.0, %v493
        %v495 = vpop.f32.mrb[0].mxu0
        %496 = vmatprep.mubr.f32.mxu0 0.0
        %497 = vmatmul.mubr.f32.gmra.mrb[0].mxu0 %v339
        %v498 = vpop.f32.mrb[0].mxu0
        %v499 = vadd.f32 0.0, %v498
        %v500 = vpop.f32.mrb[0].mxu0
        %501 = vmatprep.mubr.f32.mxu0 0.0
        %502 = vmatmul.mubr.f32.gmra.mrb[0].mxu0 %v342
        %v503 = vpop.f32.mrb[0].mxu0
        %v504 = vadd.f32 0.0, %v503
        %v505 = vpop.f32.mrb[0].mxu0
        %506 = vmatprep.mubr.f32.mxu0 0.0
        %507 = vmatmul.mubr.f32.gmra.mrb[0].mxu0 %v345
        %v508 = vpop.f32.mrb[0].mxu0
        %v509 = vadd.f32 0.0, %v508
        %v510 = vpop.f32.mrb[0].mxu0
        %511 = vmatprep.mubr.f32.mxu0 0.0
        %512 = vmatmul.mubr.f32.gmra.mrb[0].mxu0 %v348
        %v513 = vpop.f32.mrb[0].mxu0
        %v514 = vadd.f32 0.0, %v513
        %v515 = vpop.f32.mrb[0].mxu0
        %516 = vmatprep.mubr.f32.mxu0 0.0
        %517 = vmatmul.mubr.f32.gmra.mrb[0].mxu0 %v351
        %v518 = vpop.f32.mrb[0].mxu0
        %v519 = vadd.f32 0.0, %v518
        %v520 = vpop.f32.mrb[0].mxu0
        %521 = vmatprep.mubr.f32.mxu0 0.0
        %522 = vmatmul.mubr.f32.gmra.mrb[0].mxu0 %v354
        %v523 = vpop.f32.mrb[0].mxu0
        %v524 = vadd.f32 0.0, %v523
        %v525 = vpop.f32.mrb[0].mxu0
        %526 = vmatprep.mubr.f32.mxu0 0.0
        %527 = vmatmul.mubr.f32.gmra.mrb[0].mxu0 %v357
        %v528 = vpop.f32.mrb[0].mxu0
        %v529 = vadd.f32 0.0, %v528
        %v530 = vpop.f32.mrb[0].mxu0
        %531 = vmatprep.mubr.f32.mxu0 0.0
        %532 = vmatmul.mubr.f32.gmra.mrb[0].mxu0 %v360
        %v533 = vpop.f32.mrb[0].mxu0
        %v534 = vadd.f32 0.0, %v533
        %v535 = vpop.f32.mrb[0].mxu0
        %536 = vmatprep.mubr.f32.mxu0 0.0
        %537 = vmatmul.mubr.f32.gmra.mrb[0].mxu0 %v363
        %v538 = vpop.f32.mrb[0].mxu0
        %v539 = vadd.f32 0.0, %v538
        %v540 = vpop.f32.mrb[0].mxu0
        %541 = vmatprep.mubr.f32.mxu0 0.0
        %542 = vmatmul.mubr.f32.gmra.mrb[0].mxu0 %v366
        %v543 = vpop.f32.mrb[0].mxu0
        %v544 = vadd.f32 0.0, %v543
        %v545 = vpop.f32.mrb[0].mxu0
        %546 = vmatprep.mubr.f32.mxu0 0.0
        %547 = vmatmul.mubr.f32.gmra.mrb[0].mxu0 %v369
        %v548 = vpop.f32.mrb[0].mxu0
        %v549 = vadd.f32 0.0, %v548
        %v550 = vpop.f32.mrb[0].mxu0
        %551 = vmatprep.mubr.f32.mxu0 0.0
        %552 = vmatmul.mubr.f32.gmra.mrb[0].mxu0 %v372
        %v553 = vpop.f32.mrb[0].mxu0
        %v554 = vadd.f32 0.0, %v553
        %v555 = vpop.f32.mrb[0].mxu0
        %556 = vmatprep.mubr.f32.mxu0 0.0
        %557 = vmatmul.mubr.f32.gmra.mrb[0].mxu0 %v375
        %v558 = vpop.f32.mrb[0].mxu0
        %v559 = vadd.f32 0.0, %v558
        %v560 = vpop.f32.mrb[0].mxu0
        %561 = vmatprep.mubr.f32.mxu0 0.0
        %562 = vmatmul.mubr.f32.gmra.mrb[0].mxu0 %v378
        %v563 = vpop.f32.mrb[0].mxu0
        %v564 = vadd.f32 0.0, %v563
        %v565 = vpop.f32.mrb[0].mxu0
        %566 = vmatprep.mubr.f32.mxu0 0.0
        %567 = vmatmul.mubr.f32.gmra.mrb[0].mxu0 %v381
        %v568 = vpop.f32.mrb[0].mxu0
        %v569 = vadd.f32 0.0, %v568
        %v570 = vpop.f32.mrb[0].mxu0
        %571 = vdwg.mxu0
        %572 = vst [vmem:[#allocation2] sm:$0xff] %v454
        %573 = vst [vmem:[#allocation2 + $0x8] sm:$0xff] %v459
        %574 = vst [vmem:[#allocation2 + $0x10] sm:$0xff] %v464
        %575 = vst [vmem:[#allocation2 + $0x18] sm:$0xff] %v469
        %576 = vst [vmem:[#allocation2 + $0x20] sm:$0xff] %v474
        %577 = vst [vmem:[#allocation2 + $0x28] sm:$0xff] %v479
        %578 = vst [vmem:[#allocation2 + $0x30] sm:$0xff] %v484
        %579 = vst [vmem:[#allocation2 + $0x38] sm:$0xff] %v489
        %580 = vst [vmem:[#allocation2 + $0x40] sm:$0xff] %v494
        %581 = vst [vmem:[#allocation2 + $0x48] sm:$0xff] %v499
        %582 = vst [vmem:[#allocation2 + $0x50] sm:$0xff] %v504
        %583 = vst [vmem:[#allocation2 + $0x58] sm:$0xff] %v509
        %584 = vst [vmem:[#allocation2 + $0x60] sm:$0xff] %v514
        %585 = vst [vmem:[#allocation2 + $0x68] sm:$0xff] %v519
        %586 = vst [vmem:[#allocation2 + $0x70] sm:$0xff] %v524
        %587 = vst [vmem:[#allocation2 + $0x78] sm:$0xff] %v529
        %588 = vst [vmem:[#allocation2 + $0x80] sm:$0xff] %v534
        %589 = vst [vmem:[#allocation2 + $0x88] sm:$0xff] %v539
        %590 = vst [vmem:[#allocation2 + $0x90] sm:$0xff] %v544
        %591 = vst [vmem:[#allocation2 + $0x98] sm:$0xff] %v549
        %592 = vst [vmem:[#allocation2 + $0xa0] sm:$0xff] %v554
        %593 = vst [vmem:[#allocation2 + $0xa8] sm:$0xff] %v559
        %594 = vst [vmem:[#allocation2 + $0xb0] sm:$0xff] %v564
        %595 = vst [vmem:[#allocation2 + $0xb8] sm:$0xff] %v569
        %v596 = vrot.slane %v279, 1
        %v597 = vrot.slane %v280, 1
        %v598 = vrot.slane %v281, 1
        %v599 = vrot.slane %v282, 1
        %v600 = vrot.slane %v283, 1
        %v601 = vrot.slane %v284, 1
        %v602 = vrot.slane %v285, 1
        %v603 = vrot.slane %v286, 1
        %v604 = vrot.slane %v287, 1
        %v605 = vrot.slane %v288, 1
        %v606 = vrot.slane %v289, 1
        %v607 = vrot.slane %v290, 1
        %v608 = vrot.slane %v291, 1
        %v609 = vrot.slane %v292, 1
        %v610 = vrot.slane %v293, 1
        %v611 = vrot.slane %v294, 1
        %v612 = vrot.slane %v295, 1
        %v613 = vrot.slane %v296, 1
        %v614 = vrot.slane %v297, 1
        %v615 = vrot.slane %v298, 1
        %v616 = vrot.slane %v299, 1
        %v617 = vrot.slane %v300, 1
        %v618 = vrot.slane %v301, 1
        %v619 = vrot.slane %v302, 1
        %v620 = vlaneseq
        %v621 = vshrl.u32 %v620, 7
        %vm622 = vcmp.lt.s32.totalorder %v621, 7
        %v623 = vsel %vm622, %v618, %v619
        %v624 = vsel %vm622, %v617, %v618
        %v625 = vsel %vm622, %v616, %v617
        %v626 = vsel %vm622, %v615, %v616
        %v627 = vsel %vm622, %v614, %v615
        %v628 = vsel %vm622, %v613, %v614
        %v629 = vsel %vm622, %v612, %v613
        %v630 = vsel %vm622, %v611, %v612
        %v631 = vsel %vm622, %v610, %v611
        %v632 = vsel %vm622, %v609, %v610
        %v633 = vsel %vm622, %v608, %v609
        %v634 = vsel %vm622, %v607, %v608
        %v635 = vsel %vm622, %v606, %v607
        %v636 = vsel %vm622, %v605, %v606
        %v637 = vsel %vm622, %v604, %v605
        %v638 = vsel %vm622, %v603, %v604
        %v639 = vsel %vm622, %v602, %v603
        %v640 = vsel %vm622, %v601, %v602
        %v641 = vsel %vm622, %v600, %v601
        %v642 = vsel %vm622, %v599, %v600
        %v643 = vsel %vm622, %v598, %v599
        %v644 = vsel %vm622, %v597, %v598
        %v645 = vsel %vm622, %v596, %v597
        %v646 = vsel %vm622, %v619, %v596
        %s647 = scalar_lea.vmem %s271, 4
        %v648 = vld [vmem:[%s647] sm:$0xf]
        %v650 = vsel %vm310, %v645, 0
        %v653 = vsel %vm310, %v644, 0
        %v656 = vsel %vm310, %v643, 0
        %v659 = vsel %vm310, %v642, 0
        %v662 = vsel %vm310, %v641, 0
        %v665 = vsel %vm310, %v640, 0
        %v668 = vsel %vm310, %v639, 0
        %v671 = vsel %vm310, %v638, 0
        %v674 = vsel %vm310, %v637, 0
        %v677 = vsel %vm310, %v636, 0
        %v680 = vsel %vm310, %v635, 0
        %v683 = vsel %vm310, %v634, 0
        %v686 = vsel %vm310, %v633, 0
        %v689 = vsel %vm310, %v632, 0
        %v692 = vsel %vm310, %v631, 0
        %v695 = vsel %vm310, %v630, 0
        %v698 = vsel %vm310, %v629, 0
        %v701 = vsel %vm310, %v628, 0
        %v704 = vsel %vm310, %v627, 0
        %v707 = vsel %vm310, %v626, 0
        %v710 = vsel %vm310, %v625, 0
        %v713 = vsel %vm310, %v624, 0
        %v716 = vsel %vm310, %v623, 0
        %v719 = vsel %vm310, %v646, 0
        %v722 = vsel %vm383, %v648, 0
        %724 = vmatprep.subr.mxu0 0.0
        %725 = vmatpush1.msra.mxu0 %v722
        %726 = vmatprep.subr.mxu0 0.0
        %727 = vmatpush1.msra.mxu0 0.0
        %728 = vmatprep.subr.mxu0 0.0
        %729 = vmatpush1.msra.mxu0 0.0
        %730 = vmatprep.subr.mxu0 0.0
        %731 = vmatpush1.msra.mxu0 0.0
        %732 = vmatprep.subr.mxu0 0.0
        %733 = vmatpush1.msra.mxu0 0.0
        %734 = vmatprep.subr.mxu0 0.0
        %735 = vmatpush1.msra.mxu0 0.0
        %736 = vmatprep.subr.mxu0 0.0
        %737 = vmatpush1.msra.mxu0 0.0
        %738 = vmatprep.subr.mxu0 0.0
        %739 = vmatpush1.msra.mxu0 0.0
        %740 = vmatprep.subr.mxu0 0.0
        %741 = vmatpush1.msra.mxu0 0.0
        %742 = vmatprep.subr.mxu0 0.0
        %743 = vmatpush1.msra.mxu0 0.0
        %744 = vmatprep.subr.mxu0 0.0
        %745 = vmatpush1.msra.mxu0 0.0
        %746 = vmatprep.subr.mxu0 0.0
        %747 = vmatpush1.msra.mxu0 0.0
        %748 = vmatprep.subr.mxu0 0.0
        %749 = vmatpush1.msra.mxu0 0.0
        %750 = vmatprep.subr.mxu0 0.0
        %751 = vmatpush1.msra.mxu0 0.0
        %752 = vmatprep.subr.mxu0 0.0
        %753 = vmatpush1.msra.mxu0 0.0
        %754 = vmatprep.subr.mxu0 0.0
        %755 = vmatpush1.msra.mxu0 0.0
        %756 = vmatprep.subr.mxu0 0.0
        %757 = vmatpush1.msra.mxu0 0.0
        %758 = vmatprep.subr.mxu0 0.0
        %759 = vmatpush1.msra.mxu0 0.0
        %760 = vmatprep.subr.mxu0 0.0
        %761 = vmatpush1.msra.mxu0 0.0
        %762 = vmatprep.subr.mxu0 0.0
        %763 = vmatpush1.msra.mxu0 0.0
        %764 = vmatprep.subr.mxu0 0.0
        %765 = vmatpush1.msra.mxu0 0.0
        %766 = vmatprep.subr.mxu0 0.0
        %767 = vmatpush1.msra.mxu0 0.0
        %768 = vmatprep.subr.mxu0 0.0
        %769 = vmatpush1.msra.mxu0 0.0
        %770 = vmatprep.subr.mxu0 0.0
        %771 = vmatpush1.msra.mxu0 0.0
        %772 = vmatprep.subr.mxu0 0.0
        %773 = vmatpush1.msra.mxu0 0.0
        %774 = vmatprep.subr.mxu0 0.0
        %775 = vmatpush1.msra.mxu0 0.0
        %776 = vmatprep.subr.mxu0 0.0
        %777 = vmatpush1.msra.mxu0 0.0
        %778 = vmatprep.subr.mxu0 0.0
        %779 = vmatpush1.msra.mxu0 0.0
        %780 = vmatprep.subr.mxu0 0.0
        %781 = vmatpush1.msra.mxu0 0.0
        %782 = vmatprep.subr.mxu0 0.0
        %783 = vmatpush1.msra.mxu0 0.0
        %784 = vmatprep.subr.mxu0 0.0
        %785 = vmatpush1.msra.mxu0 0.0
        %786 = vmatprep.subr.mxu0 0.0
        %787 = vmatpush1.msra.mxu0 0.0
        %788 = vmatprep.mubr.f32.mxu0 0.0
        %789 = vmatmul.mubr.f32.gmra.mrb[0].mxu0 %v650
        %v790 = vpop.f32.mrb[0].mxu0
        %v791 = vadd.f32 0.0, %v790
        %v792 = vpop.f32.mrb[0].mxu0
        %793 = vmatprep.mubr.f32.mxu0 0.0
        %794 = vmatmul.mubr.f32.gmra.mrb[0].mxu0 %v653
        %v795 = vpop.f32.mrb[0].mxu0
        %v796 = vadd.f32 0.0, %v795
        %v797 = vpop.f32.mrb[0].mxu0
        %798 = vmatprep.mubr.f32.mxu0 0.0
        %799 = vmatmul.mubr.f32.gmra.mrb[0].mxu0 %v656
        %v800 = vpop.f32.mrb[0].mxu0
        %v801 = vadd.f32 0.0, %v800
        %v802 = vpop.f32.mrb[0].mxu0
        %803 = vmatprep.mubr.f32.mxu0 0.0
        %804 = vmatmul.mubr.f32.gmra.mrb[0].mxu0 %v659
        %v805 = vpop.f32.mrb[0].mxu0
        %v806 = vadd.f32 0.0, %v805
        %v807 = vpop.f32.mrb[0].mxu0
        %808 = vmatprep.mubr.f32.mxu0 0.0
        %809 = vmatmul.mubr.f32.gmra.mrb[0].mxu0 %v662
        %v810 = vpop.f32.mrb[0].mxu0
        %v811 = vadd.f32 0.0, %v810
        %v812 = vpop.f32.mrb[0].mxu0
        %813 = vmatprep.mubr.f32.mxu0 0.0
        %814 = vmatmul.mubr.f32.gmra.mrb[0].mxu0 %v665
        %v815 = vpop.f32.mrb[0].mxu0
        %v816 = vadd.f32 0.0, %v815
        %v817 = vpop.f32.mrb[0].mxu0
        %818 = vmatprep.mubr.f32.mxu0 0.0
        %819 = vmatmul.mubr.f32.gmra.mrb[0].mxu0 %v668
        %v820 = vpop.f32.mrb[0].mxu0
        %v821 = vadd.f32 0.0, %v820
        %v822 = vpop.f32.mrb[0].mxu0
        %823 = vmatprep.mubr.f32.mxu0 0.0
        %824 = vmatmul.mubr.f32.gmra.mrb[0].mxu0 %v671
        %v825 = vpop.f32.mrb[0].mxu0
        %v826 = vadd.f32 0.0, %v825
        %v827 = vpop.f32.mrb[0].mxu0
        %828 = vmatprep.mubr.f32.mxu0 0.0
        %829 = vmatmul.mubr.f32.gmra.mrb[0].mxu0 %v674
        %v830 = vpop.f32.mrb[0].mxu0
        %v831 = vadd.f32 0.0, %v830
        %v832 = vpop.f32.mrb[0].mxu0
        %833 = vmatprep.mubr.f32.mxu0 0.0
        %834 = vmatmul.mubr.f32.gmra.mrb[0].mxu0 %v677
        %v835 = vpop.f32.mrb[0].mxu0
        %v836 = vadd.f32 0.0, %v835
        %v837 = vpop.f32.mrb[0].mxu0
        %838 = vmatprep.mubr.f32.mxu0 0.0
        %839 = vmatmul.mubr.f32.gmra.mrb[0].mxu0 %v680
        %v840 = vpop.f32.mrb[0].mxu0
        %v841 = vadd.f32 0.0, %v840
        %v842 = vpop.f32.mrb[0].mxu0
        %843 = vmatprep.mubr.f32.mxu0 0.0
        %844 = vmatmul.mubr.f32.gmra.mrb[0].mxu0 %v683
        %v845 = vpop.f32.mrb[0].mxu0
        %v846 = vadd.f32 0.0, %v845
        %v847 = vpop.f32.mrb[0].mxu0
        %848 = vmatprep.mubr.f32.mxu0 0.0
        %849 = vmatmul.mubr.f32.gmra.mrb[0].mxu0 %v686
        %v850 = vpop.f32.mrb[0].mxu0
        %v851 = vadd.f32 0.0, %v850
        %v852 = vpop.f32.mrb[0].mxu0
        %853 = vmatprep.mubr.f32.mxu0 0.0
        %854 = vmatmul.mubr.f32.gmra.mrb[0].mxu0 %v689
        %v855 = vpop.f32.mrb[0].mxu0
        %v856 = vadd.f32 0.0, %v855
        %v857 = vpop.f32.mrb[0].mxu0
        %858 = vmatprep.mubr.f32.mxu0 0.0
        %859 = vmatmul.mubr.f32.gmra.mrb[0].mxu0 %v692
        %v860 = vpop.f32.mrb[0].mxu0
        %v861 = vadd.f32 0.0, %v860
        %v862 = vpop.f32.mrb[0].mxu0
        %863 = vmatprep.mubr.f32.mxu0 0.0
        %864 = vmatmul.mubr.f32.gmra.mrb[0].mxu0 %v695
        %v865 = vpop.f32.mrb[0].mxu0
        %v866 = vadd.f32 0.0, %v865
        %v867 = vpop.f32.mrb[0].mxu0
        %868 = vmatprep.mubr.f32.mxu0 0.0
        %869 = vmatmul.mubr.f32.gmra.mrb[0].mxu0 %v698
        %v870 = vpop.f32.mrb[0].mxu0
        %v871 = vadd.f32 0.0, %v870
        %v872 = vpop.f32.mrb[0].mxu0
        %873 = vmatprep.mubr.f32.mxu0 0.0
        %874 = vmatmul.mubr.f32.gmra.mrb[0].mxu0 %v701
        %v875 = vpop.f32.mrb[0].mxu0
        %v876 = vadd.f32 0.0, %v875
        %v877 = vpop.f32.mrb[0].mxu0
        %878 = vmatprep.mubr.f32.mxu0 0.0
        %879 = vmatmul.mubr.f32.gmra.mrb[0].mxu0 %v704
        %v880 = vpop.f32.mrb[0].mxu0
        %v881 = vadd.f32 0.0, %v880
        %v882 = vpop.f32.mrb[0].mxu0
        %883 = vmatprep.mubr.f32.mxu0 0.0
        %884 = vmatmul.mubr.f32.gmra.mrb[0].mxu0 %v707
        %v885 = vpop.f32.mrb[0].mxu0
        %v886 = vadd.f32 0.0, %v885
        %v887 = vpop.f32.mrb[0].mxu0
        %888 = vmatprep.mubr.f32.mxu0 0.0
        %889 = vmatmul.mubr.f32.gmra.mrb[0].mxu0 %v710
        %v890 = vpop.f32.mrb[0].mxu0
        %v891 = vadd.f32 0.0, %v890
        %v892 = vpop.f32.mrb[0].mxu0
        %893 = vmatprep.mubr.f32.mxu0 0.0
        %894 = vmatmul.mubr.f32.gmra.mrb[0].mxu0 %v713
        %v895 = vpop.f32.mrb[0].mxu0
        %v896 = vadd.f32 0.0, %v895
        %v897 = vpop.f32.mrb[0].mxu0
        %898 = vmatprep.mubr.f32.mxu0 0.0
        %899 = vmatmul.mubr.f32.gmra.mrb[0].mxu0 %v716
        %v900 = vpop.f32.mrb[0].mxu0
        %v901 = vadd.f32 0.0, %v900
        %v902 = vpop.f32.mrb[0].mxu0
        %903 = vmatprep.mubr.f32.mxu0 0.0
        %904 = vmatmul.mubr.f32.gmra.mrb[0].mxu0 %v719
        %v905 = vpop.f32.mrb[0].mxu0
        %v906 = vadd.f32 0.0, %v905
        %v907 = vpop.f32.mrb[0].mxu0
        %908 = vdwg.mxu0
        %v909 = vld [vmem:[#allocation2] sm:$0xff]
        %v910 = vld [vmem:[#allocation2 + $0x8] sm:$0xff]
        %v911 = vld [vmem:[#allocation2 + $0x10] sm:$0xff]
        %v912 = vld [vmem:[#allocation2 + $0x18] sm:$0xff]
        %v913 = vld [vmem:[#allocation2 + $0x20] sm:$0xff]
        %v914 = vld [vmem:[#allocation2 + $0x28] sm:$0xff]
        %v915 = vld [vmem:[#allocation2 + $0x30] sm:$0xff]
        %v916 = vld [vmem:[#allocation2 + $0x38] sm:$0xff]
        %v917 = vld [vmem:[#allocation2 + $0x40] sm:$0xff]
        %v918 = vld [vmem:[#allocation2 + $0x48] sm:$0xff]
        %v919 = vld [vmem:[#allocation2 + $0x50] sm:$0xff]
        %v920 = vld [vmem:[#allocation2 + $0x58] sm:$0xff]
        %v921 = vld [vmem:[#allocation2 + $0x60] sm:$0xff]
        %v922 = vld [vmem:[#allocation2 + $0x68] sm:$0xff]
        %v923 = vld [vmem:[#allocation2 + $0x70] sm:$0xff]
        %v924 = vld [vmem:[#allocation2 + $0x78] sm:$0xff]
        %v925 = vld [vmem:[#allocation2 + $0x80] sm:$0xff]
        %v926 = vld [vmem:[#allocation2 + $0x88] sm:$0xff]
        %v927 = vld [vmem:[#allocation2 + $0x90] sm:$0xff]
        %v928 = vld [vmem:[#allocation2 + $0x98] sm:$0xff]
        %v929 = vld [vmem:[#allocation2 + $0xa0] sm:$0xff]
        %v930 = vld [vmem:[#allocation2 + $0xa8] sm:$0xff]
        %v931 = vld [vmem:[#allocation2 + $0xb0] sm:$0xff]
        %v932 = vld [vmem:[#allocation2 + $0xb8] sm:$0xff]
        %v933 = vadd.f32 %v909, %v791
        %v934 = vadd.f32 %v910, %v796
        %v935 = vadd.f32 %v911, %v801
        %v936 = vadd.f32 %v912, %v806
        %v937 = vadd.f32 %v913, %v811
        %v938 = vadd.f32 %v914, %v816
        %v939 = vadd.f32 %v915, %v821
        %v940 = vadd.f32 %v916, %v826
        %v941 = vadd.f32 %v917, %v831
        %v942 = vadd.f32 %v918, %v836
        %v943 = vadd.f32 %v919, %v841
        %v944 = vadd.f32 %v920, %v846
        %v945 = vadd.f32 %v921, %v851
        %v946 = vadd.f32 %v922, %v856
        %v947 = vadd.f32 %v923, %v861
        %v948 = vadd.f32 %v924, %v866
        %v949 = vadd.f32 %v925, %v871
        %v950 = vadd.f32 %v926, %v876
        %v951 = vadd.f32 %v927, %v881
        %v952 = vadd.f32 %v928, %v886
        %v953 = vadd.f32 %v929, %v891
        %v954 = vadd.f32 %v930, %v896
        %v955 = vadd.f32 %v931, %v901
        %v956 = vadd.f32 %v932, %v906
        %957 = vst [vmem:[#allocation2] sm:$0xff] %v933
        %958 = vst [vmem:[#allocation2 + $0x8] sm:$0xff] %v934
        %959 = vst [vmem:[#allocation2 + $0x10] sm:$0xff] %v935
        %960 = vst [vmem:[#allocation2 + $0x18] sm:$0xff] %v936
        %961 = vst [vmem:[#allocation2 + $0x20] sm:$0xff] %v937
        %962 = vst [vmem:[#allocation2 + $0x28] sm:$0xff] %v938
        %963 = vst [vmem:[#allocation2 + $0x30] sm:$0xff] %v939
        %964 = vst [vmem:[#allocation2 + $0x38] sm:$0xff] %v940
        %965 = vst [vmem:[#allocation2 + $0x40] sm:$0xff] %v941
        %966 = vst [vmem:[#allocation2 + $0x48] sm:$0xff] %v942
        %967 = vst [vmem:[#allocation2 + $0x50] sm:$0xff] %v943
        %968 = vst [vmem:[#allocation2 + $0x58] sm:$0xff] %v944
        %969 = vst [vmem:[#allocation2 + $0x60] sm:$0xff] %v945
        %970 = vst [vmem:[#allocation2 + $0x68] sm:$0xff] %v946
        %971 = vst [vmem:[#allocation2 + $0x70] sm:$0xff] %v947
        %972 = vst [vmem:[#allocation2 + $0x78] sm:$0xff] %v948
        %973 = vst [vmem:[#allocation2 + $0x80] sm:$0xff] %v949
        %974 = vst [vmem:[#allocation2 + $0x88] sm:$0xff] %v950
        %975 = vst [vmem:[#allocation2 + $0x90] sm:$0xff] %v951
        %976 = vst [vmem:[#allocation2 + $0x98] sm:$0xff] %v952
        %977 = vst [vmem:[#allocation2 + $0xa0] sm:$0xff] %v953
        %978 = vst [vmem:[#allocation2 + $0xa8] sm:$0xff] %v954
        %979 = vst [vmem:[#allocation2 + $0xb0] sm:$0xff] %v955
        %980 = vst [vmem:[#allocation2 + $0xb8] sm:$0xff] %v956
        %v981 = vrot.slane %v279, 2
        %v982 = vrot.slane %v280, 2
        %v983 = vrot.slane %v281, 2
        %v984 = vrot.slane %v282, 2
        %v985 = vrot.slane %v283, 2
        %v986 = vrot.slane %v284, 2
        %v987 = vrot.slane %v285, 2
        %v988 = vrot.slane %v286, 2
        %v989 = vrot.slane %v287, 2
        %v990 = vrot.slane %v288, 2
        %v991 = vrot.slane %v289, 2
        %v992 = vrot.slane %v290, 2
        %v993 = vrot.slane %v291, 2
        %v994 = vrot.slane %v292, 2
        %v995 = vrot.slane %v293, 2
        %v996 = vrot.slane %v294, 2
        %v997 = vrot.slane %v295, 2
        %v998 = vrot.slane %v296, 2
        %v999 = vrot.slane %v297, 2
        %v1000 = vrot.slane %v298, 2
        %v1001 = vrot.slane %v299, 2
        %v1002 = vrot.slane %v300, 2
        %v1003 = vrot.slane %v301, 2
        %v1004 = vrot.slane %v302, 2
        %vm1005 = vcmp.lt.s32.totalorder %v621, 6
        %v1006 = vsel %vm1005, %v1003, %v1004
        %v1007 = vsel %vm1005, %v1002, %v1003
        %v1008 = vsel %vm1005, %v1001, %v1002
        %v1009 = vsel %vm1005, %v1000, %v1001
        %v1010 = vsel %vm1005, %v999, %v1000
        %v1011 = vsel %vm1005, %v998, %v999
        %v1012 = vsel %vm1005, %v997, %v998
        %v1013 = vsel %vm1005, %v996, %v997
        %v1014 = vsel %vm1005, %v995, %v996
        %v1015 = vsel %vm1005, %v994, %v995
        %v1016 = vsel %vm1005, %v993, %v994
        %v1017 = vsel %vm1005, %v992, %v993
        %v1018 = vsel %vm1005, %v991, %v992
        %v1019 = vsel %vm1005, %v990, %v991
        %v1020 = vsel %vm1005, %v989, %v990
        %v1021 = vsel %vm1005, %v988, %v989
        %v1022 = vsel %vm1005, %v987, %v988
        %v1023 = vsel %vm1005, %v986, %v987
        %v1024 = vsel %vm1005, %v985, %v986
        %v1025 = vsel %vm1005, %v984, %v985
        %v1026 = vsel %vm1005, %v983, %v984
        %v1027 = vsel %vm1005, %v982, %v983
        %v1028 = vsel %vm1005, %v981, %v982
        %v1029 = vsel %vm1005, %v1004, %v981
        %s1030 = scalar_lea.vmem %s271, 8
        %v1031 = vld [vmem:[%s1030] sm:$0xf]
        %v1033 = vsel %vm310, %v1028, 0
        %v1036 = vsel %vm310, %v1027, 0
        %v1039 = vsel %vm310, %v1026, 0
        %v1042 = vsel %vm310, %v1025, 0
        %v1045 = vsel %vm310, %v1024, 0
        %v1048 = vsel %vm310, %v1023, 0
        %v1051 = vsel %vm310, %v1022, 0
        %v1054 = vsel %vm310, %v1021, 0
        %v1057 = vsel %vm310, %v1020, 0
        %v1060 = vsel %vm310, %v1019, 0
        %v1063 = vsel %vm310, %v1018, 0
        %v1066 = vsel %vm310, %v1017, 0
        %v1069 = vsel %vm310, %v1016, 0
        %v1072 = vsel %vm310, %v1015, 0
        %v1075 = vsel %vm310, %v1014, 0
        %v1078 = vsel %vm310, %v1013, 0
        %v1081 = vsel %vm310, %v1012, 0
        %v1084 = vsel %vm310, %v1011, 0
        %v1087 = vsel %vm310, %v1010, 0
        %v1090 = vsel %vm310, %v1009, 0
        %v1093 = vsel %vm310, %v1008, 0
        %v1096 = vsel %vm310, %v1007, 0
        %v1099 = vsel %vm310, %v1006, 0
        %v1102 = vsel %vm310, %v1029, 0
        %v1105 = vsel %vm383, %v1031, 0
        %1107 = vmatprep.subr.mxu0 0.0
        %1108 = vmatpush1.msra.mxu0 %v1105
        %1109 = vmatprep.subr.mxu0 0.0
        %1110 = vmatpush1.msra.mxu0 0.0
        %1111 = vmatprep.subr.mxu0 0.0
        %1112 = vmatpush1.msra.mxu0 0.0
        %1113 = vmatprep.subr.mxu0 0.0
        %1114 = vmatpush1.msra.mxu0 0.0
        %1115 = vmatprep.subr.mxu0 0.0
        %1116 = vmatpush1.msra.mxu0 0.0
        %1117 = vmatprep.subr.mxu0 0.0
        %1118 = vmatpush1.msra.mxu0 0.0
        %1119 = vmatprep.subr.mxu0 0.0
        %1120 = vmatpush1.msra.mxu0 0.0
        %1121 = vmatprep.subr.mxu0 0.0
        %1122 = vmatpush1.msra.mxu0 0.0
        %1123 = vmatprep.subr.mxu0 0.0
        %1124 = vmatpush1.msra.mxu0 0.0
        %1125 = vmatprep.subr.mxu0 0.0
        %1126 = vmatpush1.msra.mxu0 0.0
        %1127 = vmatprep.subr.mxu0 0.0
        %1128 = vmatpush1.msra.mxu0 0.0
        %1129 = vmatprep.subr.mxu0 0.0
        %1130 = vmatpush1.msra.mxu0 0.0
        %1131 = vmatprep.subr.mxu0 0.0
        %1132 = vmatpush1.msra.mxu0 0.0
        %1133 = vmatprep.subr.mxu0 0.0
        %1134 = vmatpush1.msra.mxu0 0.0
        %1135 = vmatprep.subr.mxu0 0.0
        %1136 = vmatpush1.msra.mxu0 0.0
        %1137 = vmatprep.subr.mxu0 0.0
        %1138 = vmatpush1.msra.mxu0 0.0
        %1139 = vmatprep.subr.mxu0 0.0
        %1140 = vmatpush1.msra.mxu0 0.0
        %1141 = vmatprep.subr.mxu0 0.0
        %1142 = vmatpush1.msra.mxu0 0.0
        %1143 = vmatprep.subr.mxu0 0.0
        %1144 = vmatpush1.msra.mxu0 0.0
        %1145 = vmatprep.subr.mxu0 0.0
        %1146 = vmatpush1.msra.mxu0 0.0
        %1147 = vmatprep.subr.mxu0 0.0
        %1148 = vmatpush1.msra.mxu0 0.0
        %1149 = vmatprep.subr.mxu0 0.0
        %1150 = vmatpush1.msra.mxu0 0.0
        %1151 = vmatprep.subr.mxu0 0.0
        %1152 = vmatpush1.msra.mxu0 0.0
        %1153 = vmatprep.subr.mxu0 0.0
        %1154 = vmatpush1.msra.mxu0 0.0
        %1155 = vmatprep.subr.mxu0 0.0
        %1156 = vmatpush1.msra.mxu0 0.0
        %1157 = vmatprep.subr.mxu0 0.0
        %1158 = vmatpush1.msra.mxu0 0.0
        %1159 = vmatprep.subr.mxu0 0.0
        %1160 = vmatpush1.msra.mxu0 0.0
        %1161 = vmatprep.subr.mxu0 0.0
        %1162 = vmatpush1.msra.mxu0 0.0
        %1163 = vmatprep.subr.mxu0 0.0
        %1164 = vmatpush1.msra.mxu0 0.0
        %1165 = vmatprep.subr.mxu0 0.0
        %1166 = vmatpush1.msra.mxu0 0.0
        %1167 = vmatprep.subr.mxu0 0.0
        %1168 = vmatpush1.msra.mxu0 0.0
        %1169 = vmatprep.subr.mxu0 0.0
        %1170 = vmatpush1.msra.mxu0 0.0
        %1171 = vmatprep.mubr.f32.mxu0 0.0
        %1172 = vmatmul.mubr.f32.gmra.mrb[0].mxu0 %v1033
        %v1173 = vpop.f32.mrb[0].mxu0
        %v1174 = vadd.f32 0.0, %v1173
        %v1175 = vpop.f32.mrb[0].mxu0
        %1176 = vmatprep.mubr.f32.mxu0 0.0
        %1177 = vmatmul.mubr.f32.gmra.mrb[0].mxu0 %v1036
        %v1178 = vpop.f32.mrb[0].mxu0
        %v1179 = vadd.f32 0.0, %v1178
        %v1180 = vpop.f32.mrb[0].mxu0
        %1181 = vmatprep.mubr.f32.mxu0 0.0
        %1182 = vmatmul.mubr.f32.gmra.mrb[0].mxu0 %v1039
        %v1183 = vpop.f32.mrb[0].mxu0
        %v1184 = vadd.f32 0.0, %v1183
        %v1185 = vpop.f32.mrb[0].mxu0
        %1186 = vmatprep.mubr.f32.mxu0 0.0
        %1187 = vmatmul.mubr.f32.gmra.mrb[0].mxu0 %v1042
        %v1188 = vpop.f32.mrb[0].mxu0
        %v1189 = vadd.f32 0.0, %v1188
        %v1190 = vpop.f32.mrb[0].mxu0
        %1191 = vmatprep.mubr.f32.mxu0 0.0
        %1192 = vmatmul.mubr.f32.gmra.mrb[0].mxu0 %v1045
        %v1193 = vpop.f32.mrb[0].mxu0
        %v1194 = vadd.f32 0.0, %v1193
        %v1195 = vpop.f32.mrb[0].mxu0
        %1196 = vmatprep.mubr.f32.mxu0 0.0
        %1197 = vmatmul.mubr.f32.gmra.mrb[0].mxu0 %v1048
        %v1198 = vpop.f32.mrb[0].mxu0
        %v1199 = vadd.f32 0.0, %v1198
        %v1200 = vpop.f32.mrb[0].mxu0
        %1201 = vmatprep.mubr.f32.mxu0 0.0
        %1202 = vmatmul.mubr.f32.gmra.mrb[0].mxu0 %v1051
        %v1203 = vpop.f32.mrb[0].mxu0
        %v1204 = vadd.f32 0.0, %v1203
        %v1205 = vpop.f32.mrb[0].mxu0
        %1206 = vmatprep.mubr.f32.mxu0 0.0
        %1207 = vmatmul.mubr.f32.gmra.mrb[0].mxu0 %v1054
        %v1208 = vpop.f32.mrb[0].mxu0
        %v1209 = vadd.f32 0.0, %v1208
        %v1210 = vpop.f32.mrb[0].mxu0
        %1211 = vmatprep.mubr.f32.mxu0 0.0
        %1212 = vmatmul.mubr.f32.gmra.mrb[0].mxu0 %v1057
        %v1213 = vpop.f32.mrb[0].mxu0
        %v1214 = vadd.f32 0.0, %v1213
        %v1215 = vpop.f32.mrb[0].mxu0
        %1216 = vmatprep.mubr.f32.mxu0 0.0
        %1217 = vmatmul.mubr.f32.gmra.mrb[0].mxu0 %v1060
        %v1218 = vpop.f32.mrb[0].mxu0
        %v1219 = vadd.f32 0.0, %v1218
        %v1220 = vpop.f32.mrb[0].mxu0
        %1221 = vmatprep.mubr.f32.mxu0 0.0
        %1222 = vmatmul.mubr.f32.gmra.mrb[0].mxu0 %v1063
        %v1223 = vpop.f32.mrb[0].mxu0
        %v1224 = vadd.f32 0.0, %v1223
        %v1225 = vpop.f32.mrb[0].mxu0
        %1226 = vmatprep.mubr.f32.mxu0 0.0
        %1227 = vmatmul.mubr.f32.gmra.mrb[0].mxu0 %v1066
        %v1228 = vpop.f32.mrb[0].mxu0
        %v1229 = vadd.f32 0.0, %v1228
        %v1230 = vpop.f32.mrb[0].mxu0
        %1231 = vmatprep.mubr.f32.mxu0 0.0
        %1232 = vmatmul.mubr.f32.gmra.mrb[0].mxu0 %v1069
        %v1233 = vpop.f32.mrb[0].mxu0
        %v1234 = vadd.f32 0.0, %v1233
        %v1235 = vpop.f32.mrb[0].mxu0
        %1236 = vmatprep.mubr.f32.mxu0 0.0
        %1237 = vmatmul.mubr.f32.gmra.mrb[0].mxu0 %v1072
        %v1238 = vpop.f32.mrb[0].mxu0
        %v1239 = vadd.f32 0.0, %v1238
        %v1240 = vpop.f32.mrb[0].mxu0
        %1241 = vmatprep.mubr.f32.mxu0 0.0
        %1242 = vmatmul.mubr.f32.gmra.mrb[0].mxu0 %v1075
        %v1243 = vpop.f32.mrb[0].mxu0
        %v1244 = vadd.f32 0.0, %v1243
        %v1245 = vpop.f32.mrb[0].mxu0
        %1246 = vmatprep.mubr.f32.mxu0 0.0
        %1247 = vmatmul.mubr.f32.gmra.mrb[0].mxu0 %v1078
        %v1248 = vpop.f32.mrb[0].mxu0
        %v1249 = vadd.f32 0.0, %v1248
        %v1250 = vpop.f32.mrb[0].mxu0
        %1251 = vmatprep.mubr.f32.mxu0 0.0
        %1252 = vmatmul.mubr.f32.gmra.mrb[0].mxu0 %v1081
        %v1253 = vpop.f32.mrb[0].mxu0
        %v1254 = vadd.f32 0.0, %v1253
        %v1255 = vpop.f32.mrb[0].mxu0
        %1256 = vmatprep.mubr.f32.mxu0 0.0
        %1257 = vmatmul.mubr.f32.gmra.mrb[0].mxu0 %v1084
        %v1258 = vpop.f32.mrb[0].mxu0
        %v1259 = vadd.f32 0.0, %v1258
        %v1260 = vpop.f32.mrb[0].mxu0
        %1261 = vmatprep.mubr.f32.mxu0 0.0
        %1262 = vmatmul.mubr.f32.gmra.mrb[0].mxu0 %v1087
        %v1263 = vpop.f32.mrb[0].mxu0
        %v1264 = vadd.f32 0.0, %v1263
        %v1265 = vpop.f32.mrb[0].mxu0
        %1266 = vmatprep.mubr.f32.mxu0 0.0
        %1267 = vmatmul.mubr.f32.gmra.mrb[0].mxu0 %v1090
        %v1268 = vpop.f32.mrb[0].mxu0
        %v1269 = vadd.f32 0.0, %v1268
        %v1270 = vpop.f32.mrb[0].mxu0
        %1271 = vmatprep.mubr.f32.mxu0 0.0
        %1272 = vmatmul.mubr.f32.gmra.mrb[0].mxu0 %v1093
        %v1273 = vpop.f32.mrb[0].mxu0
        %v1274 = vadd.f32 0.0, %v1273
        %v1275 = vpop.f32.mrb[0].mxu0
        %1276 = vmatprep.mubr.f32.mxu0 0.0
        %1277 = vmatmul.mubr.f32.gmra.mrb[0].mxu0 %v1096
        %v1278 = vpop.f32.mrb[0].mxu0
        %v1279 = vadd.f32 0.0, %v1278
        %v1280 = vpop.f32.mrb[0].mxu0
        %1281 = vmatprep.mubr.f32.mxu0 0.0
        %1282 = vmatmul.mubr.f32.gmra.mrb[0].mxu0 %v1099
        %v1283 = vpop.f32.mrb[0].mxu0
        %v1284 = vadd.f32 0.0, %v1283
        %v1285 = vpop.f32.mrb[0].mxu0
        %1286 = vmatprep.mubr.f32.mxu0 0.0
        %1287 = vmatmul.mubr.f32.gmra.mrb[0].mxu0 %v1102
        %v1288 = vpop.f32.mrb[0].mxu0
        %v1289 = vadd.f32 0.0, %v1288
        %v1290 = vpop.f32.mrb[0].mxu0
        %1291 = vdwg.mxu0
        %v1292 = vld [vmem:[#allocation2] sm:$0xff]
        %v1293 = vld [vmem:[#allocation2 + $0x8] sm:$0xff]
        %v1294 = vld [vmem:[#allocation2 + $0x10] sm:$0xff]
        %v1295 = vld [vmem:[#allocation2 + $0x18] sm:$0xff]
        %v1296 = vld [vmem:[#allocation2 + $0x20] sm:$0xff]
        %v1297 = vld [vmem:[#allocation2 + $0x28] sm:$0xff]
        %v1298 = vld [vmem:[#allocation2 + $0x30] sm:$0xff]
        %v1299 = vld [vmem:[#allocation2 + $0x38] sm:$0xff]
        %v1300 = vld [vmem:[#allocation2 + $0x40] sm:$0xff]
        %v1301 = vld [vmem:[#allocation2 + $0x48] sm:$0xff]
        %v1302 = vld [vmem:[#allocation2 + $0x50] sm:$0xff]
        %v1303 = vld [vmem:[#allocation2 + $0x58] sm:$0xff]
        %v1304 = vld [vmem:[#allocation2 + $0x60] sm:$0xff]
        %v1305 = vld [vmem:[#allocation2 + $0x68] sm:$0xff]
        %v1306 = vld [vmem:[#allocation2 + $0x70] sm:$0xff]
        %v1307 = vld [vmem:[#allocation2 + $0x78] sm:$0xff]
        %v1308 = vld [vmem:[#allocation2 + $0x80] sm:$0xff]
        %v1309 = vld [vmem:[#allocation2 + $0x88] sm:$0xff]
        %v1310 = vld [vmem:[#allocation2 + $0x90] sm:$0xff]
        %v1311 = vld [vmem:[#allocation2 + $0x98] sm:$0xff]
        %v1312 = vld [vmem:[#allocation2 + $0xa0] sm:$0xff]
        %v1313 = vld [vmem:[#allocation2 + $0xa8] sm:$0xff]
        %v1314 = vld [vmem:[#allocation2 + $0xb0] sm:$0xff]
        %v1315 = vld [vmem:[#allocation2 + $0xb8] sm:$0xff]
        %v1316 = vadd.f32 %v1292, %v1174
        %v1317 = vadd.f32 %v1293, %v1179
        %v1318 = vadd.f32 %v1294, %v1184
        %v1319 = vadd.f32 %v1295, %v1189
        %v1320 = vadd.f32 %v1296, %v1194
        %v1321 = vadd.f32 %v1297, %v1199
        %v1322 = vadd.f32 %v1298, %v1204
        %v1323 = vadd.f32 %v1299, %v1209
        %v1324 = vadd.f32 %v1300, %v1214
        %v1325 = vadd.f32 %v1301, %v1219
        %v1326 = vadd.f32 %v1302, %v1224
        %v1327 = vadd.f32 %v1303, %v1229
        %v1328 = vadd.f32 %v1304, %v1234
        %v1329 = vadd.f32 %v1305, %v1239
        %v1330 = vadd.f32 %v1306, %v1244
        %v1331 = vadd.f32 %v1307, %v1249
        %v1332 = vadd.f32 %v1308, %v1254
        %v1333 = vadd.f32 %v1309, %v1259
        %v1334 = vadd.f32 %v1310, %v1264
        %v1335 = vadd.f32 %v1311, %v1269
        %v1336 = vadd.f32 %v1312, %v1274
        %v1337 = vadd.f32 %v1313, %v1279
        %v1338 = vadd.f32 %v1314, %v1284
        %v1339 = vadd.f32 %v1315, %v1289
        %1340 = vst [vmem:[#allocation2] sm:$0xff] %v1316
        %1341 = vst [vmem:[#allocation2 + $0x8] sm:$0xff] %v1317
        %1342 = vst [vmem:[#allocation2 + $0x10] sm:$0xff] %v1318
        %1343 = vst [vmem:[#allocation2 + $0x18] sm:$0xff] %v1319
        %1344 = vst [vmem:[#allocation2 + $0x20] sm:$0xff] %v1320
        %1345 = vst [vmem:[#allocation2 + $0x28] sm:$0xff] %v1321
        %1346 = vst [vmem:[#allocation2 + $0x30] sm:$0xff] %v1322
        %1347 = vst [vmem:[#allocation2 + $0x38] sm:$0xff] %v1323
        %1348 = vst [vmem:[#allocation2 + $0x40] sm:$0xff] %v1324
        %1349 = vst [vmem:[#allocation2 + $0x48] sm:$0xff] %v1325
        %1350 = vst [vmem:[#allocation2 + $0x50] sm:$0xff] %v1326
        %1351 = vst [vmem:[#allocation2 + $0x58] sm:$0xff] %v1327
        %1352 = vst [vmem:[#allocation2 + $0x60] sm:$0xff] %v1328
        %1353 = vst [vmem:[#allocation2 + $0x68] sm:$0xff] %v1329
        %1354 = vst [vmem:[#allocation2 + $0x70] sm:$0xff] %v1330
        %1355 = vst [vmem:[#allocation2 + $0x78] sm:$0xff] %v1331
        %1356 = vst [vmem:[#allocation2 + $0x80] sm:$0xff] %v1332
        %1357 = vst [vmem:[#allocation2 + $0x88] sm:$0xff] %v1333
        %1358 = vst [vmem:[#allocation2 + $0x90] sm:$0xff] %v1334
        %1359 = vst [vmem:[#allocation2 + $0x98] sm:$0xff] %v1335
        %1360 = vst [vmem:[#allocation2 + $0xa0] sm:$0xff] %v1336
        %1361 = vst [vmem:[#allocation2 + $0xa8] sm:$0xff] %v1337
        %1362 = vst [vmem:[#allocation2 + $0xb0] sm:$0xff] %v1338
        %1363 = vst [vmem:[#allocation2 + $0xb8] sm:$0xff] %v1339
        %s1364 = scalar_lea.vmem %s271, 12
        %v1365 = vld [vmem:[%s1364] sm:$0xf]
        %v1367 = vsel %vm310, %v303, 0
        %v1370 = vsel %vm310, %v304, 0
        %v1373 = vsel %vm310, %v305, 0
        %v1376 = vsel %vm383, %v1365, 0
        %1378 = vmatprep.subr.mxu0 0.0
        %1379 = vmatpush1.msra.mxu0 %v1376
        %1380 = vmatprep.subr.mxu0 0.0
        %1381 = vmatpush1.msra.mxu0 0.0
        %1382 = vmatprep.subr.mxu0 0.0
        %1383 = vmatpush1.msra.mxu0 0.0
        %1384 = vmatprep.subr.mxu0 0.0
        %1385 = vmatpush1.msra.mxu0 0.0
        %1386 = vmatprep.subr.mxu0 0.0
        %1387 = vmatpush1.msra.mxu0 0.0
        %1388 = vmatprep.subr.mxu0 0.0
        %1389 = vmatpush1.msra.mxu0 0.0
        %1390 = vmatprep.subr.mxu0 0.0
        %1391 = vmatpush1.msra.mxu0 0.0
        %1392 = vmatprep.subr.mxu0 0.0
        %1393 = vmatpush1.msra.mxu0 0.0
        %1394 = vmatprep.subr.mxu0 0.0
        %1395 = vmatpush1.msra.mxu0 0.0
        %1396 = vmatprep.subr.mxu0 0.0
        %1397 = vmatpush1.msra.mxu0 0.0
        %1398 = vmatprep.subr.mxu0 0.0
        %1399 = vmatpush1.msra.mxu0 0.0
        %1400 = vmatprep.subr.mxu0 0.0
        %1401 = vmatpush1.msra.mxu0 0.0
        %1402 = vmatprep.subr.mxu0 0.0
        %1403 = vmatpush1.msra.mxu0 0.0
        %1404 = vmatprep.subr.mxu0 0.0
        %1405 = vmatpush1.msra.mxu0 0.0
        %1406 = vmatprep.subr.mxu0 0.0
        %1407 = vmatpush1.msra.mxu0 0.0
        %1408 = vmatprep.subr.mxu0 0.0
        %1409 = vmatpush1.msra.mxu0 0.0
        %1410 = vmatprep.subr.mxu0 0.0
        %1411 = vmatpush1.msra.mxu0 0.0
        %1412 = vmatprep.subr.mxu0 0.0
        %1413 = vmatpush1.msra.mxu0 0.0
        %1414 = vmatprep.subr.mxu0 0.0
        %1415 = vmatpush1.msra.mxu0 0.0
        %1416 = vmatprep.subr.mxu0 0.0
        %1417 = vmatpush1.msra.mxu0 0.0
        %1418 = vmatprep.subr.mxu0 0.0
        %1419 = vmatpush1.msra.mxu0 0.0
        %1420 = vmatprep.subr.mxu0 0.0
        %1421 = vmatpush1.msra.mxu0 0.0
        %1422 = vmatprep.subr.mxu0 0.0
        %1423 = vmatpush1.msra.mxu0 0.0
        %1424 = vmatprep.subr.mxu0 0.0
        %1425 = vmatpush1.msra.mxu0 0.0
        %1426 = vmatprep.subr.mxu0 0.0
        %1427 = vmatpush1.msra.mxu0 0.0
        %1428 = vmatprep.subr.mxu0 0.0
        %1429 = vmatpush1.msra.mxu0 0.0
        %1430 = vmatprep.subr.mxu0 0.0
        %1431 = vmatpush1.msra.mxu0 0.0
        %1432 = vmatprep.subr.mxu0 0.0
        %1433 = vmatpush1.msra.mxu0 0.0
        %1434 = vmatprep.subr.mxu0 0.0
        %1435 = vmatpush1.msra.mxu0 0.0
        %1436 = vmatprep.subr.mxu0 0.0
        %1437 = vmatpush1.msra.mxu0 0.0
        %1438 = vmatprep.subr.mxu0 0.0
        %1439 = vmatpush1.msra.mxu0 0.0
        %1440 = vmatprep.subr.mxu0 0.0
        %1441 = vmatpush1.msra.mxu0 0.0
        %1442 = vmatprep.mubr.f32.mxu0 0.0
        %1443 = vmatmul.mubr.f32.gmra.mrb[0].mxu0 %v321
        %v1444 = vpop.f32.mrb[0].mxu0
        %v1445 = vadd.f32 0.0, %v1444
        %v1446 = vpop.f32.mrb[0].mxu0
        %1447 = vmatprep.mubr.f32.mxu0 0.0
        %1448 = vmatmul.mubr.f32.gmra.mrb[0].mxu0 %v324
        %v1449 = vpop.f32.mrb[0].mxu0
        %v1450 = vadd.f32 0.0, %v1449
        %v1451 = vpop.f32.mrb[0].mxu0
        %1452 = vmatprep.mubr.f32.mxu0 0.0
        %1453 = vmatmul.mubr.f32.gmra.mrb[0].mxu0 %v327
        %v1454 = vpop.f32.mrb[0].mxu0
        %v1455 = vadd.f32 0.0, %v1454
        %v1456 = vpop.f32.mrb[0].mxu0
        %1457 = vmatprep.mubr.f32.mxu0 0.0
        %1458 = vmatmul.mubr.f32.gmra.mrb[0].mxu0 %v330
        %v1459 = vpop.f32.mrb[0].mxu0
        %v1460 = vadd.f32 0.0, %v1459
        %v1461 = vpop.f32.mrb[0].mxu0
        %1462 = vmatprep.mubr.f32.mxu0 0.0
        %1463 = vmatmul.mubr.f32.gmra.mrb[0].mxu0 %v333
        %v1464 = vpop.f32.mrb[0].mxu0
        %v1465 = vadd.f32 0.0, %v1464
        %v1466 = vpop.f32.mrb[0].mxu0
        %1467 = vmatprep.mubr.f32.mxu0 0.0
        %1468 = vmatmul.mubr.f32.gmra.mrb[0].mxu0 %v336
        %v1469 = vpop.f32.mrb[0].mxu0
        %v1470 = vadd.f32 0.0, %v1469
        %v1471 = vpop.f32.mrb[0].mxu0
        %1472 = vmatprep.mubr.f32.mxu0 0.0
        %1473 = vmatmul.mubr.f32.gmra.mrb[0].mxu0 %v339
        %v1474 = vpop.f32.mrb[0].mxu0
        %v1475 = vadd.f32 0.0, %v1474
        %v1476 = vpop.f32.mrb[0].mxu0
        %1477 = vmatprep.mubr.f32.mxu0 0.0
        %1478 = vmatmul.mubr.f32.gmra.mrb[0].mxu0 %v342
        %v1479 = vpop.f32.mrb[0].mxu0
        %v1480 = vadd.f32 0.0, %v1479
        %v1481 = vpop.f32.mrb[0].mxu0
        %1482 = vmatprep.mubr.f32.mxu0 0.0
        %1483 = vmatmul.mubr.f32.gmra.mrb[0].mxu0 %v345
        %v1484 = vpop.f32.mrb[0].mxu0
        %v1485 = vadd.f32 0.0, %v1484
        %v1486 = vpop.f32.mrb[0].mxu0
        %1487 = vmatprep.mubr.f32.mxu0 0.0
        %1488 = vmatmul.mubr.f32.gmra.mrb[0].mxu0 %v348
        %v1489 = vpop.f32.mrb[0].mxu0
        %v1490 = vadd.f32 0.0, %v1489
        %v1491 = vpop.f32.mrb[0].mxu0
        %1492 = vmatprep.mubr.f32.mxu0 0.0
        %1493 = vmatmul.mubr.f32.gmra.mrb[0].mxu0 %v351
        %v1494 = vpop.f32.mrb[0].mxu0
        %v1495 = vadd.f32 0.0, %v1494
        %v1496 = vpop.f32.mrb[0].mxu0
        %1497 = vmatprep.mubr.f32.mxu0 0.0
        %1498 = vmatmul.mubr.f32.gmra.mrb[0].mxu0 %v354
        %v1499 = vpop.f32.mrb[0].mxu0
        %v1500 = vadd.f32 0.0, %v1499
        %v1501 = vpop.f32.mrb[0].mxu0
        %1502 = vmatprep.mubr.f32.mxu0 0.0
        %1503 = vmatmul.mubr.f32.gmra.mrb[0].mxu0 %v357
        %v1504 = vpop.f32.mrb[0].mxu0
        %v1505 = vadd.f32 0.0, %v1504
        %v1506 = vpop.f32.mrb[0].mxu0
        %1507 = vmatprep.mubr.f32.mxu0 0.0
        %1508 = vmatmul.mubr.f32.gmra.mrb[0].mxu0 %v360
        %v1509 = vpop.f32.mrb[0].mxu0
        %v1510 = vadd.f32 0.0, %v1509
        %v1511 = vpop.f32.mrb[0].mxu0
        %1512 = vmatprep.mubr.f32.mxu0 0.0
        %1513 = vmatmul.mubr.f32.gmra.mrb[0].mxu0 %v363
        %v1514 = vpop.f32.mrb[0].mxu0
        %v1515 = vadd.f32 0.0, %v1514
        %v1516 = vpop.f32.mrb[0].mxu0
        %1517 = vmatprep.mubr.f32.mxu0 0.0
        %1518 = vmatmul.mubr.f32.gmra.mrb[0].mxu0 %v366
        %v1519 = vpop.f32.mrb[0].mxu0
        %v1520 = vadd.f32 0.0, %v1519
        %v1521 = vpop.f32.mrb[0].mxu0
        %1522 = vmatprep.mubr.f32.mxu0 0.0
        %1523 = vmatmul.mubr.f32.gmra.mrb[0].mxu0 %v369
        %v1524 = vpop.f32.mrb[0].mxu0
        %v1525 = vadd.f32 0.0, %v1524
        %v1526 = vpop.f32.mrb[0].mxu0
        %1527 = vmatprep.mubr.f32.mxu0 0.0
        %1528 = vmatmul.mubr.f32.gmra.mrb[0].mxu0 %v372
        %v1529 = vpop.f32.mrb[0].mxu0
        %v1530 = vadd.f32 0.0, %v1529
        %v1531 = vpop.f32.mrb[0].mxu0
        %1532 = vmatprep.mubr.f32.mxu0 0.0
        %1533 = vmatmul.mubr.f32.gmra.mrb[0].mxu0 %v375
        %v1534 = vpop.f32.mrb[0].mxu0
        %v1535 = vadd.f32 0.0, %v1534
        %v1536 = vpop.f32.mrb[0].mxu0
        %1537 = vmatprep.mubr.f32.mxu0 0.0
        %1538 = vmatmul.mubr.f32.gmra.mrb[0].mxu0 %v378
        %v1539 = vpop.f32.mrb[0].mxu0
        %v1540 = vadd.f32 0.0, %v1539
        %v1541 = vpop.f32.mrb[0].mxu0
        %1542 = vmatprep.mubr.f32.mxu0 0.0
        %1543 = vmatmul.mubr.f32.gmra.mrb[0].mxu0 %v381
        %v1544 = vpop.f32.mrb[0].mxu0
        %v1545 = vadd.f32 0.0, %v1544
        %v1546 = vpop.f32.mrb[0].mxu0
        %1547 = vmatprep.mubr.f32.mxu0 0.0
        %1548 = vmatmul.mubr.f32.gmra.mrb[0].mxu0 %v1367
        %v1549 = vpop.f32.mrb[0].mxu0
        %v1550 = vadd.f32 0.0, %v1549
        %v1551 = vpop.f32.mrb[0].mxu0
        %1552 = vmatprep.mubr.f32.mxu0 0.0
        %1553 = vmatmul.mubr.f32.gmra.mrb[0].mxu0 %v1370
        %v1554 = vpop.f32.mrb[0].mxu0
        %v1555 = vadd.f32 0.0, %v1554
        %v1556 = vpop.f32.mrb[0].mxu0
        %1557 = vmatprep.mubr.f32.mxu0 0.0
        %1558 = vmatmul.mubr.f32.gmra.mrb[0].mxu0 %v1373
        %v1559 = vpop.f32.mrb[0].mxu0
        %v1560 = vadd.f32 0.0, %v1559
        %v1561 = vpop.f32.mrb[0].mxu0
        %1562 = vdwg.mxu0
        %v1563 = vld [vmem:[#allocation2] sm:$0xff]
        %v1564 = vld [vmem:[#allocation2 + $0x8] sm:$0xff]
        %v1565 = vld [vmem:[#allocation2 + $0x10] sm:$0xff]
        %v1566 = vld [vmem:[#allocation2 + $0x18] sm:$0xff]
        %v1567 = vld [vmem:[#allocation2 + $0x20] sm:$0xff]
        %v1568 = vld [vmem:[#allocation2 + $0x28] sm:$0xff]
        %v1569 = vld [vmem:[#allocation2 + $0x30] sm:$0xff]
        %v1570 = vld [vmem:[#allocation2 + $0x38] sm:$0xff]
        %v1571 = vld [vmem:[#allocation2 + $0x40] sm:$0xff]
        %v1572 = vld [vmem:[#allocation2 + $0x48] sm:$0xff]
        %v1573 = vld [vmem:[#allocation2 + $0x50] sm:$0xff]
        %v1574 = vld [vmem:[#allocation2 + $0x58] sm:$0xff]
        %v1575 = vld [vmem:[#allocation2 + $0x60] sm:$0xff]
        %v1576 = vld [vmem:[#allocation2 + $0x68] sm:$0xff]
        %v1577 = vld [vmem:[#allocation2 + $0x70] sm:$0xff]
        %v1578 = vld [vmem:[#allocation2 + $0x78] sm:$0xff]
        %v1579 = vld [vmem:[#allocation2 + $0x80] sm:$0xff]
        %v1580 = vld [vmem:[#allocation2 + $0x88] sm:$0xff]
        %v1581 = vld [vmem:[#allocation2 + $0x90] sm:$0xff]
        %v1582 = vld [vmem:[#allocation2 + $0x98] sm:$0xff]
        %v1583 = vld [vmem:[#allocation2 + $0xa0] sm:$0xff]
        %v1584 = vld [vmem:[#allocation2 + $0xa8] sm:$0xff]
        %v1585 = vld [vmem:[#allocation2 + $0xb0] sm:$0xff]
        %v1586 = vld [vmem:[#allocation2 + $0xb8] sm:$0xff]
        %v1587 = vadd.f32 %v1563, %v1445
        %v1588 = vadd.f32 %v1564, %v1450
        %v1589 = vadd.f32 %v1565, %v1455
        %v1590 = vadd.f32 %v1566, %v1460
        %v1591 = vadd.f32 %v1567, %v1465
        %v1592 = vadd.f32 %v1568, %v1470
        %v1593 = vadd.f32 %v1569, %v1475
        %v1594 = vadd.f32 %v1570, %v1480
        %v1595 = vadd.f32 %v1571, %v1485
        %v1596 = vadd.f32 %v1572, %v1490
        %v1597 = vadd.f32 %v1573, %v1495
        %v1598 = vadd.f32 %v1574, %v1500
        %v1599 = vadd.f32 %v1575, %v1505
        %v1600 = vadd.f32 %v1576, %v1510
        %v1601 = vadd.f32 %v1577, %v1515
        %v1602 = vadd.f32 %v1578, %v1520
        %v1603 = vadd.f32 %v1579, %v1525
        %v1604 = vadd.f32 %v1580, %v1530
        %v1605 = vadd.f32 %v1581, %v1535
        %v1606 = vadd.f32 %v1582, %v1540
        %v1607 = vadd.f32 %v1583, %v1545
        %v1608 = vadd.f32 %v1584, %v1550
        %v1609 = vadd.f32 %v1585, %v1555
        %v1610 = vadd.f32 %v1586, %v1560
        %1611 = vst [vmem:[#allocation2] sm:$0xff] %v1587
        %1612 = vst [vmem:[#allocation2 + $0x8] sm:$0xff] %v1588
        %1613 = vst [vmem:[#allocation2 + $0x10] sm:$0xff] %v1589
        %1614 = vst [vmem:[#allocation2 + $0x18] sm:$0xff] %v1590
        %1615 = vst [vmem:[#allocation2 + $0x20] sm:$0xff] %v1591
        %1616 = vst [vmem:[#allocation2 + $0x28] sm:$0xff] %v1592
        %1617 = vst [vmem:[#allocation2 + $0x30] sm:$0xff] %v1593
        %1618 = vst [vmem:[#allocation2 + $0x38] sm:$0xff] %v1594
        %1619 = vst [vmem:[#allocation2 + $0x40] sm:$0xff] %v1595
        %1620 = vst [vmem:[#allocation2 + $0x48] sm:$0xff] %v1596
        %1621 = vst [vmem:[#allocation2 + $0x50] sm:$0xff] %v1597
        %1622 = vst [vmem:[#allocation2 + $0x58] sm:$0xff] %v1598
        %1623 = vst [vmem:[#allocation2 + $0x60] sm:$0xff] %v1599
        %1624 = vst [vmem:[#allocation2 + $0x68] sm:$0xff] %v1600
        %1625 = vst [vmem:[#allocation2 + $0x70] sm:$0xff] %v1601
        %1626 = vst [vmem:[#allocation2 + $0x78] sm:$0xff] %v1602
        %1627 = vst [vmem:[#allocation2 + $0x80] sm:$0xff] %v1603
        %1628 = vst [vmem:[#allocation2 + $0x88] sm:$0xff] %v1604
        %1629 = vst [vmem:[#allocation2 + $0x90] sm:$0xff] %v1605
        %1630 = vst [vmem:[#allocation2 + $0x98] sm:$0xff] %v1606
        %1631 = vst [vmem:[#allocation2 + $0xa0] sm:$0xff] %v1607
        %1632 = vst [vmem:[#allocation2 + $0xa8] sm:$0xff] %v1608
        %1633 = vst [vmem:[#allocation2 + $0xb0] sm:$0xff] %v1609
        %1634 = vst [vmem:[#allocation2 + $0xb8] sm:$0xff] %v1610
        %v1635 = vrot.slane %v303, 1
        %v1636 = vrot.slane %v304, 1
        %v1637 = vrot.slane %v305, 1
        %v1638 = vsel %vm622, %v1636, %v1637
        %v1639 = vsel %vm622, %v1635, %v1636
        %v1640 = vsel %vm622, %v619, %v1635
        %v1641 = vsel %vm622, %v1637, %v599
        %s1642 = scalar_lea.vmem %s271, 16
        %v1643 = vld [vmem:[%s1642] sm:$0xf]
        %v1645 = vsel %vm310, %v1640, 0
        %v1648 = vsel %vm310, %v1639, 0
        %v1651 = vsel %vm310, %v1638, 0
        %v1654 = vsel %vm310, %v1641, 0
        %v1657 = vsel %vm383, %v1643, 0
        %1659 = vmatprep.subr.mxu0 0.0
        %1660 = vmatpush1.msra.mxu0 %v1657
        %1661 = vmatprep.subr.mxu0 0.0
        %1662 = vmatpush1.msra.mxu0 0.0
        %1663 = vmatprep.subr.mxu0 0.0
        %1664 = vmatpush1.msra.mxu0 0.0
        %1665 = vmatprep.subr.mxu0 0.0
        %1666 = vmatpush1.msra.mxu0 0.0
        %1667 = vmatprep.subr.mxu0 0.0
        %1668 = vmatpush1.msra.mxu0 0.0
        %1669 = vmatprep.subr.mxu0 0.0
        %1670 = vmatpush1.msra.mxu0 0.0
        %1671 = vmatprep.subr.mxu0 0.0
        %1672 = vmatpush1.msra.mxu0 0.0
        %1673 = vmatprep.subr.mxu0 0.0
        %1674 = vmatpush1.msra.mxu0 0.0
        %1675 = vmatprep.subr.mxu0 0.0
        %1676 = vmatpush1.msra.mxu0 0.0
        %1677 = vmatprep.subr.mxu0 0.0
        %1678 = vmatpush1.msra.mxu0 0.0
        %1679 = vmatprep.subr.mxu0 0.0
        %1680 = vmatpush1.msra.mxu0 0.0
        %1681 = vmatprep.subr.mxu0 0.0
        %1682 = vmatpush1.msra.mxu0 0.0
        %1683 = vmatprep.subr.mxu0 0.0
        %1684 = vmatpush1.msra.mxu0 0.0
        %1685 = vmatprep.subr.mxu0 0.0
        %1686 = vmatpush1.msra.mxu0 0.0
        %1687 = vmatprep.subr.mxu0 0.0
        %1688 = vmatpush1.msra.mxu0 0.0
        %1689 = vmatprep.subr.mxu0 0.0
        %1690 = vmatpush1.msra.mxu0 0.0
        %1691 = vmatprep.subr.mxu0 0.0
        %1692 = vmatpush1.msra.mxu0 0.0
        %1693 = vmatprep.subr.mxu0 0.0
        %1694 = vmatpush1.msra.mxu0 0.0
        %1695 = vmatprep.subr.mxu0 0.0
        %1696 = vmatpush1.msra.mxu0 0.0
        %1697 = vmatprep.subr.mxu0 0.0
        %1698 = vmatpush1.msra.mxu0 0.0
        %1699 = vmatprep.subr.mxu0 0.0
        %1700 = vmatpush1.msra.mxu0 0.0
        %1701 = vmatprep.subr.mxu0 0.0
        %1702 = vmatpush1.msra.mxu0 0.0
        %1703 = vmatprep.subr.mxu0 0.0
        %1704 = vmatpush1.msra.mxu0 0.0
        %1705 = vmatprep.subr.mxu0 0.0
        %1706 = vmatpush1.msra.mxu0 0.0
        %1707 = vmatprep.subr.mxu0 0.0
        %1708 = vmatpush1.msra.mxu0 0.0
        %1709 = vmatprep.subr.mxu0 0.0
        %1710 = vmatpush1.msra.mxu0 0.0
        %1711 = vmatprep.subr.mxu0 0.0
        %1712 = vmatpush1.msra.mxu0 0.0
        %1713 = vmatprep.subr.mxu0 0.0
        %1714 = vmatpush1.msra.mxu0 0.0
        %1715 = vmatprep.subr.mxu0 0.0
        %1716 = vmatpush1.msra.mxu0 0.0
        %1717 = vmatprep.subr.mxu0 0.0
        %1718 = vmatpush1.msra.mxu0 0.0
        %1719 = vmatprep.subr.mxu0 0.0
        %1720 = vmatpush1.msra.mxu0 0.0
        %1721 = vmatprep.subr.mxu0 0.0
        %1722 = vmatpush1.msra.mxu0 0.0
        %1723 = vmatprep.mubr.f32.mxu0 0.0
        %1724 = vmatmul.mubr.f32.gmra.mrb[0].mxu0 %v659
        %v1725 = vpop.f32.mrb[0].mxu0
        %v1726 = vadd.f32 0.0, %v1725
        %v1727 = vpop.f32.mrb[0].mxu0
        %1728 = vmatprep.mubr.f32.mxu0 0.0
        %1729 = vmatmul.mubr.f32.gmra.mrb[0].mxu0 %v662
        %v1730 = vpop.f32.mrb[0].mxu0
        %v1731 = vadd.f32 0.0, %v1730
        %v1732 = vpop.f32.mrb[0].mxu0
        %1733 = vmatprep.mubr.f32.mxu0 0.0
        %1734 = vmatmul.mubr.f32.gmra.mrb[0].mxu0 %v665
        %v1735 = vpop.f32.mrb[0].mxu0
        %v1736 = vadd.f32 0.0, %v1735
        %v1737 = vpop.f32.mrb[0].mxu0
        %1738 = vmatprep.mubr.f32.mxu0 0.0
        %1739 = vmatmul.mubr.f32.gmra.mrb[0].mxu0 %v668
        %v1740 = vpop.f32.mrb[0].mxu0
        %v1741 = vadd.f32 0.0, %v1740
        %v1742 = vpop.f32.mrb[0].mxu0
        %1743 = vmatprep.mubr.f32.mxu0 0.0
        %1744 = vmatmul.mubr.f32.gmra.mrb[0].mxu0 %v671
        %v1745 = vpop.f32.mrb[0].mxu0
        %v1746 = vadd.f32 0.0, %v1745
        %v1747 = vpop.f32.mrb[0].mxu0
        %1748 = vmatprep.mubr.f32.mxu0 0.0
        %1749 = vmatmul.mubr.f32.gmra.mrb[0].mxu0 %v674
        %v1750 = vpop.f32.mrb[0].mxu0
        %v1751 = vadd.f32 0.0, %v1750
        %v1752 = vpop.f32.mrb[0].mxu0
        %1753 = vmatprep.mubr.f32.mxu0 0.0
        %1754 = vmatmul.mubr.f32.gmra.mrb[0].mxu0 %v677
        %v1755 = vpop.f32.mrb[0].mxu0
        %v1756 = vadd.f32 0.0, %v1755
        %v1757 = vpop.f32.mrb[0].mxu0
        %1758 = vmatprep.mubr.f32.mxu0 0.0
        %1759 = vmatmul.mubr.f32.gmra.mrb[0].mxu0 %v680
        %v1760 = vpop.f32.mrb[0].mxu0
        %v1761 = vadd.f32 0.0, %v1760
        %v1762 = vpop.f32.mrb[0].mxu0
        %1763 = vmatprep.mubr.f32.mxu0 0.0
        %1764 = vmatmul.mubr.f32.gmra.mrb[0].mxu0 %v683
        %v1765 = vpop.f32.mrb[0].mxu0
        %v1766 = vadd.f32 0.0, %v1765
        %v1767 = vpop.f32.mrb[0].mxu0
        %1768 = vmatprep.mubr.f32.mxu0 0.0
        %1769 = vmatmul.mubr.f32.gmra.mrb[0].mxu0 %v686
        %v1770 = vpop.f32.mrb[0].mxu0
        %v1771 = vadd.f32 0.0, %v1770
        %v1772 = vpop.f32.mrb[0].mxu0
        %1773 = vmatprep.mubr.f32.mxu0 0.0
        %1774 = vmatmul.mubr.f32.gmra.mrb[0].mxu0 %v689
        %v1775 = vpop.f32.mrb[0].mxu0
        %v1776 = vadd.f32 0.0, %v1775
        %v1777 = vpop.f32.mrb[0].mxu0
        %1778 = vmatprep.mubr.f32.mxu0 0.0
        %1779 = vmatmul.mubr.f32.gmra.mrb[0].mxu0 %v692
        %v1780 = vpop.f32.mrb[0].mxu0
        %v1781 = vadd.f32 0.0, %v1780
        %v1782 = vpop.f32.mrb[0].mxu0
        %1783 = vmatprep.mubr.f32.mxu0 0.0
        %1784 = vmatmul.mubr.f32.gmra.mrb[0].mxu0 %v695
        %v1785 = vpop.f32.mrb[0].mxu0
        %v1786 = vadd.f32 0.0, %v1785
        %v1787 = vpop.f32.mrb[0].mxu0
        %1788 = vmatprep.mubr.f32.mxu0 0.0
        %1789 = vmatmul.mubr.f32.gmra.mrb[0].mxu0 %v698
        %v1790 = vpop.f32.mrb[0].mxu0
        %v1791 = vadd.f32 0.0, %v1790
        %v1792 = vpop.f32.mrb[0].mxu0
        %1793 = vmatprep.mubr.f32.mxu0 0.0
        %1794 = vmatmul.mubr.f32.gmra.mrb[0].mxu0 %v701
        %v1795 = vpop.f32.mrb[0].mxu0
        %v1796 = vadd.f32 0.0, %v1795
        %v1797 = vpop.f32.mrb[0].mxu0
        %1798 = vmatprep.mubr.f32.mxu0 0.0
        %1799 = vmatmul.mubr.f32.gmra.mrb[0].mxu0 %v704
        %v1800 = vpop.f32.mrb[0].mxu0
        %v1801 = vadd.f32 0.0, %v1800
        %v1802 = vpop.f32.mrb[0].mxu0
        %1803 = vmatprep.mubr.f32.mxu0 0.0
        %1804 = vmatmul.mubr.f32.gmra.mrb[0].mxu0 %v707
        %v1805 = vpop.f32.mrb[0].mxu0
        %v1806 = vadd.f32 0.0, %v1805
        %v1807 = vpop.f32.mrb[0].mxu0
        %1808 = vmatprep.mubr.f32.mxu0 0.0
        %1809 = vmatmul.mubr.f32.gmra.mrb[0].mxu0 %v710
        %v1810 = vpop.f32.mrb[0].mxu0
        %v1811 = vadd.f32 0.0, %v1810
        %v1812 = vpop.f32.mrb[0].mxu0
        %1813 = vmatprep.mubr.f32.mxu0 0.0
        %1814 = vmatmul.mubr.f32.gmra.mrb[0].mxu0 %v713
        %v1815 = vpop.f32.mrb[0].mxu0
        %v1816 = vadd.f32 0.0, %v1815
        %v1817 = vpop.f32.mrb[0].mxu0
        %1818 = vmatprep.mubr.f32.mxu0 0.0
        %1819 = vmatmul.mubr.f32.gmra.mrb[0].mxu0 %v716
        %v1820 = vpop.f32.mrb[0].mxu0
        %v1821 = vadd.f32 0.0, %v1820
        %v1822 = vpop.f32.mrb[0].mxu0
        %1823 = vmatprep.mubr.f32.mxu0 0.0
        %1824 = vmatmul.mubr.f32.gmra.mrb[0].mxu0 %v1645
        %v1825 = vpop.f32.mrb[0].mxu0
        %v1826 = vadd.f32 0.0, %v1825
        %v1827 = vpop.f32.mrb[0].mxu0
        %1828 = vmatprep.mubr.f32.mxu0 0.0
        %1829 = vmatmul.mubr.f32.gmra.mrb[0].mxu0 %v1648
        %v1830 = vpop.f32.mrb[0].mxu0
        %v1831 = vadd.f32 0.0, %v1830
        %v1832 = vpop.f32.mrb[0].mxu0
        %1833 = vmatprep.mubr.f32.mxu0 0.0
        %1834 = vmatmul.mubr.f32.gmra.mrb[0].mxu0 %v1651
        %v1835 = vpop.f32.mrb[0].mxu0
        %v1836 = vadd.f32 0.0, %v1835
        %v1837 = vpop.f32.mrb[0].mxu0
        %1838 = vmatprep.mubr.f32.mxu0 0.0
        %1839 = vmatmul.mubr.f32.gmra.mrb[0].mxu0 %v1654
        %v1840 = vpop.f32.mrb[0].mxu0
        %v1841 = vadd.f32 0.0, %v1840
        %v1842 = vpop.f32.mrb[0].mxu0
        %1843 = vdwg.mxu0
        %v1844 = vld [vmem:[#allocation2] sm:$0xff]
        %v1845 = vld [vmem:[#allocation2 + $0x8] sm:$0xff]
        %v1846 = vld [vmem:[#allocation2 + $0x10] sm:$0xff]
        %v1847 = vld [vmem:[#allocation2 + $0x18] sm:$0xff]
        %v1848 = vld [vmem:[#allocation2 + $0x20] sm:$0xff]
        %v1849 = vld [vmem:[#allocation2 + $0x28] sm:$0xff]
        %v1850 = vld [vmem:[#allocation2 + $0x30] sm:$0xff]
        %v1851 = vld [vmem:[#allocation2 + $0x38] sm:$0xff]
        %v1852 = vld [vmem:[#allocation2 + $0x40] sm:$0xff]
        %v1853 = vld [vmem:[#allocation2 + $0x48] sm:$0xff]
        %v1854 = vld [vmem:[#allocation2 + $0x50] sm:$0xff]
        %v1855 = vld [vmem:[#allocation2 + $0x58] sm:$0xff]
        %v1856 = vld [vmem:[#allocation2 + $0x60] sm:$0xff]
        %v1857 = vld [vmem:[#allocation2 + $0x68] sm:$0xff]
        %v1858 = vld [vmem:[#allocation2 + $0x70] sm:$0xff]
        %v1859 = vld [vmem:[#allocation2 + $0x78] sm:$0xff]
        %v1860 = vld [vmem:[#allocation2 + $0x80] sm:$0xff]
        %v1861 = vld [vmem:[#allocation2 + $0x88] sm:$0xff]
        %v1862 = vld [vmem:[#allocation2 + $0x90] sm:$0xff]
        %v1863 = vld [vmem:[#allocation2 + $0x98] sm:$0xff]
        %v1864 = vld [vmem:[#allocation2 + $0xa0] sm:$0xff]
        %v1865 = vld [vmem:[#allocation2 + $0xa8] sm:$0xff]
        %v1866 = vld [vmem:[#allocation2 + $0xb0] sm:$0xff]
        %v1867 = vld [vmem:[#allocation2 + $0xb8] sm:$0xff]
        %v1868 = vadd.f32 %v1844, %v1726
        %v1869 = vadd.f32 %v1845, %v1731
        %v1870 = vadd.f32 %v1846, %v1736
        %v1871 = vadd.f32 %v1847, %v1741
        %v1872 = vadd.f32 %v1848, %v1746
        %v1873 = vadd.f32 %v1849, %v1751
        %v1874 = vadd.f32 %v1850, %v1756
        %v1875 = vadd.f32 %v1851, %v1761
        %v1876 = vadd.f32 %v1852, %v1766
        %v1877 = vadd.f32 %v1853, %v1771
        %v1878 = vadd.f32 %v1854, %v1776
        %v1879 = vadd.f32 %v1855, %v1781
        %v1880 = vadd.f32 %v1856, %v1786
        %v1881 = vadd.f32 %v1857, %v1791
        %v1882 = vadd.f32 %v1858, %v1796
        %v1883 = vadd.f32 %v1859, %v1801
        %v1884 = vadd.f32 %v1860, %v1806
        %v1885 = vadd.f32 %v1861, %v1811
        %v1886 = vadd.f32 %v1862, %v1816
        %v1887 = vadd.f32 %v1863, %v1821
        %v1888 = vadd.f32 %v1864, %v1826
        %v1889 = vadd.f32 %v1865, %v1831
        %v1890 = vadd.f32 %v1866, %v1836
        %v1891 = vadd.f32 %v1867, %v1841
        %1892 = vst [vmem:[#allocation2] sm:$0xff] %v1868
        %1893 = vst [vmem:[#allocation2 + $0x8] sm:$0xff] %v1869
        %1894 = vst [vmem:[#allocation2 + $0x10] sm:$0xff] %v1870
        %1895 = vst [vmem:[#allocation2 + $0x18] sm:$0xff] %v1871
        %1896 = vst [vmem:[#allocation2 + $0x20] sm:$0xff] %v1872
        %1897 = vst [vmem:[#allocation2 + $0x28] sm:$0xff] %v1873
        %1898 = vst [vmem:[#allocation2 + $0x30] sm:$0xff] %v1874
        %1899 = vst [vmem:[#allocation2 + $0x38] sm:$0xff] %v1875
        %1900 = vst [vmem:[#allocation2 + $0x40] sm:$0xff] %v1876
        %1901 = vst [vmem:[#allocation2 + $0x48] sm:$0xff] %v1877
        %1902 = vst [vmem:[#allocation2 + $0x50] sm:$0xff] %v1878
        %1903 = vst [vmem:[#allocation2 + $0x58] sm:$0xff] %v1879
        %1904 = vst [vmem:[#allocation2 + $0x60] sm:$0xff] %v1880
        %1905 = vst [vmem:[#allocation2 + $0x68] sm:$0xff] %v1881
        %1906 = vst [vmem:[#allocation2 + $0x70] sm:$0xff] %v1882
        %1907 = vst [vmem:[#allocation2 + $0x78] sm:$0xff] %v1883
        %1908 = vst [vmem:[#allocation2 + $0x80] sm:$0xff] %v1884
        %1909 = vst [vmem:[#allocation2 + $0x88] sm:$0xff] %v1885
        %1910 = vst [vmem:[#allocation2 + $0x90] sm:$0xff] %v1886
        %1911 = vst [vmem:[#allocation2 + $0x98] sm:$0xff] %v1887
        %1912 = vst [vmem:[#allocation2 + $0xa0] sm:$0xff] %v1888
        %1913 = vst [vmem:[#allocation2 + $0xa8] sm:$0xff] %v1889
        %1914 = vst [vmem:[#allocation2 + $0xb0] sm:$0xff] %v1890
        %1915 = vst [vmem:[#allocation2 + $0xb8] sm:$0xff] %v1891
        %v1916 = vrot.slane %v303, 2
        %v1917 = vrot.slane %v304, 2
        %v1918 = vrot.slane %v305, 2
        %v1919 = vsel %vm1005, %v1917, %v1918
        %v1920 = vsel %vm1005, %v1916, %v1917
        %v1921 = vsel %vm1005, %v1004, %v1916
        %v1922 = vsel %vm1005, %v1918, %v984
        %s1923 = scalar_lea.vmem %s271, 20
        %v1924 = vld [vmem:[%s1923] sm:$0xf]
        %v1926 = vsel %vm310, %v1921, 0
        %v1929 = vsel %vm310, %v1920, 0
        %v1932 = vsel %vm310, %v1919, 0
        %v1935 = vsel %vm310, %v1922, 0
        %v1938 = vsel %vm383, %v1924, 0
        %1940 = vmatprep.subr.mxu0 0.0
        %1941 = vmatpush1.msra.mxu0 %v1938
        %1942 = vmatprep.subr.mxu0 0.0
        %1943 = vmatpush1.msra.mxu0 0.0
        %1944 = vmatprep.subr.mxu0 0.0
        %1945 = vmatpush1.msra.mxu0 0.0
        %1946 = vmatprep.subr.mxu0 0.0
        %1947 = vmatpush1.msra.mxu0 0.0
        %1948 = vmatprep.subr.mxu0 0.0
        %1949 = vmatpush1.msra.mxu0 0.0
        %1950 = vmatprep.subr.mxu0 0.0
        %1951 = vmatpush1.msra.mxu0 0.0
        %1952 = vmatprep.subr.mxu0 0.0
        %1953 = vmatpush1.msra.mxu0 0.0
        %1954 = vmatprep.subr.mxu0 0.0
        %1955 = vmatpush1.msra.mxu0 0.0
        %1956 = vmatprep.subr.mxu0 0.0
        %1957 = vmatpush1.msra.mxu0 0.0
        %1958 = vmatprep.subr.mxu0 0.0
        %1959 = vmatpush1.msra.mxu0 0.0
        %1960 = vmatprep.subr.mxu0 0.0
        %1961 = vmatpush1.msra.mxu0 0.0
        %1962 = vmatprep.subr.mxu0 0.0
        %1963 = vmatpush1.msra.mxu0 0.0
        %1964 = vmatprep.subr.mxu0 0.0
        %1965 = vmatpush1.msra.mxu0 0.0
        %1966 = vmatprep.subr.mxu0 0.0
        %1967 = vmatpush1.msra.mxu0 0.0
        %1968 = vmatprep.subr.mxu0 0.0
        %1969 = vmatpush1.msra.mxu0 0.0
        %1970 = vmatprep.subr.mxu0 0.0
        %1971 = vmatpush1.msra.mxu0 0.0
        %1972 = vmatprep.subr.mxu0 0.0
        %1973 = vmatpush1.msra.mxu0 0.0
        %1974 = vmatprep.subr.mxu0 0.0
        %1975 = vmatpush1.msra.mxu0 0.0
        %1976 = vmatprep.subr.mxu0 0.0
        %1977 = vmatpush1.msra.mxu0 0.0
        %1978 = vmatprep.subr.mxu0 0.0
        %1979 = vmatpush1.msra.mxu0 0.0
        %1980 = vmatprep.subr.mxu0 0.0
        %1981 = vmatpush1.msra.mxu0 0.0
        %1982 = vmatprep.subr.mxu0 0.0
        %1983 = vmatpush1.msra.mxu0 0.0
        %1984 = vmatprep.subr.mxu0 0.0
        %1985 = vmatpush1.msra.mxu0 0.0
        %1986 = vmatprep.subr.mxu0 0.0
        %1987 = vmatpush1.msra.mxu0 0.0
        %1988 = vmatprep.subr.mxu0 0.0
        %1989 = vmatpush1.msra.mxu0 0.0
        %1990 = vmatprep.subr.mxu0 0.0
        %1991 = vmatpush1.msra.mxu0 0.0
        %1992 = vmatprep.subr.mxu0 0.0
        %1993 = vmatpush1.msra.mxu0 0.0
        %1994 = vmatprep.subr.mxu0 0.0
        %1995 = vmatpush1.msra.mxu0 0.0
        %1996 = vmatprep.subr.mxu0 0.0
        %1997 = vmatpush1.msra.mxu0 0.0
        %1998 = vmatprep.subr.mxu0 0.0
        %1999 = vmatpush1.msra.mxu0 0.0
        %2000 = vmatprep.subr.mxu0 0.0
        %2001 = vmatpush1.msra.mxu0 0.0
        %2002 = vmatprep.subr.mxu0 0.0
        %2003 = vmatpush1.msra.mxu0 0.0
        %2004 = vmatprep.mubr.f32.mxu0 0.0
        %2005 = vmatmul.mubr.f32.gmra.mrb[0].mxu0 %v1042
        %v2006 = vpop.f32.mrb[0].mxu0
        %v2007 = vadd.f32 0.0, %v2006
        %v2008 = vpop.f32.mrb[0].mxu0
        %2009 = vmatprep.mubr.f32.mxu0 0.0
        %2010 = vmatmul.mubr.f32.gmra.mrb[0].mxu0 %v1045
        %v2011 = vpop.f32.mrb[0].mxu0
        %v2012 = vadd.f32 0.0, %v2011
        %v2013 = vpop.f32.mrb[0].mxu0
        %2014 = vmatprep.mubr.f32.mxu0 0.0
        %2015 = vmatmul.mubr.f32.gmra.mrb[0].mxu0 %v1048
        %v2016 = vpop.f32.mrb[0].mxu0
        %v2017 = vadd.f32 0.0, %v2016
        %v2018 = vpop.f32.mrb[0].mxu0
        %2019 = vmatprep.mubr.f32.mxu0 0.0
        %2020 = vmatmul.mubr.f32.gmra.mrb[0].mxu0 %v1051
        %v2021 = vpop.f32.mrb[0].mxu0
        %v2022 = vadd.f32 0.0, %v2021
        %v2023 = vpop.f32.mrb[0].mxu0
        %2024 = vmatprep.mubr.f32.mxu0 0.0
        %2025 = vmatmul.mubr.f32.gmra.mrb[0].mxu0 %v1054
        %v2026 = vpop.f32.mrb[0].mxu0
        %v2027 = vadd.f32 0.0, %v2026
        %v2028 = vpop.f32.mrb[0].mxu0
        %2029 = vmatprep.mubr.f32.mxu0 0.0
        %2030 = vmatmul.mubr.f32.gmra.mrb[0].mxu0 %v1057
        %v2031 = vpop.f32.mrb[0].mxu0
        %v2032 = vadd.f32 0.0, %v2031
        %v2033 = vpop.f32.mrb[0].mxu0
        %2034 = vmatprep.mubr.f32.mxu0 0.0
        %2035 = vmatmul.mubr.f32.gmra.mrb[0].mxu0 %v1060
        %v2036 = vpop.f32.mrb[0].mxu0
        %v2037 = vadd.f32 0.0, %v2036
        %v2038 = vpop.f32.mrb[0].mxu0
        %2039 = vmatprep.mubr.f32.mxu0 0.0
        %2040 = vmatmul.mubr.f32.gmra.mrb[0].mxu0 %v1063
        %v2041 = vpop.f32.mrb[0].mxu0
        %v2042 = vadd.f32 0.0, %v2041
        %v2043 = vpop.f32.mrb[0].mxu0
        %2044 = vmatprep.mubr.f32.mxu0 0.0
        %2045 = vmatmul.mubr.f32.gmra.mrb[0].mxu0 %v1066
        %v2046 = vpop.f32.mrb[0].mxu0
        %v2047 = vadd.f32 0.0, %v2046
        %v2048 = vpop.f32.mrb[0].mxu0
        %2049 = vmatprep.mubr.f32.mxu0 0.0
        %2050 = vmatmul.mubr.f32.gmra.mrb[0].mxu0 %v1069
        %v2051 = vpop.f32.mrb[0].mxu0
        %v2052 = vadd.f32 0.0, %v2051
        %v2053 = vpop.f32.mrb[0].mxu0
        %2054 = vmatprep.mubr.f32.mxu0 0.0
        %2055 = vmatmul.mubr.f32.gmra.mrb[0].mxu0 %v1072
        %v2056 = vpop.f32.mrb[0].mxu0
        %v2057 = vadd.f32 0.0, %v2056
        %v2058 = vpop.f32.mrb[0].mxu0
        %2059 = vmatprep.mubr.f32.mxu0 0.0
        %2060 = vmatmul.mubr.f32.gmra.mrb[0].mxu0 %v1075
        %v2061 = vpop.f32.mrb[0].mxu0
        %v2062 = vadd.f32 0.0, %v2061
        %v2063 = vpop.f32.mrb[0].mxu0
        %2064 = vmatprep.mubr.f32.mxu0 0.0
        %2065 = vmatmul.mubr.f32.gmra.mrb[0].mxu0 %v1078
        %v2066 = vpop.f32.mrb[0].mxu0
        %v2067 = vadd.f32 0.0, %v2066
        %v2068 = vpop.f32.mrb[0].mxu0
        %2069 = vmatprep.mubr.f32.mxu0 0.0
        %2070 = vmatmul.mubr.f32.gmra.mrb[0].mxu0 %v1081
        %v2071 = vpop.f32.mrb[0].mxu0
        %v2072 = vadd.f32 0.0, %v2071
        %v2073 = vpop.f32.mrb[0].mxu0
        %2074 = vmatprep.mubr.f32.mxu0 0.0
        %2075 = vmatmul.mubr.f32.gmra.mrb[0].mxu0 %v1084
        %v2076 = vpop.f32.mrb[0].mxu0
        %v2077 = vadd.f32 0.0, %v2076
        %v2078 = vpop.f32.mrb[0].mxu0
        %2079 = vmatprep.mubr.f32.mxu0 0.0
        %2080 = vmatmul.mubr.f32.gmra.mrb[0].mxu0 %v1087
        %v2081 = vpop.f32.mrb[0].mxu0
        %v2082 = vadd.f32 0.0, %v2081
        %v2083 = vpop.f32.mrb[0].mxu0
        %2084 = vmatprep.mubr.f32.mxu0 0.0
        %2085 = vmatmul.mubr.f32.gmra.mrb[0].mxu0 %v1090
        %v2086 = vpop.f32.mrb[0].mxu0
        %v2087 = vadd.f32 0.0, %v2086
        %v2088 = vpop.f32.mrb[0].mxu0
        %2089 = vmatprep.mubr.f32.mxu0 0.0
        %2090 = vmatmul.mubr.f32.gmra.mrb[0].mxu0 %v1093
        %v2091 = vpop.f32.mrb[0].mxu0
        %v2092 = vadd.f32 0.0, %v2091
        %v2093 = vpop.f32.mrb[0].mxu0
        %2094 = vmatprep.mubr.f32.mxu0 0.0
        %2095 = vmatmul.mubr.f32.gmra.mrb[0].mxu0 %v1096
        %v2096 = vpop.f32.mrb[0].mxu0
        %v2097 = vadd.f32 0.0, %v2096
        %v2098 = vpop.f32.mrb[0].mxu0
        %2099 = vmatprep.mubr.f32.mxu0 0.0
        %2100 = vmatmul.mubr.f32.gmra.mrb[0].mxu0 %v1099
        %v2101 = vpop.f32.mrb[0].mxu0
        %v2102 = vadd.f32 0.0, %v2101
        %v2103 = vpop.f32.mrb[0].mxu0
        %2104 = vmatprep.mubr.f32.mxu0 0.0
        %2105 = vmatmul.mubr.f32.gmra.mrb[0].mxu0 %v1926
        %v2106 = vpop.f32.mrb[0].mxu0
        %v2107 = vadd.f32 0.0, %v2106
        %v2108 = vpop.f32.mrb[0].mxu0
        %2109 = vmatprep.mubr.f32.mxu0 0.0
        %2110 = vmatmul.mubr.f32.gmra.mrb[0].mxu0 %v1929
        %v2111 = vpop.f32.mrb[0].mxu0
        %v2112 = vadd.f32 0.0, %v2111
        %v2113 = vpop.f32.mrb[0].mxu0
        %2114 = vmatprep.mubr.f32.mxu0 0.0
        %2115 = vmatmul.mubr.f32.gmra.mrb[0].mxu0 %v1932
        %v2116 = vpop.f32.mrb[0].mxu0
        %v2117 = vadd.f32 0.0, %v2116
        %v2118 = vpop.f32.mrb[0].mxu0
        %2119 = vmatprep.mubr.f32.mxu0 0.0
        %2120 = vmatmul.mubr.f32.gmra.mrb[0].mxu0 %v1935
        %v2121 = vpop.f32.mrb[0].mxu0
        %v2122 = vadd.f32 0.0, %v2121
        %v2123 = vpop.f32.mrb[0].mxu0
        %2124 = vdwg.mxu0
        %v2125 = vld [vmem:[#allocation2] sm:$0xff]
        %v2126 = vld [vmem:[#allocation2 + $0x8] sm:$0xff]
        %v2127 = vld [vmem:[#allocation2 + $0x10] sm:$0xff]
        %v2128 = vld [vmem:[#allocation2 + $0x18] sm:$0xff]
        %v2129 = vld [vmem:[#allocation2 + $0x20] sm:$0xff]
        %v2130 = vld [vmem:[#allocation2 + $0x28] sm:$0xff]
        %v2131 = vld [vmem:[#allocation2 + $0x30] sm:$0xff]
        %v2132 = vld [vmem:[#allocation2 + $0x38] sm:$0xff]
        %v2133 = vld [vmem:[#allocation2 + $0x40] sm:$0xff]
        %v2134 = vld [vmem:[#allocation2 + $0x48] sm:$0xff]
        %v2135 = vld [vmem:[#allocation2 + $0x50] sm:$0xff]
        %v2136 = vld [vmem:[#allocation2 + $0x58] sm:$0xff]
        %v2137 = vld [vmem:[#allocation2 + $0x60] sm:$0xff]
        %v2138 = vld [vmem:[#allocation2 + $0x68] sm:$0xff]
        %v2139 = vld [vmem:[#allocation2 + $0x70] sm:$0xff]
        %v2140 = vld [vmem:[#allocation2 + $0x78] sm:$0xff]
        %v2141 = vld [vmem:[#allocation2 + $0x80] sm:$0xff]
        %v2142 = vld [vmem:[#allocation2 + $0x88] sm:$0xff]
        %v2143 = vld [vmem:[#allocation2 + $0x90] sm:$0xff]
        %v2144 = vld [vmem:[#allocation2 + $0x98] sm:$0xff]
        %v2145 = vld [vmem:[#allocation2 + $0xa0] sm:$0xff]
        %v2146 = vld [vmem:[#allocation2 + $0xa8] sm:$0xff]
        %v2147 = vld [vmem:[#allocation2 + $0xb0] sm:$0xff]
        %v2148 = vld [vmem:[#allocation2 + $0xb8] sm:$0xff]
        %v2149 = vadd.f32 %v2125, %v2007
        %v2150 = vadd.f32 %v2126, %v2012
        %v2151 = vadd.f32 %v2127, %v2017
        %v2152 = vadd.f32 %v2128, %v2022
        %v2153 = vadd.f32 %v2129, %v2027
        %v2154 = vadd.f32 %v2130, %v2032
        %v2155 = vadd.f32 %v2131, %v2037
        %v2156 = vadd.f32 %v2132, %v2042
        %v2157 = vadd.f32 %v2133, %v2047
        %v2158 = vadd.f32 %v2134, %v2052
        %v2159 = vadd.f32 %v2135, %v2057
        %v2160 = vadd.f32 %v2136, %v2062
        %v2161 = vadd.f32 %v2137, %v2067
        %v2162 = vadd.f32 %v2138, %v2072
        %v2163 = vadd.f32 %v2139, %v2077
        %v2164 = vadd.f32 %v2140, %v2082
        %v2165 = vadd.f32 %v2141, %v2087
        %v2166 = vadd.f32 %v2142, %v2092
        %v2167 = vadd.f32 %v2143, %v2097
        %v2168 = vadd.f32 %v2144, %v2102
        %v2169 = vadd.f32 %v2145, %v2107
        %v2170 = vadd.f32 %v2146, %v2112
        %v2171 = vadd.f32 %v2147, %v2117
        %v2172 = vadd.f32 %v2148, %v2122
        %2173 = vst [vmem:[#allocation2] sm:$0xff] %v2149
        %2174 = vst [vmem:[#allocation2 + $0x8] sm:$0xff] %v2150
        %2175 = vst [vmem:[#allocation2 + $0x10] sm:$0xff] %v2151
        %2176 = vst [vmem:[#allocation2 + $0x18] sm:$0xff] %v2152
        %2177 = vst [vmem:[#allocation2 + $0x20] sm:$0xff] %v2153
        %2178 = vst [vmem:[#allocation2 + $0x28] sm:$0xff] %v2154
        %2179 = vst [vmem:[#allocation2 + $0x30] sm:$0xff] %v2155
        %2180 = vst [vmem:[#allocation2 + $0x38] sm:$0xff] %v2156
        %2181 = vst [vmem:[#allocation2 + $0x40] sm:$0xff] %v2157
        %2182 = vst [vmem:[#allocation2 + $0x48] sm:$0xff] %v2158
        %2183 = vst [vmem:[#allocation2 + $0x50] sm:$0xff] %v2159
        %2184 = vst [vmem:[#allocation2 + $0x58] sm:$0xff] %v2160
        %2185 = vst [vmem:[#allocation2 + $0x60] sm:$0xff] %v2161
        %2186 = vst [vmem:[#allocation2 + $0x68] sm:$0xff] %v2162
        %2187 = vst [vmem:[#allocation2 + $0x70] sm:$0xff] %v2163
        %2188 = vst [vmem:[#allocation2 + $0x78] sm:$0xff] %v2164
        %2189 = vst [vmem:[#allocation2 + $0x80] sm:$0xff] %v2165
        %2190 = vst [vmem:[#allocation2 + $0x88] sm:$0xff] %v2166
        %2191 = vst [vmem:[#allocation2 + $0x90] sm:$0xff] %v2167
        %2192 = vst [vmem:[#allocation2 + $0x98] sm:$0xff] %v2168
        %2193 = vst [vmem:[#allocation2 + $0xa0] sm:$0xff] %v2169
        %2194 = vst [vmem:[#allocation2 + $0xa8] sm:$0xff] %v2170
        %2195 = vst [vmem:[#allocation2 + $0xb0] sm:$0xff] %v2171
        %2196 = vst [vmem:[#allocation2 + $0xb8] sm:$0xff] %v2172
        %s2197 = scalar_lea.vmem %s271, 24
        %v2198 = vld [vmem:[%s2197] sm:$0xf]
        %v2200 = vsel %vm310, %v306, 0
        %v2203 = vsel %vm310, %v307, 0
        %v2206 = vsel %vm310, %v308, 0
        %v2209 = vsel %vm383, %v2198, 0
        %2211 = vmatprep.subr.mxu0 0.0
        %2212 = vmatpush1.msra.mxu0 %v2209
        %2213 = vmatprep.subr.mxu0 0.0
        %2214 = vmatpush1.msra.mxu0 0.0
        %2215 = vmatprep.subr.mxu0 0.0
        %2216 = vmatpush1.msra.mxu0 0.0
        %2217 = vmatprep.subr.mxu0 0.0
        %2218 = vmatpush1.msra.mxu0 0.0
        %2219 = vmatprep.subr.mxu0 0.0
        %2220 = vmatpush1.msra.mxu0 0.0
        %2221 = vmatprep.subr.mxu0 0.0
        %2222 = vmatpush1.msra.mxu0 0.0
        %2223 = vmatprep.subr.mxu0 0.0
        %2224 = vmatpush1.msra.mxu0 0.0
        %2225 = vmatprep.subr.mxu0 0.0
        %2226 = vmatpush1.msra.mxu0 0.0
        %2227 = vmatprep.subr.mxu0 0.0
        %2228 = vmatpush1.msra.mxu0 0.0
        %2229 = vmatprep.subr.mxu0 0.0
        %2230 = vmatpush1.msra.mxu0 0.0
        %2231 = vmatprep.subr.mxu0 0.0
        %2232 = vmatpush1.msra.mxu0 0.0
        %2233 = vmatprep.subr.mxu0 0.0
        %2234 = vmatpush1.msra.mxu0 0.0
        %2235 = vmatprep.subr.mxu0 0.0
        %2236 = vmatpush1.msra.mxu0 0.0
        %2237 = vmatprep.subr.mxu0 0.0
        %2238 = vmatpush1.msra.mxu0 0.0
        %2239 = vmatprep.subr.mxu0 0.0
        %2240 = vmatpush1.msra.mxu0 0.0
        %2241 = vmatprep.subr.mxu0 0.0
        %2242 = vmatpush1.msra.mxu0 0.0
        %2243 = vmatprep.subr.mxu0 0.0
        %2244 = vmatpush1.msra.mxu0 0.0
        %2245 = vmatprep.subr.mxu0 0.0
        %2246 = vmatpush1.msra.mxu0 0.0
        %2247 = vmatprep.subr.mxu0 0.0
        %2248 = vmatpush1.msra.mxu0 0.0
        %2249 = vmatprep.subr.mxu0 0.0
        %2250 = vmatpush1.msra.mxu0 0.0
        %2251 = vmatprep.subr.mxu0 0.0
        %2252 = vmatpush1.msra.mxu0 0.0
        %2253 = vmatprep.subr.mxu0 0.0
        %2254 = vmatpush1.msra.mxu0 0.0
        %2255 = vmatprep.subr.mxu0 0.0
        %2256 = vmatpush1.msra.mxu0 0.0
        %2257 = vmatprep.subr.mxu0 0.0
        %2258 = vmatpush1.msra.mxu0 0.0
        %2259 = vmatprep.subr.mxu0 0.0
        %2260 = vmatpush1.msra.mxu0 0.0
        %2261 = vmatprep.subr.mxu0 0.0
        %2262 = vmatpush1.msra.mxu0 0.0
        %2263 = vmatprep.subr.mxu0 0.0
        %2264 = vmatpush1.msra.mxu0 0.0
        %2265 = vmatprep.subr.mxu0 0.0
        %2266 = vmatpush1.msra.mxu0 0.0
        %2267 = vmatprep.subr.mxu0 0.0
        %2268 = vmatpush1.msra.mxu0 0.0
        %2269 = vmatprep.subr.mxu0 0.0
        %2270 = vmatpush1.msra.mxu0 0.0
        %2271 = vmatprep.subr.mxu0 0.0
        %2272 = vmatpush1.msra.mxu0 0.0
        %2273 = vmatprep.subr.mxu0 0.0
        %2274 = vmatpush1.msra.mxu0 0.0
        %2275 = vmatprep.mubr.f32.mxu0 0.0
        %2276 = vmatmul.mubr.f32.gmra.mrb[0].mxu0 %v330
        %v2277 = vpop.f32.mrb[0].mxu0
        %v2278 = vadd.f32 0.0, %v2277
        %v2279 = vpop.f32.mrb[0].mxu0
        %2280 = vmatprep.mubr.f32.mxu0 0.0
        %2281 = vmatmul.mubr.f32.gmra.mrb[0].mxu0 %v333
        %v2282 = vpop.f32.mrb[0].mxu0
        %v2283 = vadd.f32 0.0, %v2282
        %v2284 = vpop.f32.mrb[0].mxu0
        %2285 = vmatprep.mubr.f32.mxu0 0.0
        %2286 = vmatmul.mubr.f32.gmra.mrb[0].mxu0 %v336
        %v2287 = vpop.f32.mrb[0].mxu0
        %v2288 = vadd.f32 0.0, %v2287
        %v2289 = vpop.f32.mrb[0].mxu0
        %2290 = vmatprep.mubr.f32.mxu0 0.0
        %2291 = vmatmul.mubr.f32.gmra.mrb[0].mxu0 %v339
        %v2292 = vpop.f32.mrb[0].mxu0
        %v2293 = vadd.f32 0.0, %v2292
        %v2294 = vpop.f32.mrb[0].mxu0
        %2295 = vmatprep.mubr.f32.mxu0 0.0
        %2296 = vmatmul.mubr.f32.gmra.mrb[0].mxu0 %v342
        %v2297 = vpop.f32.mrb[0].mxu0
        %v2298 = vadd.f32 0.0, %v2297
        %v2299 = vpop.f32.mrb[0].mxu0
        %2300 = vmatprep.mubr.f32.mxu0 0.0
        %2301 = vmatmul.mubr.f32.gmra.mrb[0].mxu0 %v345
        %v2302 = vpop.f32.mrb[0].mxu0
        %v2303 = vadd.f32 0.0, %v2302
        %v2304 = vpop.f32.mrb[0].mxu0
        %2305 = vmatprep.mubr.f32.mxu0 0.0
        %2306 = vmatmul.mubr.f32.gmra.mrb[0].mxu0 %v348
        %v2307 = vpop.f32.mrb[0].mxu0
        %v2308 = vadd.f32 0.0, %v2307
        %v2309 = vpop.f32.mrb[0].mxu0
        %2310 = vmatprep.mubr.f32.mxu0 0.0
        %2311 = vmatmul.mubr.f32.gmra.mrb[0].mxu0 %v351
        %v2312 = vpop.f32.mrb[0].mxu0
        %v2313 = vadd.f32 0.0, %v2312
        %v2314 = vpop.f32.mrb[0].mxu0
        %2315 = vmatprep.mubr.f32.mxu0 0.0
        %2316 = vmatmul.mubr.f32.gmra.mrb[0].mxu0 %v354
        %v2317 = vpop.f32.mrb[0].mxu0
        %v2318 = vadd.f32 0.0, %v2317
        %v2319 = vpop.f32.mrb[0].mxu0
        %2320 = vmatprep.mubr.f32.mxu0 0.0
        %2321 = vmatmul.mubr.f32.gmra.mrb[0].mxu0 %v357
        %v2322 = vpop.f32.mrb[0].mxu0
        %v2323 = vadd.f32 0.0, %v2322
        %v2324 = vpop.f32.mrb[0].mxu0
        %2325 = vmatprep.mubr.f32.mxu0 0.0
        %2326 = vmatmul.mubr.f32.gmra.mrb[0].mxu0 %v360
        %v2327 = vpop.f32.mrb[0].mxu0
        %v2328 = vadd.f32 0.0, %v2327
        %v2329 = vpop.f32.mrb[0].mxu0
        %2330 = vmatprep.mubr.f32.mxu0 0.0
        %2331 = vmatmul.mubr.f32.gmra.mrb[0].mxu0 %v363
        %v2332 = vpop.f32.mrb[0].mxu0
        %v2333 = vadd.f32 0.0, %v2332
        %v2334 = vpop.f32.mrb[0].mxu0
        %2335 = vmatprep.mubr.f32.mxu0 0.0
        %2336 = vmatmul.mubr.f32.gmra.mrb[0].mxu0 %v366
        %v2337 = vpop.f32.mrb[0].mxu0
        %v2338 = vadd.f32 0.0, %v2337
        %v2339 = vpop.f32.mrb[0].mxu0
        %2340 = vmatprep.mubr.f32.mxu0 0.0
        %2341 = vmatmul.mubr.f32.gmra.mrb[0].mxu0 %v369
        %v2342 = vpop.f32.mrb[0].mxu0
        %v2343 = vadd.f32 0.0, %v2342
        %v2344 = vpop.f32.mrb[0].mxu0
        %2345 = vmatprep.mubr.f32.mxu0 0.0
        %2346 = vmatmul.mubr.f32.gmra.mrb[0].mxu0 %v372
        %v2347 = vpop.f32.mrb[0].mxu0
        %v2348 = vadd.f32 0.0, %v2347
        %v2349 = vpop.f32.mrb[0].mxu0
        %2350 = vmatprep.mubr.f32.mxu0 0.0
        %2351 = vmatmul.mubr.f32.gmra.mrb[0].mxu0 %v375
        %v2352 = vpop.f32.mrb[0].mxu0
        %v2353 = vadd.f32 0.0, %v2352
        %v2354 = vpop.f32.mrb[0].mxu0
        %2355 = vmatprep.mubr.f32.mxu0 0.0
        %2356 = vmatmul.mubr.f32.gmra.mrb[0].mxu0 %v378
        %v2357 = vpop.f32.mrb[0].mxu0
        %v2358 = vadd.f32 0.0, %v2357
        %v2359 = vpop.f32.mrb[0].mxu0
        %2360 = vmatprep.mubr.f32.mxu0 0.0
        %2361 = vmatmul.mubr.f32.gmra.mrb[0].mxu0 %v381
        %v2362 = vpop.f32.mrb[0].mxu0
        %v2363 = vadd.f32 0.0, %v2362
        %v2364 = vpop.f32.mrb[0].mxu0
        %2365 = vmatprep.mubr.f32.mxu0 0.0
        %2366 = vmatmul.mubr.f32.gmra.mrb[0].mxu0 %v1367
        %v2367 = vpop.f32.mrb[0].mxu0
        %v2368 = vadd.f32 0.0, %v2367
        %v2369 = vpop.f32.mrb[0].mxu0
        %2370 = vmatprep.mubr.f32.mxu0 0.0
        %2371 = vmatmul.mubr.f32.gmra.mrb[0].mxu0 %v1370
        %v2372 = vpop.f32.mrb[0].mxu0
        %v2373 = vadd.f32 0.0, %v2372
        %v2374 = vpop.f32.mrb[0].mxu0
        %2375 = vmatprep.mubr.f32.mxu0 0.0
        %2376 = vmatmul.mubr.f32.gmra.mrb[0].mxu0 %v1373
        %v2377 = vpop.f32.mrb[0].mxu0
        %v2378 = vadd.f32 0.0, %v2377
        %v2379 = vpop.f32.mrb[0].mxu0
        %2380 = vmatprep.mubr.f32.mxu0 0.0
        %2381 = vmatmul.mubr.f32.gmra.mrb[0].mxu0 %v2200
        %v2382 = vpop.f32.mrb[0].mxu0
        %v2383 = vadd.f32 0.0, %v2382
        %v2384 = vpop.f32.mrb[0].mxu0
        %2385 = vmatprep.mubr.f32.mxu0 0.0
        %2386 = vmatmul.mubr.f32.gmra.mrb[0].mxu0 %v2203
        %v2387 = vpop.f32.mrb[0].mxu0
        %v2388 = vadd.f32 0.0, %v2387
        %v2389 = vpop.f32.mrb[0].mxu0
        %2390 = vmatprep.mubr.f32.mxu0 0.0
        %2391 = vmatmul.mubr.f32.gmra.mrb[0].mxu0 %v2206
        %v2392 = vpop.f32.mrb[0].mxu0
        %v2393 = vadd.f32 0.0, %v2392
        %v2394 = vpop.f32.mrb[0].mxu0
        %2395 = vdwg.mxu0
        %v2396 = vld [vmem:[#allocation2] sm:$0xff]
        %v2397 = vld [vmem:[#allocation2 + $0x8] sm:$0xff]
        %v2398 = vld [vmem:[#allocation2 + $0x10] sm:$0xff]
        %v2399 = vld [vmem:[#allocation2 + $0x18] sm:$0xff]
        %v2400 = vld [vmem:[#allocation2 + $0x20] sm:$0xff]
        %v2401 = vld [vmem:[#allocation2 + $0x28] sm:$0xff]
        %v2402 = vld [vmem:[#allocation2 + $0x30] sm:$0xff]
        %v2403 = vld [vmem:[#allocation2 + $0x38] sm:$0xff]
        %v2404 = vld [vmem:[#allocation2 + $0x40] sm:$0xff]
        %v2405 = vld [vmem:[#allocation2 + $0x48] sm:$0xff]
        %v2406 = vld [vmem:[#allocation2 + $0x50] sm:$0xff]
        %v2407 = vld [vmem:[#allocation2 + $0x58] sm:$0xff]
        %v2408 = vld [vmem:[#allocation2 + $0x60] sm:$0xff]
        %v2409 = vld [vmem:[#allocation2 + $0x68] sm:$0xff]
        %v2410 = vld [vmem:[#allocation2 + $0x70] sm:$0xff]
        %v2411 = vld [vmem:[#allocation2 + $0x78] sm:$0xff]
        %v2412 = vld [vmem:[#allocation2 + $0x80] sm:$0xff]
        %v2413 = vld [vmem:[#allocation2 + $0x88] sm:$0xff]
        %v2414 = vld [vmem:[#allocation2 + $0x90] sm:$0xff]
        %v2415 = vld [vmem:[#allocation2 + $0x98] sm:$0xff]
        %v2416 = vld [vmem:[#allocation2 + $0xa0] sm:$0xff]
        %v2417 = vld [vmem:[#allocation2 + $0xa8] sm:$0xff]
        %v2418 = vld [vmem:[#allocation2 + $0xb0] sm:$0xff]
        %v2419 = vld [vmem:[#allocation2 + $0xb8] sm:$0xff]
        %v2420 = vadd.f32 %v2396, %v2278
        %v2421 = vadd.f32 %v2397, %v2283
        %v2422 = vadd.f32 %v2398, %v2288
        %v2423 = vadd.f32 %v2399, %v2293
        %v2424 = vadd.f32 %v2400, %v2298
        %v2425 = vadd.f32 %v2401, %v2303
        %v2426 = vadd.f32 %v2402, %v2308
        %v2427 = vadd.f32 %v2403, %v2313
        %v2428 = vadd.f32 %v2404, %v2318
        %v2429 = vadd.f32 %v2405, %v2323
        %v2430 = vadd.f32 %v2406, %v2328
        %v2431 = vadd.f32 %v2407, %v2333
        %v2432 = vadd.f32 %v2408, %v2338
        %v2433 = vadd.f32 %v2409, %v2343
        %v2434 = vadd.f32 %v2410, %v2348
        %v2435 = vadd.f32 %v2411, %v2353
        %v2436 = vadd.f32 %v2412, %v2358
        %v2437 = vadd.f32 %v2413, %v2363
        %v2438 = vadd.f32 %v2414, %v2368
        %v2439 = vadd.f32 %v2415, %v2373
        %v2440 = vadd.f32 %v2416, %v2378
        %v2441 = vadd.f32 %v2417, %v2383
        %v2442 = vadd.f32 %v2418, %v2388
        %v2443 = vadd.f32 %v2419, %v2393
        %2444 = vst [vmem:[#allocation2] sm:$0xff] %v2420
        %2445 = vst [vmem:[#allocation2 + $0x8] sm:$0xff] %v2421
        %2446 = vst [vmem:[#allocation2 + $0x10] sm:$0xff] %v2422
        %2447 = vst [vmem:[#allocation2 + $0x18] sm:$0xff] %v2423
        %2448 = vst [vmem:[#allocation2 + $0x20] sm:$0xff] %v2424
        %2449 = vst [vmem:[#allocation2 + $0x28] sm:$0xff] %v2425
        %2450 = vst [vmem:[#allocation2 + $0x30] sm:$0xff] %v2426
        %2451 = vst [vmem:[#allocation2 + $0x38] sm:$0xff] %v2427
        %2452 = vst [vmem:[#allocation2 + $0x40] sm:$0xff] %v2428
        %2453 = vst [vmem:[#allocation2 + $0x48] sm:$0xff] %v2429
        %2454 = vst [vmem:[#allocation2 + $0x50] sm:$0xff] %v2430
        %2455 = vst [vmem:[#allocation2 + $0x58] sm:$0xff] %v2431
        %2456 = vst [vmem:[#allocation2 + $0x60] sm:$0xff] %v2432
        %2457 = vst [vmem:[#allocation2 + $0x68] sm:$0xff] %v2433
        %2458 = vst [vmem:[#allocation2 + $0x70] sm:$0xff] %v2434
        %2459 = vst [vmem:[#allocation2 + $0x78] sm:$0xff] %v2435
        %2460 = vst [vmem:[#allocation2 + $0x80] sm:$0xff] %v2436
        %2461 = vst [vmem:[#allocation2 + $0x88] sm:$0xff] %v2437
        %2462 = vst [vmem:[#allocation2 + $0x90] sm:$0xff] %v2438
        %2463 = vst [vmem:[#allocation2 + $0x98] sm:$0xff] %v2439
        %2464 = vst [vmem:[#allocation2 + $0xa0] sm:$0xff] %v2440
        %2465 = vst [vmem:[#allocation2 + $0xa8] sm:$0xff] %v2441
        %2466 = vst [vmem:[#allocation2 + $0xb0] sm:$0xff] %v2442
        %2467 = vst [vmem:[#allocation2 + $0xb8] sm:$0xff] %v2443
        %v2468 = vrot.slane %v306, 1
        %v2469 = vrot.slane %v307, 1
        %v2470 = vrot.slane %v308, 1
        %v2471 = vsel %vm622, %v2469, %v2470
        %v2472 = vsel %vm622, %v2468, %v2469
        %v2473 = vsel %vm622, %v1637, %v2468
        %v2474 = vsel %vm622, %v2470, %v602
        %s2475 = scalar_lea.vmem %s271, 28
        %v2476 = vld [vmem:[%s2475] sm:$0xf]
        %v2478 = vsel %vm310, %v2473, 0
        %v2481 = vsel %vm310, %v2472, 0
        %v2484 = vsel %vm310, %v2471, 0
        %v2487 = vsel %vm310, %v2474, 0
        %v2490 = vsel %vm383, %v2476, 0
        %2492 = vmatprep.subr.mxu0 0.0
        %2493 = vmatpush1.msra.mxu0 %v2490
        %2494 = vmatprep.subr.mxu0 0.0
        %2495 = vmatpush1.msra.mxu0 0.0
        %2496 = vmatprep.subr.mxu0 0.0
        %2497 = vmatpush1.msra.mxu0 0.0
        %2498 = vmatprep.subr.mxu0 0.0
        %2499 = vmatpush1.msra.mxu0 0.0
        %2500 = vmatprep.subr.mxu0 0.0
        %2501 = vmatpush1.msra.mxu0 0.0
        %2502 = vmatprep.subr.mxu0 0.0
        %2503 = vmatpush1.msra.mxu0 0.0
        %2504 = vmatprep.subr.mxu0 0.0
        %2505 = vmatpush1.msra.mxu0 0.0
        %2506 = vmatprep.subr.mxu0 0.0
        %2507 = vmatpush1.msra.mxu0 0.0
        %2508 = vmatprep.subr.mxu0 0.0
        %2509 = vmatpush1.msra.mxu0 0.0
        %2510 = vmatprep.subr.mxu0 0.0
        %2511 = vmatpush1.msra.mxu0 0.0
        %2512 = vmatprep.subr.mxu0 0.0
        %2513 = vmatpush1.msra.mxu0 0.0
        %2514 = vmatprep.subr.mxu0 0.0
        %2515 = vmatpush1.msra.mxu0 0.0
        %2516 = vmatprep.subr.mxu0 0.0
        %2517 = vmatpush1.msra.mxu0 0.0
        %2518 = vmatprep.subr.mxu0 0.0
        %2519 = vmatpush1.msra.mxu0 0.0
        %2520 = vmatprep.subr.mxu0 0.0
        %2521 = vmatpush1.msra.mxu0 0.0
        %2522 = vmatprep.subr.mxu0 0.0
        %2523 = vmatpush1.msra.mxu0 0.0
        %2524 = vmatprep.subr.mxu0 0.0
        %2525 = vmatpush1.msra.mxu0 0.0
        %2526 = vmatprep.subr.mxu0 0.0
        %2527 = vmatpush1.msra.mxu0 0.0
        %2528 = vmatprep.subr.mxu0 0.0
        %2529 = vmatpush1.msra.mxu0 0.0
        %2530 = vmatprep.subr.mxu0 0.0
        %2531 = vmatpush1.msra.mxu0 0.0
        %2532 = vmatprep.subr.mxu0 0.0
        %2533 = vmatpush1.msra.mxu0 0.0
        %2534 = vmatprep.subr.mxu0 0.0
        %2535 = vmatpush1.msra.mxu0 0.0
        %2536 = vmatprep.subr.mxu0 0.0
        %2537 = vmatpush1.msra.mxu0 0.0
        %2538 = vmatprep.subr.mxu0 0.0
        %2539 = vmatpush1.msra.mxu0 0.0
        %2540 = vmatprep.subr.mxu0 0.0
        %2541 = vmatpush1.msra.mxu0 0.0
        %2542 = vmatprep.subr.mxu0 0.0
        %2543 = vmatpush1.msra.mxu0 0.0
        %2544 = vmatprep.subr.mxu0 0.0
        %2545 = vmatpush1.msra.mxu0 0.0
        %2546 = vmatprep.subr.mxu0 0.0
        %2547 = vmatpush1.msra.mxu0 0.0
        %2548 = vmatprep.subr.mxu0 0.0
        %2549 = vmatpush1.msra.mxu0 0.0
        %2550 = vmatprep.subr.mxu0 0.0
        %2551 = vmatpush1.msra.mxu0 0.0
        %2552 = vmatprep.subr.mxu0 0.0
        %2553 = vmatpush1.msra.mxu0 0.0
        %2554 = vmatprep.subr.mxu0 0.0
        %2555 = vmatpush1.msra.mxu0 0.0
        %2556 = vmatprep.mubr.f32.mxu0 0.0
        %2557 = vmatmul.mubr.f32.gmra.mrb[0].mxu0 %v668
        %v2558 = vpop.f32.mrb[0].mxu0
        %v2559 = vadd.f32 0.0, %v2558
        %v2560 = vpop.f32.mrb[0].mxu0
        %2561 = vmatprep.mubr.f32.mxu0 0.0
        %2562 = vmatmul.mubr.f32.gmra.mrb[0].mxu0 %v671
        %v2563 = vpop.f32.mrb[0].mxu0
        %v2564 = vadd.f32 0.0, %v2563
        %v2565 = vpop.f32.mrb[0].mxu0
        %2566 = vmatprep.mubr.f32.mxu0 0.0
        %2567 = vmatmul.mubr.f32.gmra.mrb[0].mxu0 %v674
        %v2568 = vpop.f32.mrb[0].mxu0
        %v2569 = vadd.f32 0.0, %v2568
        %v2570 = vpop.f32.mrb[0].mxu0
        %2571 = vmatprep.mubr.f32.mxu0 0.0
        %2572 = vmatmul.mubr.f32.gmra.mrb[0].mxu0 %v677
        %v2573 = vpop.f32.mrb[0].mxu0
        %v2574 = vadd.f32 0.0, %v2573
        %v2575 = vpop.f32.mrb[0].mxu0
        %2576 = vmatprep.mubr.f32.mxu0 0.0
        %2577 = vmatmul.mubr.f32.gmra.mrb[0].mxu0 %v680
        %v2578 = vpop.f32.mrb[0].mxu0
        %v2579 = vadd.f32 0.0, %v2578
        %v2580 = vpop.f32.mrb[0].mxu0
        %2581 = vmatprep.mubr.f32.mxu0 0.0
        %2582 = vmatmul.mubr.f32.gmra.mrb[0].mxu0 %v683
        %v2583 = vpop.f32.mrb[0].mxu0
        %v2584 = vadd.f32 0.0, %v2583
        %v2585 = vpop.f32.mrb[0].mxu0
        %2586 = vmatprep.mubr.f32.mxu0 0.0
        %2587 = vmatmul.mubr.f32.gmra.mrb[0].mxu0 %v686
        %v2588 = vpop.f32.mrb[0].mxu0
        %v2589 = vadd.f32 0.0, %v2588
        %v2590 = vpop.f32.mrb[0].mxu0
        %2591 = vmatprep.mubr.f32.mxu0 0.0
        %2592 = vmatmul.mubr.f32.gmra.mrb[0].mxu0 %v689
        %v2593 = vpop.f32.mrb[0].mxu0
        %v2594 = vadd.f32 0.0, %v2593
        %v2595 = vpop.f32.mrb[0].mxu0
        %2596 = vmatprep.mubr.f32.mxu0 0.0
        %2597 = vmatmul.mubr.f32.gmra.mrb[0].mxu0 %v692
        %v2598 = vpop.f32.mrb[0].mxu0
        %v2599 = vadd.f32 0.0, %v2598
        %v2600 = vpop.f32.mrb[0].mxu0
        %2601 = vmatprep.mubr.f32.mxu0 0.0
        %2602 = vmatmul.mubr.f32.gmra.mrb[0].mxu0 %v695
        %v2603 = vpop.f32.mrb[0].mxu0
        %v2604 = vadd.f32 0.0, %v2603
        %v2605 = vpop.f32.mrb[0].mxu0
        %2606 = vmatprep.mubr.f32.mxu0 0.0
        %2607 = vmatmul.mubr.f32.gmra.mrb[0].mxu0 %v698
        %v2608 = vpop.f32.mrb[0].mxu0
        %v2609 = vadd.f32 0.0, %v2608
        %v2610 = vpop.f32.mrb[0].mxu0
        %2611 = vmatprep.mubr.f32.mxu0 0.0
        %2612 = vmatmul.mubr.f32.gmra.mrb[0].mxu0 %v701
        %v2613 = vpop.f32.mrb[0].mxu0
        %v2614 = vadd.f32 0.0, %v2613
        %v2615 = vpop.f32.mrb[0].mxu0
        %2616 = vmatprep.mubr.f32.mxu0 0.0
        %2617 = vmatmul.mubr.f32.gmra.mrb[0].mxu0 %v704
        %v2618 = vpop.f32.mrb[0].mxu0
        %v2619 = vadd.f32 0.0, %v2618
        %v2620 = vpop.f32.mrb[0].mxu0
        %2621 = vmatprep.mubr.f32.mxu0 0.0
        %2622 = vmatmul.mubr.f32.gmra.mrb[0].mxu0 %v707
        %v2623 = vpop.f32.mrb[0].mxu0
        %v2624 = vadd.f32 0.0, %v2623
        %v2625 = vpop.f32.mrb[0].mxu0
        %2626 = vmatprep.mubr.f32.mxu0 0.0
        %2627 = vmatmul.mubr.f32.gmra.mrb[0].mxu0 %v710
        %v2628 = vpop.f32.mrb[0].mxu0
        %v2629 = vadd.f32 0.0, %v2628
        %v2630 = vpop.f32.mrb[0].mxu0
        %2631 = vmatprep.mubr.f32.mxu0 0.0
        %2632 = vmatmul.mubr.f32.gmra.mrb[0].mxu0 %v713
        %v2633 = vpop.f32.mrb[0].mxu0
        %v2634 = vadd.f32 0.0, %v2633
        %v2635 = vpop.f32.mrb[0].mxu0
        %2636 = vmatprep.mubr.f32.mxu0 0.0
        %2637 = vmatmul.mubr.f32.gmra.mrb[0].mxu0 %v716
        %v2638 = vpop.f32.mrb[0].mxu0
        %v2639 = vadd.f32 0.0, %v2638
        %v2640 = vpop.f32.mrb[0].mxu0
        %2641 = vmatprep.mubr.f32.mxu0 0.0
        %2642 = vmatmul.mubr.f32.gmra.mrb[0].mxu0 %v1645
        %v2643 = vpop.f32.mrb[0].mxu0
        %v2644 = vadd.f32 0.0, %v2643
        %v2645 = vpop.f32.mrb[0].mxu0
        %2646 = vmatprep.mubr.f32.mxu0 0.0
        %2647 = vmatmul.mubr.f32.gmra.mrb[0].mxu0 %v1648
        %v2648 = vpop.f32.mrb[0].mxu0
        %v2649 = vadd.f32 0.0, %v2648
        %v2650 = vpop.f32.mrb[0].mxu0
        %2651 = vmatprep.mubr.f32.mxu0 0.0
        %2652 = vmatmul.mubr.f32.gmra.mrb[0].mxu0 %v1651
        %v2653 = vpop.f32.mrb[0].mxu0
        %v2654 = vadd.f32 0.0, %v2653
        %v2655 = vpop.f32.mrb[0].mxu0
        %2656 = vmatprep.mubr.f32.mxu0 0.0
        %2657 = vmatmul.mubr.f32.gmra.mrb[0].mxu0 %v2478
        %v2658 = vpop.f32.mrb[0].mxu0
        %v2659 = vadd.f32 0.0, %v2658
        %v2660 = vpop.f32.mrb[0].mxu0
        %2661 = vmatprep.mubr.f32.mxu0 0.0
        %2662 = vmatmul.mubr.f32.gmra.mrb[0].mxu0 %v2481
        %v2663 = vpop.f32.mrb[0].mxu0
        %v2664 = vadd.f32 0.0, %v2663
        %v2665 = vpop.f32.mrb[0].mxu0
        %2666 = vmatprep.mubr.f32.mxu0 0.0
        %2667 = vmatmul.mubr.f32.gmra.mrb[0].mxu0 %v2484
        %v2668 = vpop.f32.mrb[0].mxu0
        %v2669 = vadd.f32 0.0, %v2668
        %v2670 = vpop.f32.mrb[0].mxu0
        %2671 = vmatprep.mubr.f32.mxu0 0.0
        %2672 = vmatmul.mubr.f32.gmra.mrb[0].mxu0 %v2487
        %v2673 = vpop.f32.mrb[0].mxu0
        %v2674 = vadd.f32 0.0, %v2673
        %v2675 = vpop.f32.mrb[0].mxu0
        %2676 = vdwg.mxu0
        %v2677 = vld [vmem:[#allocation2] sm:$0xff]
        %v2678 = vld [vmem:[#allocation2 + $0x8] sm:$0xff]
        %v2679 = vld [vmem:[#allocation2 + $0x10] sm:$0xff]
        %v2680 = vld [vmem:[#allocation2 + $0x18] sm:$0xff]
        %v2681 = vld [vmem:[#allocation2 + $0x20] sm:$0xff]
        %v2682 = vld [vmem:[#allocation2 + $0x28] sm:$0xff]
        %v2683 = vld [vmem:[#allocation2 + $0x30] sm:$0xff]
        %v2684 = vld [vmem:[#allocation2 + $0x38] sm:$0xff]
        %v2685 = vld [vmem:[#allocation2 + $0x40] sm:$0xff]
        %v2686 = vld [vmem:[#allocation2 + $0x48] sm:$0xff]
        %v2687 = vld [vmem:[#allocation2 + $0x50] sm:$0xff]
        %v2688 = vld [vmem:[#allocation2 + $0x58] sm:$0xff]
        %v2689 = vld [vmem:[#allocation2 + $0x60] sm:$0xff]
        %v2690 = vld [vmem:[#allocation2 + $0x68] sm:$0xff]
        %v2691 = vld [vmem:[#allocation2 + $0x70] sm:$0xff]
        %v2692 = vld [vmem:[#allocation2 + $0x78] sm:$0xff]
        %v2693 = vld [vmem:[#allocation2 + $0x80] sm:$0xff]
        %v2694 = vld [vmem:[#allocation2 + $0x88] sm:$0xff]
        %v2695 = vld [vmem:[#allocation2 + $0x90] sm:$0xff]
        %v2696 = vld [vmem:[#allocation2 + $0x98] sm:$0xff]
        %v2697 = vld [vmem:[#allocation2 + $0xa0] sm:$0xff]
        %v2698 = vld [vmem:[#allocation2 + $0xa8] sm:$0xff]
        %v2699 = vld [vmem:[#allocation2 + $0xb0] sm:$0xff]
        %v2700 = vld [vmem:[#allocation2 + $0xb8] sm:$0xff]
        %v2701 = vadd.f32 %v2677, %v2559
        %v2702 = vadd.f32 %v2678, %v2564
        %v2703 = vadd.f32 %v2679, %v2569
        %v2704 = vadd.f32 %v2680, %v2574
        %v2705 = vadd.f32 %v2681, %v2579
        %v2706 = vadd.f32 %v2682, %v2584
        %v2707 = vadd.f32 %v2683, %v2589
        %v2708 = vadd.f32 %v2684, %v2594
        %v2709 = vadd.f32 %v2685, %v2599
        %v2710 = vadd.f32 %v2686, %v2604
        %v2711 = vadd.f32 %v2687, %v2609
        %v2712 = vadd.f32 %v2688, %v2614
        %v2713 = vadd.f32 %v2689, %v2619
        %v2714 = vadd.f32 %v2690, %v2624
        %v2715 = vadd.f32 %v2691, %v2629
        %v2716 = vadd.f32 %v2692, %v2634
        %v2717 = vadd.f32 %v2693, %v2639
        %v2718 = vadd.f32 %v2694, %v2644
        %v2719 = vadd.f32 %v2695, %v2649
        %v2720 = vadd.f32 %v2696, %v2654
        %v2721 = vadd.f32 %v2697, %v2659
        %v2722 = vadd.f32 %v2698, %v2664
        %v2723 = vadd.f32 %v2699, %v2669
        %v2724 = vadd.f32 %v2700, %v2674
        %2725 = vst [vmem:[#allocation2] sm:$0xff] %v2701
        %2726 = vst [vmem:[#allocation2 + $0x8] sm:$0xff] %v2702
        %2727 = vst [vmem:[#allocation2 + $0x10] sm:$0xff] %v2703
        %2728 = vst [vmem:[#allocation2 + $0x18] sm:$0xff] %v2704
        %2729 = vst [vmem:[#allocation2 + $0x20] sm:$0xff] %v2705
        %2730 = vst [vmem:[#allocation2 + $0x28] sm:$0xff] %v2706
        %2731 = vst [vmem:[#allocation2 + $0x30] sm:$0xff] %v2707
        %2732 = vst [vmem:[#allocation2 + $0x38] sm:$0xff] %v2708
        %2733 = vst [vmem:[#allocation2 + $0x40] sm:$0xff] %v2709
        %2734 = vst [vmem:[#allocation2 + $0x48] sm:$0xff] %v2710
        %2735 = vst [vmem:[#allocation2 + $0x50] sm:$0xff] %v2711
        %2736 = vst [vmem:[#allocation2 + $0x58] sm:$0xff] %v2712
        %2737 = vst [vmem:[#allocation2 + $0x60] sm:$0xff] %v2713
        %2738 = vst [vmem:[#allocation2 + $0x68] sm:$0xff] %v2714
        %2739 = vst [vmem:[#allocation2 + $0x70] sm:$0xff] %v2715
        %2740 = vst [vmem:[#allocation2 + $0x78] sm:$0xff] %v2716
        %2741 = vst [vmem:[#allocation2 + $0x80] sm:$0xff] %v2717
        %2742 = vst [vmem:[#allocation2 + $0x88] sm:$0xff] %v2718
        %2743 = vst [vmem:[#allocation2 + $0x90] sm:$0xff] %v2719
        %2744 = vst [vmem:[#allocation2 + $0x98] sm:$0xff] %v2720
        %2745 = vst [vmem:[#allocation2 + $0xa0] sm:$0xff] %v2721
        %2746 = vst [vmem:[#allocation2 + $0xa8] sm:$0xff] %v2722
        %2747 = vst [vmem:[#allocation2 + $0xb0] sm:$0xff] %v2723
        %2748 = vst [vmem:[#allocation2 + $0xb8] sm:$0xff] %v2724
        %v2749 = vrot.slane %v306, 2
        %v2750 = vrot.slane %v307, 2
        %v2751 = vrot.slane %v308, 2
        %v2752 = vsel %vm1005, %v2750, %v2751
        %v2753 = vsel %vm1005, %v2749, %v2750
        %v2754 = vsel %vm1005, %v1918, %v2749
        %v2755 = vsel %vm1005, %v2751, %v987
        %s2756 = scalar_lea.vmem %s271, 32
        %v2757 = vld [vmem:[%s2756] sm:$0xf]
        %v2759 = vsel %vm310, %v2754, 0
        %v2762 = vsel %vm310, %v2753, 0
        %v2765 = vsel %vm310, %v2752, 0
        %v2768 = vsel %vm310, %v2755, 0
        %v2771 = vsel %vm383, %v2757, 0
        %2773 = vmatprep.subr.mxu0 0.0
        %2774 = vmatpush1.msra.mxu0 %v2771
        %2775 = vmatprep.subr.mxu0 0.0
        %2776 = vmatpush1.msra.mxu0 0.0
        %2777 = vmatprep.subr.mxu0 0.0
        %2778 = vmatpush1.msra.mxu0 0.0
        %2779 = vmatprep.subr.mxu0 0.0
        %2780 = vmatpush1.msra.mxu0 0.0
        %2781 = vmatprep.subr.mxu0 0.0
        %2782 = vmatpush1.msra.mxu0 0.0
        %2783 = vmatprep.subr.mxu0 0.0
        %2784 = vmatpush1.msra.mxu0 0.0
        %2785 = vmatprep.subr.mxu0 0.0
        %2786 = vmatpush1.msra.mxu0 0.0
        %2787 = vmatprep.subr.mxu0 0.0
        %2788 = vmatpush1.msra.mxu0 0.0
        %2789 = vmatprep.subr.mxu0 0.0
        %2790 = vmatpush1.msra.mxu0 0.0
        %2791 = vmatprep.subr.mxu0 0.0
        %2792 = vmatpush1.msra.mxu0 0.0
        %2793 = vmatprep.subr.mxu0 0.0
        %2794 = vmatpush1.msra.mxu0 0.0
        %2795 = vmatprep.subr.mxu0 0.0
        %2796 = vmatpush1.msra.mxu0 0.0
        %2797 = vmatprep.subr.mxu0 0.0
        %2798 = vmatpush1.msra.mxu0 0.0
        %2799 = vmatprep.subr.mxu0 0.0
        %2800 = vmatpush1.msra.mxu0 0.0
        %2801 = vmatprep.subr.mxu0 0.0
        %2802 = vmatpush1.msra.mxu0 0.0
        %2803 = vmatprep.subr.mxu0 0.0
        %2804 = vmatpush1.msra.mxu0 0.0
        %2805 = vmatprep.subr.mxu0 0.0
        %2806 = vmatpush1.msra.mxu0 0.0
        %2807 = vmatprep.subr.mxu0 0.0
        %2808 = vmatpush1.msra.mxu0 0.0
        %2809 = vmatprep.subr.mxu0 0.0
        %2810 = vmatpush1.msra.mxu0 0.0
        %2811 = vmatprep.subr.mxu0 0.0
        %2812 = vmatpush1.msra.mxu0 0.0
        %2813 = vmatprep.subr.mxu0 0.0
        %2814 = vmatpush1.msra.mxu0 0.0
        %2815 = vmatprep.subr.mxu0 0.0
        %2816 = vmatpush1.msra.mxu0 0.0
        %2817 = vmatprep.subr.mxu0 0.0
        %2818 = vmatpush1.msra.mxu0 0.0
        %2819 = vmatprep.subr.mxu0 0.0
        %2820 = vmatpush1.msra.mxu0 0.0
        %2821 = vmatprep.subr.mxu0 0.0
        %2822 = vmatpush1.msra.mxu0 0.0
        %2823 = vmatprep.subr.mxu0 0.0
        %2824 = vmatpush1.msra.mxu0 0.0
        %2825 = vmatprep.subr.mxu0 0.0
        %2826 = vmatpush1.msra.mxu0 0.0
        %2827 = vmatprep.subr.mxu0 0.0
        %2828 = vmatpush1.msra.mxu0 0.0
        %2829 = vmatprep.subr.mxu0 0.0
        %2830 = vmatpush1.msra.mxu0 0.0
        %2831 = vmatprep.subr.mxu0 0.0
        %2832 = vmatpush1.msra.mxu0 0.0
        %2833 = vmatprep.subr.mxu0 0.0
        %2834 = vmatpush1.msra.mxu0 0.0
        %2835 = vmatprep.subr.mxu0 0.0
        %2836 = vmatpush1.msra.mxu0 0.0
        %2837 = vmatprep.mubr.f32.mxu0 0.0
        %2838 = vmatmul.mubr.f32.gmra.mrb[0].mxu0 %v1051
        %v2839 = vpop.f32.mrb[0].mxu0
        %v2840 = vadd.f32 0.0, %v2839
        %v2841 = vpop.f32.mrb[0].mxu0
        %2842 = vmatprep.mubr.f32.mxu0 0.0
        %2843 = vmatmul.mubr.f32.gmra.mrb[0].mxu0 %v1054
        %v2844 = vpop.f32.mrb[0].mxu0
        %v2845 = vadd.f32 0.0, %v2844
        %v2846 = vpop.f32.mrb[0].mxu0
        %2847 = vmatprep.mubr.f32.mxu0 0.0
        %2848 = vmatmul.mubr.f32.gmra.mrb[0].mxu0 %v1057
        %v2849 = vpop.f32.mrb[0].mxu0
        %v2850 = vadd.f32 0.0, %v2849
        %v2851 = vpop.f32.mrb[0].mxu0
        %2852 = vmatprep.mubr.f32.mxu0 0.0
        %2853 = vmatmul.mubr.f32.gmra.mrb[0].mxu0 %v1060
        %v2854 = vpop.f32.mrb[0].mxu0
        %v2855 = vadd.f32 0.0, %v2854
        %v2856 = vpop.f32.mrb[0].mxu0
        %2857 = vmatprep.mubr.f32.mxu0 0.0
        %2858 = vmatmul.mubr.f32.gmra.mrb[0].mxu0 %v1063
        %v2859 = vpop.f32.mrb[0].mxu0
        %v2860 = vadd.f32 0.0, %v2859
        %v2861 = vpop.f32.mrb[0].mxu0
        %2862 = vmatprep.mubr.f32.mxu0 0.0
        %2863 = vmatmul.mubr.f32.gmra.mrb[0].mxu0 %v1066
        %v2864 = vpop.f32.mrb[0].mxu0
        %v2865 = vadd.f32 0.0, %v2864
        %v2866 = vpop.f32.mrb[0].mxu0
        %2867 = vmatprep.mubr.f32.mxu0 0.0
        %2868 = vmatmul.mubr.f32.gmra.mrb[0].mxu0 %v1069
        %v2869 = vpop.f32.mrb[0].mxu0
        %v2870 = vadd.f32 0.0, %v2869
        %v2871 = vpop.f32.mrb[0].mxu0
        %2872 = vmatprep.mubr.f32.mxu0 0.0
        %2873 = vmatmul.mubr.f32.gmra.mrb[0].mxu0 %v1072
        %v2874 = vpop.f32.mrb[0].mxu0
        %v2875 = vadd.f32 0.0, %v2874
        %v2876 = vpop.f32.mrb[0].mxu0
        %2877 = vmatprep.mubr.f32.mxu0 0.0
        %2878 = vmatmul.mubr.f32.gmra.mrb[0].mxu0 %v1075
        %v2879 = vpop.f32.mrb[0].mxu0
        %v2880 = vadd.f32 0.0, %v2879
        %v2881 = vpop.f32.mrb[0].mxu0
        %2882 = vmatprep.mubr.f32.mxu0 0.0
        %2883 = vmatmul.mubr.f32.gmra.mrb[0].mxu0 %v1078
        %v2884 = vpop.f32.mrb[0].mxu0
        %v2885 = vadd.f32 0.0, %v2884
        %v2886 = vpop.f32.mrb[0].mxu0
        %2887 = vmatprep.mubr.f32.mxu0 0.0
        %2888 = vmatmul.mubr.f32.gmra.mrb[0].mxu0 %v1081
        %v2889 = vpop.f32.mrb[0].mxu0
        %v2890 = vadd.f32 0.0, %v2889
        %v2891 = vpop.f32.mrb[0].mxu0
        %2892 = vmatprep.mubr.f32.mxu0 0.0
        %2893 = vmatmul.mubr.f32.gmra.mrb[0].mxu0 %v1084
        %v2894 = vpop.f32.mrb[0].mxu0
        %v2895 = vadd.f32 0.0, %v2894
        %v2896 = vpop.f32.mrb[0].mxu0
        %2897 = vmatprep.mubr.f32.mxu0 0.0
        %2898 = vmatmul.mubr.f32.gmra.mrb[0].mxu0 %v1087
        %v2899 = vpop.f32.mrb[0].mxu0
        %v2900 = vadd.f32 0.0, %v2899
        %v2901 = vpop.f32.mrb[0].mxu0
        %2902 = vmatprep.mubr.f32.mxu0 0.0
        %2903 = vmatmul.mubr.f32.gmra.mrb[0].mxu0 %v1090
        %v2904 = vpop.f32.mrb[0].mxu0
        %v2905 = vadd.f32 0.0, %v2904
        %v2906 = vpop.f32.mrb[0].mxu0
        %2907 = vmatprep.mubr.f32.mxu0 0.0
        %2908 = vmatmul.mubr.f32.gmra.mrb[0].mxu0 %v1093
        %v2909 = vpop.f32.mrb[0].mxu0
        %v2910 = vadd.f32 0.0, %v2909
        %v2911 = vpop.f32.mrb[0].mxu0
        %2912 = vmatprep.mubr.f32.mxu0 0.0
        %2913 = vmatmul.mubr.f32.gmra.mrb[0].mxu0 %v1096
        %v2914 = vpop.f32.mrb[0].mxu0
        %v2915 = vadd.f32 0.0, %v2914
        %v2916 = vpop.f32.mrb[0].mxu0
        %2917 = vmatprep.mubr.f32.mxu0 0.0
        %2918 = vmatmul.mubr.f32.gmra.mrb[0].mxu0 %v1099
        %v2919 = vpop.f32.mrb[0].mxu0
        %v2920 = vadd.f32 0.0, %v2919
        %v2921 = vpop.f32.mrb[0].mxu0
        %2922 = vmatprep.mubr.f32.mxu0 0.0
        %2923 = vmatmul.mubr.f32.gmra.mrb[0].mxu0 %v1926
        %v2924 = vpop.f32.mrb[0].mxu0
        %v2925 = vadd.f32 0.0, %v2924
        %v2926 = vpop.f32.mrb[0].mxu0
        %2927 = vmatprep.mubr.f32.mxu0 0.0
        %2928 = vmatmul.mubr.f32.gmra.mrb[0].mxu0 %v1929
        %v2929 = vpop.f32.mrb[0].mxu0
        %v2930 = vadd.f32 0.0, %v2929
        %v2931 = vpop.f32.mrb[0].mxu0
        %2932 = vmatprep.mubr.f32.mxu0 0.0
        %2933 = vmatmul.mubr.f32.gmra.mrb[0].mxu0 %v1932
        %v2934 = vpop.f32.mrb[0].mxu0
        %v2935 = vadd.f32 0.0, %v2934
        %v2936 = vpop.f32.mrb[0].mxu0
        %2937 = vmatprep.mubr.f32.mxu0 0.0
        %2938 = vmatmul.mubr.f32.gmra.mrb[0].mxu0 %v2759
        %v2939 = vpop.f32.mrb[0].mxu0
        %v2940 = vadd.f32 0.0, %v2939
        %v2941 = vpop.f32.mrb[0].mxu0
        %2942 = vmatprep.mubr.f32.mxu0 0.0
        %2943 = vmatmul.mubr.f32.gmra.mrb[0].mxu0 %v2762
        %v2944 = vpop.f32.mrb[0].mxu0
        %v2945 = vadd.f32 0.0, %v2944
        %v2946 = vpop.f32.mrb[0].mxu0
        %2947 = vmatprep.mubr.f32.mxu0 0.0
        %2948 = vmatmul.mubr.f32.gmra.mrb[0].mxu0 %v2765
        %v2949 = vpop.f32.mrb[0].mxu0
        %v2950 = vadd.f32 0.0, %v2949
        %v2951 = vpop.f32.mrb[0].mxu0
        %2952 = vmatprep.mubr.f32.mxu0 0.0
        %2953 = vmatmul.mubr.f32.gmra.mrb[0].mxu0 %v2768
        %v2954 = vpop.f32.mrb[0].mxu0
        %v2955 = vadd.f32 0.0, %v2954
        %v2956 = vpop.f32.mrb[0].mxu0
        %2957 = vdwg.mxu0
        %v2958 = vld [vmem:[#allocation2] sm:$0xff]
        %v2959 = vld [vmem:[#allocation2 + $0x8] sm:$0xff]
        %v2960 = vld [vmem:[#allocation2 + $0x10] sm:$0xff]
        %v2961 = vld [vmem:[#allocation2 + $0x18] sm:$0xff]
        %v2962 = vld [vmem:[#allocation2 + $0x20] sm:$0xff]
        %v2963 = vld [vmem:[#allocation2 + $0x28] sm:$0xff]
        %v2964 = vld [vmem:[#allocation2 + $0x30] sm:$0xff]
        %v2965 = vld [vmem:[#allocation2 + $0x38] sm:$0xff]
        %v2966 = vld [vmem:[#allocation2 + $0x40] sm:$0xff]
        %v2967 = vld [vmem:[#allocation2 + $0x48] sm:$0xff]
        %v2968 = vld [vmem:[#allocation2 + $0x50] sm:$0xff]
        %v2969 = vld [vmem:[#allocation2 + $0x58] sm:$0xff]
        %v2970 = vld [vmem:[#allocation2 + $0x60] sm:$0xff]
        %v2971 = vld [vmem:[#allocation2 + $0x68] sm:$0xff]
        %v2972 = vld [vmem:[#allocation2 + $0x70] sm:$0xff]
        %v2973 = vld [vmem:[#allocation2 + $0x78] sm:$0xff]
        %v2974 = vld [vmem:[#allocation2 + $0x80] sm:$0xff]
        %v2975 = vld [vmem:[#allocation2 + $0x88] sm:$0xff]
        %v2976 = vld [vmem:[#allocation2 + $0x90] sm:$0xff]
        %v2977 = vld [vmem:[#allocation2 + $0x98] sm:$0xff]
        %v2978 = vld [vmem:[#allocation2 + $0xa0] sm:$0xff]
        %v2979 = vld [vmem:[#allocation2 + $0xa8] sm:$0xff]
        %v2980 = vld [vmem:[#allocation2 + $0xb0] sm:$0xff]
        %v2981 = vld [vmem:[#allocation2 + $0xb8] sm:$0xff]
        %v2982 = vadd.f32 %v2958, %v2840
        %v2983 = vadd.f32 %v2959, %v2845
        %v2984 = vadd.f32 %v2960, %v2850
        %v2985 = vadd.f32 %v2961, %v2855
        %v2986 = vadd.f32 %v2962, %v2860
        %v2987 = vadd.f32 %v2963, %v2865
        %v2988 = vadd.f32 %v2964, %v2870
        %v2989 = vadd.f32 %v2965, %v2875
        %v2990 = vadd.f32 %v2966, %v2880
        %v2991 = vadd.f32 %v2967, %v2885
        %v2992 = vadd.f32 %v2968, %v2890
        %v2993 = vadd.f32 %v2969, %v2895
        %v2994 = vadd.f32 %v2970, %v2900
        %v2995 = vadd.f32 %v2971, %v2905
        %v2996 = vadd.f32 %v2972, %v2910
        %v2997 = vadd.f32 %v2973, %v2915
        %v2998 = vadd.f32 %v2974, %v2920
        %v2999 = vadd.f32 %v2975, %v2925
        %v3000 = vadd.f32 %v2976, %v2930
        %v3001 = vadd.f32 %v2977, %v2935
        %v3002 = vadd.f32 %v2978, %v2940
        %v3003 = vadd.f32 %v2979, %v2945
        %v3004 = vadd.f32 %v2980, %v2950
        %v3005 = vadd.f32 %v2981, %v2955
        %3006 = vst [vmem:[#allocation2] sm:$0xff] %v2982
        %3007 = vst [vmem:[#allocation2 + $0x8] sm:$0xff] %v2983
        %3008 = vst [vmem:[#allocation2 + $0x10] sm:$0xff] %v2984
        %3009 = vst [vmem:[#allocation2 + $0x18] sm:$0xff] %v2985
        %3010 = vst [vmem:[#allocation2 + $0x20] sm:$0xff] %v2986
        %3011 = vst [vmem:[#allocation2 + $0x28] sm:$0xff] %v2987
        %3012 = vst [vmem:[#allocation2 + $0x30] sm:$0xff] %v2988
        %3013 = vst [vmem:[#allocation2 + $0x38] sm:$0xff] %v2989
        %3014 = vst [vmem:[#allocation2 + $0x40] sm:$0xff] %v2990
        %3015 = vst [vmem:[#allocation2 + $0x48] sm:$0xff] %v2991
        %3016 = vst [vmem:[#allocation2 + $0x50] sm:$0xff] %v2992
        %3017 = vst [vmem:[#allocation2 + $0x58] sm:$0xff] %v2993
        %3018 = vst [vmem:[#allocation2 + $0x60] sm:$0xff] %v2994
        %3019 = vst [vmem:[#allocation2 + $0x68] sm:$0xff] %v2995
        %3020 = vst [vmem:[#allocation2 + $0x70] sm:$0xff] %v2996
        %3021 = vst [vmem:[#allocation2 + $0x78] sm:$0xff] %v2997
        %3022 = vst [vmem:[#allocation2 + $0x80] sm:$0xff] %v2998
        %3023 = vst [vmem:[#allocation2 + $0x88] sm:$0xff] %v2999
        %3024 = vst [vmem:[#allocation2 + $0x90] sm:$0xff] %v3000
        %3025 = vst [vmem:[#allocation2 + $0x98] sm:$0xff] %v3001
        %3026 = vst [vmem:[#allocation2 + $0xa0] sm:$0xff] %v3002
        %3027 = vst [vmem:[#allocation2 + $0xa8] sm:$0xff] %v3003
        %3028 = vst [vmem:[#allocation2 + $0xb0] sm:$0xff] %v3004
        %3029 = vst [vmem:[#allocation2 + $0xb8] sm:$0xff] %v3005
        %v3030 = vld [vmem:[#allocation2] sm:$0xff]
        %v3031 = vld [vmem:[#allocation2 + $0x8] sm:$0xff]
        %v3032 = vld [vmem:[#allocation2 + $0x10] sm:$0xff]
        %v3033 = vld [vmem:[#allocation2 + $0x18] sm:$0xff]
        %v3034 = vld [vmem:[#allocation2 + $0x20] sm:$0xff]
        %v3035 = vld [vmem:[#allocation2 + $0x28] sm:$0xff]
        %v3036 = vld [vmem:[#allocation2 + $0x30] sm:$0xff]
        %v3037 = vld [vmem:[#allocation2 + $0x38] sm:$0xff]
        %v3038 = vld [vmem:[#allocation2 + $0x40] sm:$0xff]
        %v3039 = vld [vmem:[#allocation2 + $0x48] sm:$0xff]
        %v3040 = vld [vmem:[#allocation2 + $0x50] sm:$0xff]
        %v3041 = vld [vmem:[#allocation2 + $0x58] sm:$0xff]
        %v3042 = vld [vmem:[#allocation2 + $0x60] sm:$0xff]
        %v3043 = vld [vmem:[#allocation2 + $0x68] sm:$0xff]
        %v3044 = vld [vmem:[#allocation2 + $0x70] sm:$0xff]
        %v3045 = vld [vmem:[#allocation2 + $0x78] sm:$0xff]
        %v3046 = vld [vmem:[#allocation2 + $0x80] sm:$0xff]
        %v3047 = vld [vmem:[#allocation2 + $0x88] sm:$0xff]
        %v3048 = vld [vmem:[#allocation2 + $0x90] sm:$0xff]
        %v3049 = vld [vmem:[#allocation2 + $0x98] sm:$0xff]
        %v3050 = vld [vmem:[#allocation2 + $0xa0] sm:$0xff]
        %v3051 = vld [vmem:[#allocation2 + $0xa8] sm:$0xff]
        %v3052 = vld [vmem:[#allocation2 + $0xb0] sm:$0xff]
        %v3053 = vld [vmem:[#allocation2 + $0xb8] sm:$0xff]
        %v3054 = vld [vmem:[%s274] sm:$0x1]
        %v3056 = vlaneseq
        %v3057 = vshrl.u32 %v3056, 7
        %v3058 = vsub.s32 0, %v3057
        %v3059 = vrot.slane %v3054, %v3058
        %v3061 = vmul.f32 %v3030, %v3059
        %v3062 = vmul.f32 %v3031, %v3059
        %v3063 = vmul.f32 %v3032, %v3059
        %v3064 = vmul.f32 %v3033, %v3059
        %v3065 = vmul.f32 %v3034, %v3059
        %v3066 = vmul.f32 %v3035, %v3059
        %v3067 = vmul.f32 %v3036, %v3059
        %v3068 = vmul.f32 %v3037, %v3059
        %v3069 = vmul.f32 %v3038, %v3059
        %v3070 = vmul.f32 %v3039, %v3059
        %v3071 = vmul.f32 %v3040, %v3059
        %v3072 = vmul.f32 %v3041, %v3059
        %v3073 = vmul.f32 %v3042, %v3059
        %v3074 = vmul.f32 %v3043, %v3059
        %v3075 = vmul.f32 %v3044, %v3059
        %v3076 = vmul.f32 %v3045, %v3059
        %v3077 = vmul.f32 %v3046, %v3059
        %v3078 = vmul.f32 %v3047, %v3059
        %v3079 = vmul.f32 %v3048, %v3059
        %v3080 = vmul.f32 %v3049, %v3059
        %v3081 = vmul.f32 %v3050, %v3059
        %v3082 = vmul.f32 %v3051, %v3059
        %v3083 = vmul.f32 %v3052, %v3059
        %v3084 = vmul.f32 %v3053, %v3059
        %v3085 = vld [vmem:[%s277] sm:$0x1]
        %v3087 = vlaneseq
        %v3088 = vshrl.u32 %v3087, 7
        %v3089 = vsub.s32 0, %v3088
        %v3090 = vrot.slane %v3085, %v3089
        %v3092 = vadd.f32 %v3061, %v3090
        %v3093 = vadd.f32 %v3062, %v3090
        %v3094 = vadd.f32 %v3063, %v3090
        %v3095 = vadd.f32 %v3064, %v3090
        %v3096 = vadd.f32 %v3065, %v3090
        %v3097 = vadd.f32 %v3066, %v3090
        %v3098 = vadd.f32 %v3067, %v3090
        %v3099 = vadd.f32 %v3068, %v3090
        %v3100 = vadd.f32 %v3069, %v3090
        %v3101 = vadd.f32 %v3070, %v3090
        %v3102 = vadd.f32 %v3071, %v3090
        %v3103 = vadd.f32 %v3072, %v3090
        %v3104 = vadd.f32 %v3073, %v3090
        %v3105 = vadd.f32 %v3074, %v3090
        %v3106 = vadd.f32 %v3075, %v3090
        %v3107 = vadd.f32 %v3076, %v3090
        %v3108 = vadd.f32 %v3077, %v3090
        %v3109 = vadd.f32 %v3078, %v3090
        %v3110 = vadd.f32 %v3079, %v3090
        %v3111 = vadd.f32 %v3080, %v3090
        %v3112 = vadd.f32 %v3081, %v3090
        %v3113 = vadd.f32 %v3082, %v3090
        %v3114 = vadd.f32 %v3083, %v3090
        %v3115 = vadd.f32 %v3084, %v3090
        %v3116 = vxor.u32 %v3092, 2147483648
        %v3117 = vxor.u32 %v3093, 2147483648
        %v3118 = vxor.u32 %v3094, 2147483648
        %v3119 = vxor.u32 %v3095, 2147483648
        %v3120 = vxor.u32 %v3096, 2147483648
        %v3121 = vxor.u32 %v3097, 2147483648
        %v3122 = vxor.u32 %v3098, 2147483648
        %v3123 = vxor.u32 %v3099, 2147483648
        %v3124 = vxor.u32 %v3100, 2147483648
        %v3125 = vxor.u32 %v3101, 2147483648
        %v3126 = vxor.u32 %v3102, 2147483648
        %v3127 = vxor.u32 %v3103, 2147483648
        %v3128 = vxor.u32 %v3104, 2147483648
        %v3129 = vxor.u32 %v3105, 2147483648
        %v3130 = vxor.u32 %v3106, 2147483648
        %v3131 = vxor.u32 %v3107, 2147483648
        %v3132 = vxor.u32 %v3108, 2147483648
        %v3133 = vxor.u32 %v3109, 2147483648
        %v3134 = vxor.u32 %v3110, 2147483648
        %v3135 = vxor.u32 %v3111, 2147483648
        %v3136 = vxor.u32 %v3112, 2147483648
        %v3137 = vxor.u32 %v3113, 2147483648
        %v3138 = vxor.u32 %v3114, 2147483648
        %v3139 = vxor.u32 %v3115, 2147483648
        %v3140 = vmul.f32 %v3116, 1.442695
        %v3141 = vpow.pop %v3140
        %v3142 = vmul.f32 %v3117, 1.442695
        %v3143 = vpow.pop %v3142
        %v3144 = vmul.f32 %v3118, 1.442695
        %v3145 = vpow.pop %v3144
        %v3146 = vmul.f32 %v3119, 1.442695
        %v3147 = vpow.pop %v3146
        %v3148 = vmul.f32 %v3120, 1.442695
        %v3149 = vpow.pop %v3148
        %v3150 = vmul.f32 %v3121, 1.442695
        %v3151 = vpow.pop %v3150
        %v3152 = vmul.f32 %v3122, 1.442695
        %v3153 = vpow.pop %v3152
        %v3154 = vmul.f32 %v3123, 1.442695
        %v3155 = vpow.pop %v3154
        %v3156 = vmul.f32 %v3124, 1.442695
        %v3157 = vpow.pop %v3156
        %v3158 = vmul.f32 %v3125, 1.442695
        %v3159 = vpow.pop %v3158
        %v3160 = vmul.f32 %v3126, 1.442695
        %v3161 = vpow.pop %v3160
        %v3162 = vmul.f32 %v3127, 1.442695
        %v3163 = vpow.pop %v3162
        %v3164 = vmul.f32 %v3128, 1.442695
        %v3165 = vpow.pop %v3164
        %v3166 = vmul.f32 %v3129, 1.442695
        %v3167 = vpow.pop %v3166
        %v3168 = vmul.f32 %v3130, 1.442695
        %v3169 = vpow.pop %v3168
        %v3170 = vmul.f32 %v3131, 1.442695
        %v3171 = vpow.pop %v3170
        %v3172 = vmul.f32 %v3132, 1.442695
        %v3173 = vpow.pop %v3172
        %v3174 = vmul.f32 %v3133, 1.442695
        %v3175 = vpow.pop %v3174
        %v3176 = vmul.f32 %v3134, 1.442695
        %v3177 = vpow.pop %v3176
        %v3178 = vmul.f32 %v3135, 1.442695
        %v3179 = vpow.pop %v3178
        %v3180 = vmul.f32 %v3136, 1.442695
        %v3181 = vpow.pop %v3180
        %v3182 = vmul.f32 %v3137, 1.442695
        %v3183 = vpow.pop %v3182
        %v3184 = vmul.f32 %v3138, 1.442695
        %v3185 = vpow.pop %v3184
        %v3186 = vmul.f32 %v3139, 1.442695
        %v3187 = vpow.pop %v3186
        %v3188 = vadd.f32 %v3141, 1.0
        %v3189 = vadd.f32 %v3143, 1.0
        %v3190 = vadd.f32 %v3145, 1.0
        %v3191 = vadd.f32 %v3147, 1.0
        %v3192 = vadd.f32 %v3149, 1.0
        %v3193 = vadd.f32 %v3151, 1.0
        %v3194 = vadd.f32 %v3153, 1.0
        %v3195 = vadd.f32 %v3155, 1.0
        %v3196 = vadd.f32 %v3157, 1.0
        %v3197 = vadd.f32 %v3159, 1.0
        %v3198 = vadd.f32 %v3161, 1.0
        %v3199 = vadd.f32 %v3163, 1.0
        %v3200 = vadd.f32 %v3165, 1.0
        %v3201 = vadd.f32 %v3167, 1.0
        %v3202 = vadd.f32 %v3169, 1.0
        %v3203 = vadd.f32 %v3171, 1.0
        %v3204 = vadd.f32 %v3173, 1.0
        %v3205 = vadd.f32 %v3175, 1.0
        %v3206 = vadd.f32 %v3177, 1.0
        %v3207 = vadd.f32 %v3179, 1.0
        %v3208 = vadd.f32 %v3181, 1.0
        %v3209 = vadd.f32 %v3183, 1.0
        %v3210 = vadd.f32 %v3185, 1.0
        %v3211 = vadd.f32 %v3187, 1.0
        %v3212 = vrcp.pop %v3188
        %v3213 = vmul.f32 1.0, %v3212
        %v3214 = vrcp.pop %v3189
        %v3215 = vmul.f32 1.0, %v3214
        %v3216 = vrcp.pop %v3190
        %v3217 = vmul.f32 1.0, %v3216
        %v3218 = vrcp.pop %v3191
        %v3219 = vmul.f32 1.0, %v3218
        %v3220 = vrcp.pop %v3192
        %v3221 = vmul.f32 1.0, %v3220
        %v3222 = vrcp.pop %v3193
        %v3223 = vmul.f32 1.0, %v3222
        %v3224 = vrcp.pop %v3194
        %v3225 = vmul.f32 1.0, %v3224
        %v3226 = vrcp.pop %v3195
        %v3227 = vmul.f32 1.0, %v3226
        %v3228 = vrcp.pop %v3196
        %v3229 = vmul.f32 1.0, %v3228
        %v3230 = vrcp.pop %v3197
        %v3231 = vmul.f32 1.0, %v3230
        %v3232 = vrcp.pop %v3198
        %v3233 = vmul.f32 1.0, %v3232
        %v3234 = vrcp.pop %v3199
        %v3235 = vmul.f32 1.0, %v3234
        %v3236 = vrcp.pop %v3200
        %v3237 = vmul.f32 1.0, %v3236
        %v3238 = vrcp.pop %v3201
        %v3239 = vmul.f32 1.0, %v3238
        %v3240 = vrcp.pop %v3202
        %v3241 = vmul.f32 1.0, %v3240
        %v3242 = vrcp.pop %v3203
        %v3243 = vmul.f32 1.0, %v3242
        %v3244 = vrcp.pop %v3204
        %v3245 = vmul.f32 1.0, %v3244
        %v3246 = vrcp.pop %v3205
        %v3247 = vmul.f32 1.0, %v3246
        %v3248 = vrcp.pop %v3206
        %v3249 = vmul.f32 1.0, %v3248
        %v3250 = vrcp.pop %v3207
        %v3251 = vmul.f32 1.0, %v3250
        %v3252 = vrcp.pop %v3208
        %v3253 = vmul.f32 1.0, %v3252
        %v3254 = vrcp.pop %v3209
        %v3255 = vmul.f32 1.0, %v3254
        %v3256 = vrcp.pop %v3210
        %v3257 = vmul.f32 1.0, %v3256
        %v3258 = vrcp.pop %v3211
        %v3259 = vmul.f32 1.0, %v3258
        %v3260 = vmul.f32 %v3092, %v3213
        %v3261 = vmul.f32 %v3093, %v3215
        %v3262 = vmul.f32 %v3094, %v3217
        %v3263 = vmul.f32 %v3095, %v3219
        %v3264 = vmul.f32 %v3096, %v3221
        %v3265 = vmul.f32 %v3097, %v3223
        %v3266 = vmul.f32 %v3098, %v3225
        %v3267 = vmul.f32 %v3099, %v3227
        %v3268 = vmul.f32 %v3100, %v3229
        %v3269 = vmul.f32 %v3101, %v3231
        %v3270 = vmul.f32 %v3102, %v3233
        %v3271 = vmul.f32 %v3103, %v3235
        %v3272 = vmul.f32 %v3104, %v3237
        %v3273 = vmul.f32 %v3105, %v3239
        %v3274 = vmul.f32 %v3106, %v3241
        %v3275 = vmul.f32 %v3107, %v3243
        %v3276 = vmul.f32 %v3108, %v3245
        %v3277 = vmul.f32 %v3109, %v3247
        %v3278 = vmul.f32 %v3110, %v3249
        %v3279 = vmul.f32 %v3111, %v3251
        %v3280 = vmul.f32 %v3112, %v3253
        %v3281 = vmul.f32 %v3113, %v3255
        %v3282 = vmul.f32 %v3114, %v3257
        %v3283 = vmul.f32 %v3115, %v3259
        %3284 = vst [vmem:[%s258] sm:$0xff] %v3260
        %3285 = vst [vmem:[%s258 + $0x8] sm:$0xff] %v3261
        %3286 = vst [vmem:[%s258 + $0x10] sm:$0xff] %v3262
        %3287 = vst [vmem:[%s258 + $0x18] sm:$0xff] %v3263
        %3288 = vst [vmem:[%s258 + $0x20] sm:$0xff] %v3264
        %3289 = vst [vmem:[%s258 + $0x28] sm:$0xff] %v3265
        %3290 = vst [vmem:[%s258 + $0x30] sm:$0xff] %v3266
        %3291 = vst [vmem:[%s258 + $0x38] sm:$0xff] %v3267
        %3292 = vst [vmem:[%s258 + $0x40] sm:$0xff] %v3268
        %3293 = vst [vmem:[%s258 + $0x48] sm:$0xff] %v3269
        %3294 = vst [vmem:[%s258 + $0x50] sm:$0xff] %v3270
        %3295 = vst [vmem:[%s258 + $0x58] sm:$0xff] %v3271
        %3296 = vst [vmem:[%s258 + $0x60] sm:$0xff] %v3272
        %3297 = vst [vmem:[%s258 + $0x68] sm:$0xff] %v3273
        %3298 = vst [vmem:[%s258 + $0x70] sm:$0xff] %v3274
        %3299 = vst [vmem:[%s258 + $0x78] sm:$0xff] %v3275
        %3300 = vst [vmem:[%s258 + $0x80] sm:$0xff] %v3276
        %3301 = vst [vmem:[%s258 + $0x88] sm:$0xff] %v3277
        %3302 = vst [vmem:[%s258 + $0x90] sm:$0xff] %v3278
        %3303 = vst [vmem:[%s258 + $0x98] sm:$0xff] %v3279
        %3304 = vst [vmem:[%s258 + $0xa0] sm:$0xff] %v3280
        %3305 = vst [vmem:[%s258 + $0xa8] sm:$0xff] %v3281
        %3306 = vst [vmem:[%s258 + $0xb0] sm:$0xff] %v3282
        %3307 = vst [vmem:[%s258 + $0xb8] sm:$0xff] %v3283
        %s3308 = sand.u32 %s155, 1
        %s3309 = scalar_lea.sflag [#allocation4], %s3308
        %s3310 = sand.u32 %s155, 1
        %s3311 = smul.addr %s3310, 192
        %s3312 = scalar_lea.vmem [#allocation3], %s3311
        // Predicated region
        $region37: #{tpu_custom_call.1} parent=35 // pred_check
          %p3313 = pneg %p165
        $region38: #{tpu_custom_call.1} parent=35 // pred_check_branch
          %3315 = sbr.rel (%p3313) target = $region40
        $region39: #{tpu_custom_call.1} parent=35 // pred_region
          %s3316 = smul.u32 8, %s24
          %s3318 = ssub.s32 3072, 3072
          %3319 = vsyncadd %s3309, %s3318
          %s3320 = smul.addr %s3316, 3
          %s3321 = sadd.s32 %s25, %s3320
          %s3322 = smul.addr %s23, 48
          %s3323 = sadd.s32 %s3321, %s3322
          %s3324 = smul.addr %s3323, 128
          %s3325 = scalar_lea.hbm %s4, %s3324
          %s3326 = sshll.u32 %s3312, 4
          %s3327 = int_to_ptr.vmem [resolvable:$true] %s3326
          %3332 = dma.vmem_to_hbm [thread:$0]  %s3327, 3072, %s3325, %s3309, 128, 128, 8
        $region40: #{tpu_custom_call.1} parent=35 // pred_fallthru
          _
      $region36: #{tpu_custom_call.1} parent=5 // pred_fallthru
        _
      %p3333 = scmp.le.s32.totalorder 2, %s13
      // Predicated region
      $region41: #{tpu_custom_call.1} parent=5 // pred_check
        %p3334 = pneg %p3333
      $region42: #{tpu_custom_call.1} parent=5 // pred_check_branch
        %3336 = sbr.rel (%p3334) target = $region44
      $region43: #{tpu_custom_call.1} parent=5 // pred_region
        %s3337 = ssub.s32 %s13, 2
        // Predicated region
        $region45: #{tpu_custom_call.1} parent=43 // pred_check
          %p3338 = pneg %p171
        $region46: #{tpu_custom_call.1} parent=43 // pred_check_branch
          %3340 = sbr.rel (%p3338) target = $region48
        $region47: #{tpu_custom_call.1} parent=43 // pred_region
          %s3341 = sand.u32 %s156, 1
          %s3342 = scalar_lea.sflag [#allocation4], %s3341
          %s3343 = sand.u32 %s156, 1
          %s3344 = smul.addr %s3343, 192
          %s3345 = scalar_lea.vmem [#allocation3], %s3344
          %3346 = dma.done %s3342, 3072
        $region48: #{tpu_custom_call.1} parent=43 // pred_fallthru
          _
      $region44: #{tpu_custom_call.1} parent=5 // pred_fallthru
        _
    $region6: #{tpu_custom_call.1} parent=1 // loop_footer
      %s17 = sadd.s32 1, %s13
    $region7: #{tpu_custom_call.1} parent=1 // loop_footer_branch
      %12 = sbr.rel target = $region3
    $region8: #{tpu_custom_call.1} parent=1 // loop_exit
      _
    %3347 = vsyncpa [#allocation4], 1
    %s3348 = scalar_lea.sflag [#allocation4], 1
    %3349 = vsyncpa %s3348, 1

</llo_original>
